<compile_context>
chip_gen: v6e
topology: v6e:2x2x1
jax: 0.10.0
libtpu: 0.0.40
codegen_flags: <defaults>
</compile_context>

<pallas_src>
import functools

import numpy as np
import jax
import jax.numpy as jnp
from jax.experimental import pallas as pl
from jax.experimental.pallas import tpu as pltpu

_BN_EPS = 1e-4            # nn.BatchNorm2d(..., eps=0.0001)
_MAX_CIN = 16             # largest conv input channel count in this config
_VEC_COL = 9 * _MAX_CIN   # column where per-channel vectors start in w_slab
_W_COLS = _VEC_COL + 2    # weight slab width (weights + up to 2 vectors)


def _elu(z):
    # nn.ELU(alpha=1).
    return jnp.where(z > 0, z, jnp.exp(z) - 1.0)


# ----------------------------------------------------------------------------
# Host-side packing of all constants into two slabs + a static offset plan.
# ----------------------------------------------------------------------------
def _round8(r):
    return (r + 7) // 8 * 8


class _SlabPacker:
    """Packs many small 2-D constants into one (rows, cols) f32 slab, with
    8-aligned row offsets so every in-kernel static slice is sublane-aligned."""

    def __init__(self, cols):
        self.cols = cols
        self.entries = []
        self.next_row = 0

    def add_block(self, rows):
        row = self.next_row
        self.next_row = _round8(row + rows)
        return row

    def put(self, row, col, arr):
        arr = np.asarray(arr, np.float32)
        if arr.ndim == 1:
            arr = arr.reshape(-1, 1)
        self.entries.append((row, col, arr))

    def finalize(self):
        rows = max(self.next_row, 8)
        slab = np.zeros((rows, self.cols), np.float32)
        for r, c, a in self.entries:
            slab[r:r + a.shape[0], c:c + a.shape[1]] = a
        return slab


def _pack_conv(packer, w_oihw, vecs):
    """Conv weight (Cout, Cin, K, K) -> (Cout, K*K*Cin) block where column
    index = (ky*K + kx)*Cin + cin (matches the in-kernel tap-slab order).
    Per-channel vectors (bias / BN gamma,beta) go to cols _VEC_COL, _VEC_COL+1
    of the same rows."""
    w = np.asarray(w_oihw, np.float32)
    co, ci, kh, kw = w.shape
    row = packer.add_block(co)
    packer.put(row, 0, np.transpose(w, (0, 2, 3, 1)).reshape(co, kh * kw * ci))
    for i, v in enumerate(vecs):
        packer.put(row, _VEC_COL + i, np.asarray(v, np.float32))
    return {"row": row, "cin": ci, "cout": co, "k": kh}


def _make_tap_masks(n, h, w):
    """(9, n*h*w) 0/1 masks: tap t=(dy+1)*3+(dx+1) is 1 where the source pixel
    (hh+dy, ww+dx) lies inside the image (also handles batch-image boundaries
    crossed by the flat lane shift)."""
    idx = np.arange(n * h * w)
    hh = (idx // w) % h
    ww = idx % w
    masks = np.zeros((9, n * h * w), np.float32)
    t = 0
    for dy in (-1, 0, 1):
        for dx in (-1, 0, 1):
            valid = ((hh + dy >= 0) & (hh + dy < h)
                     & (ww + dx >= 0) & (ww + dx < w))
            masks[t] = valid.astype(np.float32)
            t += 1
    return masks


def _make_upsample_matrix(n, h, w):
    """0/1 selection matrix (n*h*w, n*2h*2w): act @ sel == nearest 2x upsample
    in the flat (C, N*H*W) lane-major layout."""
    h2, w2 = 2 * h, 2 * w
    m, m2 = n * h * w, n * h2 * w2
    col = np.arange(m2)
    img = col // (h2 * w2)
    rem = col % (h2 * w2)
    src = img * (h * w) + (rem // w2 // 2) * w + (rem % w2) // 2
    sel = np.zeros((m, m2), np.float32)
    sel[src, col] = 1.0
    return sel


def pack_decoder_params(params, block_up, n, h0, w0):
    """Pack every constant the kernel needs into two slabs (2 prologue DMAs)
    plus a static Python plan of row offsets / channel counts."""
    wp = _SlabPacker(_W_COLS)
    plan = {"n": n, "h0": h0, "w0": w0}
    plan["conv_in"] = _pack_conv(wp, params["conv_in"]["w"],
                                 [params["conv_in"]["b"]])
    blocks = []
    for bp, up in zip(params["res_blocks"], block_up):
        blk = {"up": bool(up)}
        blk["conv3"] = (_pack_conv(wp, bp["conv3"]["w"], [bp["conv3"]["b"]])
                        if "conv3" in bp else None)
        # conv1/conv2 biases are dropped: a per-channel bias followed by
        # training-mode BatchNorm cancels exactly under the mean subtraction.
        blk["conv1"] = _pack_conv(wp, bp["conv1"]["w"],
                                  [bp["bn1"]["g"], bp["bn1"]["b"]])
        blk["conv2"] = _pack_conv(wp, bp["conv2"]["w"],
                                  [bp["bn2"]["g"], bp["bn2"]["b"]])
        blocks.append(blk)
    plan["blocks"] = blocks
    plan["conv_out"] = _pack_conv(wp, params["conv_out"]["w"],
                                  [params["conv_out"]["b"]])

    # Aux slab: per-resolution tap masks + upsample selection matrices.
    n_res = 1 + sum(bool(u) for u in block_up)
    m_max = n * h0 * w0 * 4 ** (n_res - 1)
    ap = _SlabPacker(m_max)
    plan["mask_rows"], plan["up_rows"] = [], []
    h, w = h0, w0
    for r in range(n_res):
        row = ap.add_block(9)
        ap.put(row, 0, _make_tap_masks(n, h, w))
        plan["mask_rows"].append(row)
        if r < n_res - 1:
            # TODO(synk): for large resolutions, factor this per-axis (or tile
            # the kernel) instead of one (M, 4M) matrix; negligible here.
            urow = ap.add_block(n * h * w)
            ap.put(urow, 0, _make_upsample_matrix(n, h, w))
            plan["up_rows"].append(urow)
            h, w = 2 * h, 2 * w
    return jnp.asarray(wp.finalize()), jnp.asarray(ap.finalize()), plan


# ----------------------------------------------------------------------------
# The fused kernel.  Activation layout: (C, M), M = N*H*W on the lane axis.
# ----------------------------------------------------------------------------
def _decoder_kernel(plan, x_ref, w_ref, aux_ref, o_ref):
    n = plan["n"]

    def weight(blk):
        r, co, ci, k = blk["row"], blk["cout"], blk["cin"], blk["k"]
        return w_ref[r:r + co, 0:k * k * ci]

    def vec(blk, i):
        r, co = blk["row"], blk["cout"]
        return w_ref[r:r + co, _VEC_COL + i:_VEC_COL + i + 1]

    mask_cache = {}

    def tap_masks(res, m):
        if res not in mask_cache:
            row = plan["mask_rows"][res]
            mm = aux_ref[row:row + 9, 0:m]                 # (9, M), one load
            mask_cache[res] = [None if t == 4 else mm[t:t + 1, :]
                               for t in range(9)]
        return mask_cache[res]

    def conv3x3(x, blk, res, h, w):
        """3x3/stride1/pad1 conv as ONE matmul: im2col slab (9*Cin, M) built
        from 9 static lane slices of a zero-padded copy, masked by precomputed
        boundary masks, contracted against the pre-packed (Cout, 9*Cin)."""
        cin, m = x.shape
        pad = w + 1
        z = jnp.zeros((cin, pad), jnp.float32)
        xp = jnp.concatenate([z, x, z], axis=1)            # (Cin, M + 2*pad)
        msk = tap_masks(res, m)
        pieces, t = [], 0
        for dy in (-1, 0, 1):
            for dx in (-1, 0, 1):
                off = pad + dy * w + dx
                xs = xp[:, off:off + m]                    # xs[:, j] = x[:, j+s]
                if msk[t] is not None:
                    xs = xs * msk[t]
                pieces.append(xs)
                t += 1
        slab = jnp.concatenate(pieces, axis=0)             # (9*Cin, M)
        return jnp.dot(weight(blk), slab, preferred_element_type=jnp.float32)

    def batchnorm(y, blk, inv_m):
        # Training-mode BN over M = N*H*W.  One pass: both lane reductions
        # issue back-to-back; var = E[y^2] - mean^2 (eps=1e-4 gives headroom).
        s1 = jnp.sum(y, axis=1, keepdims=True)
        s2 = jnp.sum(y * y, axis=1, keepdims=True)
        mean = s1 * inv_m
        var = s2 * inv_m - mean * mean
        scale = jax.lax.rsqrt(var + _BN_EPS) * vec(blk, 0)
        return (y - mean) * scale + vec(blk, 1)

    # conv_in (1x1) + ELU
    ci_blk = plan["conv_in"]
    act = jnp.dot(weight(ci_blk), x_ref[...],
                  preferred_element_type=jnp.float32) + vec(ci_blk, 0)
    act = _elu(act)

    h, w = plan["h0"], plan["w0"]
    res = 0
    for blk in plan["blocks"]:
        if blk["up"]:                                      # nearest 2x upsample
            m_in = n * h * w
            h, w = 2 * h, 2 * w
            m_out = n * h * w
            row = plan["up_rows"][res]
            act = jnp.dot(act, aux_ref[row:row + m_in, 0:m_out],
                          preferred_element_type=jnp.float32)
            res += 1
        inv_m = 1.0 / float(n * h * w)
        if blk["conv3"] is not None:                       # ResUp / projection skip
            skip = conv3x3(act, blk["conv3"], res, h, w) + vec(blk["conv3"], 0)
        else:                                              # nn.Identity() skip
            skip = act
        t1 = _elu(batchnorm(conv3x3(act, blk["conv1"], res, h, w),
                            blk["conv1"], inv_m))          # conv1 bias folded
        t2 = batchnorm(conv3x3(t1, blk["conv2"], res, h, w),
                       blk["conv2"], inv_m)                # conv2 bias folded
        act = _elu(t2 + skip)

    co_blk = plan["conv_out"]
    out = conv3x3(act, co_blk, res, h, w) + vec(co_blk, 0)
    o_ref[...] = jnp.tanh(out).astype(o_ref.dtype)


# ----------------------------------------------------------------------------
# Host wrapper: pack once, one fused pallas_call, NCHW in/out.
# ----------------------------------------------------------------------------
def make_decoder_forward(params, block_up, *, n, h0, w0):
    w_slab, aux_slab, plan = pack_decoder_params(params, block_up, n, h0, w0)
    c_lat = params["conv_in"]["w"].shape[1]
    c_out = params["conv_out"]["w"].shape[0]
    scale = 2 ** sum(bool(u) for u in block_up)
    h_out, w_out = h0 * scale, w0 * scale
    m_out = n * h_out * w_out

    kernel = functools.partial(_decoder_kernel, plan)
    vmem = pl.BlockSpec(memory_space=pltpu.MemorySpace.VMEM)
    call = pl.pallas_call(
        kernel,
        out_shape=jax.ShapeDtypeStruct((c_out, m_out), jnp.float32),
        in_specs=[vmem, vmem, vmem],          # 3 prologue DMAs total
        out_specs=vmem,                       # lane-dense (C, N*H*W) store
        compiler_params=pltpu.CompilerParams(
            vmem_limit_bytes=32 * 1024 * 1024),
    )
    # TODO(synk): no batch grid (and hence a single TensorCore on v7x) because
    # training-mode BatchNorm needs full-batch statistics; a split would need a
    # cross-block reduction and is not worth it at this launch-bound size.

    @jax.jit
    def fwd(x_nchw, w_slab, aux_slab):
        # (N, C, H, W) -> (C, N*H*W): channels on sublanes, flat spatial lanes.
        x2d = jnp.transpose(x_nchw, (1, 0, 2, 3)).reshape(c_lat, n * h0 * w0)
        out2d = call(x2d, w_slab, aux_slab)
        return jnp.transpose(out2d.reshape(c_out, n, h_out, w_out),
                             (1, 0, 2, 3))

    return lambda x: fwd(x, w_slab, aux_slab)


# ----------------------------------------------------------------------------
# Deterministic synthetic parameters (PyTorch layouts: OIHW conv weights).
# ----------------------------------------------------------------------------
def _conv_init(key, cout, cin, k):
    kw, kb = jax.random.split(key)
    scale = 1.0 / jnp.sqrt(float(cin * k * k))
    return {"w": scale * jax.random.normal(kw, (cout, cin, k, k), jnp.float32),
            "b": 0.01 * jax.random.normal(kb, (cout,), jnp.float32)}


def _bn_init(key, c):
    kg, kb = jax.random.split(key)
    return {"g": 1.0 + 0.05 * jax.random.normal(kg, (c,), jnp.float32),
            "b": 0.05 * jax.random.normal(kb, (c,), jnp.float32)}


def init_decoder_params(key, channels=3, ch=8, blocks=(1, 2), latent_channels=4):
    """Mirrors the PyTorch Decoder structure for cnfg = (ch, blocks, latent)."""
    keys = iter(jax.random.split(key, 64))
    top = blocks[-1] * ch
    params = {"conv_in": _conv_init(next(keys), top, latent_channels, 1)}

    def res_block(cin, cout, with_conv3):
        p = {"conv1": _conv_init(next(keys), cin // 2, cin, 3),
             "bn1": _bn_init(next(keys), cin // 2),
             "conv2": _conv_init(next(keys), cout, cin // 2, 3),
             "bn2": _bn_init(next(keys), cout)}
        if with_conv3:
            p["conv3"] = _conv_init(next(keys), cout, cin, 3)
        return p

    res_blocks = [res_block(top, top, False),           # ResBlock(2*ch, 2*ch)
                  res_block(top, top, False)]           # ResBlock(2*ch, 2*ch)
    block_up = [False, False]
    widths_out = list(blocks)[::-1]
    widths_in = (list(blocks[1:]) + [blocks[-1]])[::-1]
    for w_in, w_out in zip(widths_in, widths_out):      # ResUp blocks
        res_blocks.append(res_block(w_in * ch, w_out * ch, True))
        block_up.append(True)
    params["res_blocks"] = res_blocks
    params["conv_out"] = _conv_init(next(keys), channels, blocks[0] * ch, 3)
    return params, tuple(block_up)


# ----------------------------------------------------------------------------
# Pure-XLA reference of the PyTorch module (numerical self-check).
# ----------------------------------------------------------------------------
def _conv_ref(x, w, b, padding):
    y = jax.lax.conv_general_dilated(
        x, w, window_strides=(1, 1), padding=padding,
        dimension_numbers=("NCHW", "OIHW", "NCHW"))
    return y + b.reshape(1, -1, 1, 1)


def _bn_ref(x, g, b):
    mean = jnp.mean(x, axis=(0, 2, 3), keepdims=True)
    var = jnp.mean(jnp.square(x - mean), axis=(0, 2, 3), keepdims=True)
    xn = (x - mean) * jax.lax.rsqrt(var + _BN_EPS)
    return xn * g.reshape(1, -1, 1, 1) + b.reshape(1, -1, 1, 1)


def decoder_reference(x, params, block_up):
    h = _elu(_conv_ref(x, params["conv_in"]["w"], params["conv_in"]["b"],
                       "VALID"))
    for bp, up in zip(params["res_blocks"], block_up):
        if up:
            h = jnp.repeat(jnp.repeat(h, 2, axis=2), 2, axis=3)
        skip = (_conv_ref(h, bp["conv3"]["w"], bp["conv3"]["b"], "SAME")
                if "conv3" in bp else h)
        t = _conv_ref(h, bp["conv1"]["w"], bp["conv1"]["b"], "SAME")
        t = _elu(_bn_ref(t, bp["bn1"]["g"], bp["bn1"]["b"]))
        t = _conv_ref(t, bp["conv2"]["w"], bp["conv2"]["b"], "SAME")
        h = _elu(_bn_ref(t, bp["bn2"]["g"], bp["bn2"]["b"]) + skip)
    return jnp.tanh(_conv_ref(h, params["conv_out"]["w"],
                              params["conv_out"]["b"], "SAME"))


# ----------------------------------------------------------------------------
if __name__ == "__main__":
    key = jax.random.PRNGKey(0)
    pkey, xkey = jax.random.split(key)

    CH, BLOCKS, LATENT, OUT_CH = 8, (1, 2), 4, 3
    N, H0, W0 = 2, 4, 4
    params, block_up = init_decoder_params(pkey, channels=OUT_CH, ch=CH,
                                           blocks=BLOCKS,
                                           latent_channels=LATENT)

    # Input in PyTorch NCHW convention: (batch=2, latent_channels=4, 4, 4).
    x = jax.random.normal(xkey, (N, LATENT, H0, W0), jnp.float32)

    fwd = make_decoder_forward(params, block_up, n=N, h0=H0, w0=W0)
    out = jax.block_until_ready(fwd(x))

    assert out.shape == (N, OUT_CH, 16, 16), out.shape
    assert bool(jnp.all(jnp.isfinite(out)))
    assert bool(jnp.all(jnp.abs(out) <= 1.0 + 1e-6))        # tanh output range

    # Numerical check against a pure-XLA reference of the PyTorch module.
    ref = decoder_reference(x, params, block_up)
    max_err = float(jnp.max(jnp.abs(out - ref)))
    assert max_err < 2e-3, f"max abs err vs reference: {max_err}"

    print("KERNEL_OK")
</pallas_src>

<mosaic_0001>
module attributes {stable_mosaic.version = 11 : i64} {
  func.func @_decoder_kernel(%arg0: memref<4x32xf32, #tpu.memory_space<vmem>>, %arg1: memref<136x146xf32, #tpu.memory_space<vmem>>, %arg2: memref<208x512xf32, #tpu.memory_space<vmem>>, %arg3: memref<3x512xf32, #tpu.memory_space<vmem>>) attributes {dimension_semantics = [], scalar_prefetch = 0 : i64, scratch_operands = 0 : i64, tpu.core_type = #tpu.core_type<tc>} {
    %c0 = arith.constant 0 : index
    %c0_0 = arith.constant 0 : index
    %0 = vector.load %arg1[%c0, %c0_0] : memref<136x146xf32, #tpu.memory_space<vmem>>, vector<16x4xf32>
    %c0_1 = arith.constant 0 : index
    %c0_2 = arith.constant 0 : index
    %1 = vector.load %arg0[%c0_1, %c0_2] : memref<4x32xf32, #tpu.memory_space<vmem>>, vector<4x32xf32>
    %cst = arith.constant dense<0.000000e+00> : vector<16x32xf32>
    %2 = tpu.matmul %0, %1, %cst {dimension_numbers = #tpu.dot_dimension_numbers<[1], [0], [0], [1], [0, 0, 1, 1], [], []>} : vector<16x4xf32>, vector<4x32xf32>, vector<16x32xf32> -> vector<16x32xf32>
    %c0_3 = arith.constant 0 : index
    %c144 = arith.constant 144 : index
    %3 = vector.load %arg1[%c0_3, %c144] : memref<136x146xf32, #tpu.memory_space<vmem>>, vector<16x1xf32>
    %4 = vector.broadcast %3 : vector<16x1xf32> to vector<16x32xf32>
    %5 = arith.addf %2, %4 : vector<16x32xf32>
    %cst_4 = arith.constant 0.000000e+00 : f32
    %6 = vector.broadcast %cst_4 : f32 to vector<16x32xf32>
    %7 = arith.cmpf ogt, %5, %6 : vector<16x32xf32>
    %8 = math.exp %5 : vector<16x32xf32>
    %cst_5 = arith.constant 1.000000e+00 : f32
    %9 = vector.broadcast %cst_5 : f32 to vector<16x32xf32>
    %10 = arith.subf %8, %9 : vector<16x32xf32>
    %11 = arith.select %7, %5, %10 : vector<16x32xi1>, vector<16x32xf32>
    %cst_6 = arith.constant 0.000000e+00 : f32
    %12 = vector.broadcast %cst_6 : f32 to vector<16x5xf32>
    %13 = tpu.concatenate %12, %11, %12 in 1 : vector<16x5xf32>, vector<16x32xf32>, vector<16x5xf32> -> vector<16x42xf32>
    %c0_7 = arith.constant 0 : index
    %c0_8 = arith.constant 0 : index
    %14 = vector.load %arg2[%c0_7, %c0_8] : memref<208x512xf32, #tpu.memory_space<vmem>>, vector<9x32xf32>
    %15 = vector.extract_strided_slice %14 {offsets = [0, 0], sizes = [1, 32], strides = [1, 1]} : vector<9x32xf32> to vector<1x32xf32>
    %16 = vector.extract_strided_slice %14 {offsets = [1, 0], sizes = [1, 32], strides = [1, 1]} : vector<9x32xf32> to vector<1x32xf32>
    %17 = vector.extract_strided_slice %14 {offsets = [2, 0], sizes = [1, 32], strides = [1, 1]} : vector<9x32xf32> to vector<1x32xf32>
    %18 = vector.extract_strided_slice %14 {offsets = [3, 0], sizes = [1, 32], strides = [1, 1]} : vector<9x32xf32> to vector<1x32xf32>
    %19 = vector.extract_strided_slice %14 {offsets = [5, 0], sizes = [1, 32], strides = [1, 1]} : vector<9x32xf32> to vector<1x32xf32>
    %20 = vector.extract_strided_slice %14 {offsets = [6, 0], sizes = [1, 32], strides = [1, 1]} : vector<9x32xf32> to vector<1x32xf32>
    %21 = vector.extract_strided_slice %14 {offsets = [7, 0], sizes = [1, 32], strides = [1, 1]} : vector<9x32xf32> to vector<1x32xf32>
    %22 = vector.extract_strided_slice %14 {offsets = [8, 0], sizes = [1, 32], strides = [1, 1]} : vector<9x32xf32> to vector<1x32xf32>
    %23 = vector.extract_strided_slice %13 {offsets = [0, 0], sizes = [16, 32], strides = [1, 1]} : vector<16x42xf32> to vector<16x32xf32>
    %24 = vector.broadcast %15 : vector<1x32xf32> to vector<16x32xf32>
    %25 = arith.mulf %23, %24 : vector<16x32xf32>
    %26 = vector.extract_strided_slice %13 {offsets = [0, 1], sizes = [16, 32], strides = [1, 1]} : vector<16x42xf32> to vector<16x32xf32>
    %27 = vector.broadcast %16 : vector<1x32xf32> to vector<16x32xf32>
    %28 = arith.mulf %26, %27 : vector<16x32xf32>
    %29 = vector.extract_strided_slice %13 {offsets = [0, 2], sizes = [16, 32], strides = [1, 1]} : vector<16x42xf32> to vector<16x32xf32>
    %30 = vector.broadcast %17 : vector<1x32xf32> to vector<16x32xf32>
    %31 = arith.mulf %29, %30 : vector<16x32xf32>
    %32 = vector.extract_strided_slice %13 {offsets = [0, 4], sizes = [16, 32], strides = [1, 1]} : vector<16x42xf32> to vector<16x32xf32>
    %33 = vector.broadcast %18 : vector<1x32xf32> to vector<16x32xf32>
    %34 = arith.mulf %32, %33 : vector<16x32xf32>
    %35 = vector.extract_strided_slice %13 {offsets = [0, 5], sizes = [16, 32], strides = [1, 1]} : vector<16x42xf32> to vector<16x32xf32>
    %36 = vector.extract_strided_slice %13 {offsets = [0, 6], sizes = [16, 32], strides = [1, 1]} : vector<16x42xf32> to vector<16x32xf32>
    %37 = vector.broadcast %19 : vector<1x32xf32> to vector<16x32xf32>
    %38 = arith.mulf %36, %37 : vector<16x32xf32>
    %39 = vector.extract_strided_slice %13 {offsets = [0, 8], sizes = [16, 32], strides = [1, 1]} : vector<16x42xf32> to vector<16x32xf32>
    %40 = vector.broadcast %20 : vector<1x32xf32> to vector<16x32xf32>
    %41 = arith.mulf %39, %40 : vector<16x32xf32>
    %42 = vector.extract_strided_slice %13 {offsets = [0, 9], sizes = [16, 32], strides = [1, 1]} : vector<16x42xf32> to vector<16x32xf32>
    %43 = vector.broadcast %21 : vector<1x32xf32> to vector<16x32xf32>
    %44 = arith.mulf %42, %43 : vector<16x32xf32>
    %45 = vector.extract_strided_slice %13 {offsets = [0, 10], sizes = [16, 32], strides = [1, 1]} : vector<16x42xf32> to vector<16x32xf32>
    %46 = vector.broadcast %22 : vector<1x32xf32> to vector<16x32xf32>
    %47 = arith.mulf %45, %46 : vector<16x32xf32>
    %48 = tpu.concatenate %25, %28, %31, %34, %35, %38, %41, %44, %47 in 0 : vector<16x32xf32>, vector<16x32xf32>, vector<16x32xf32>, vector<16x32xf32>, vector<16x32xf32>, vector<16x32xf32>, vector<16x32xf32>, vector<16x32xf32>, vector<16x32xf32> -> vector<144x32xf32>
    %c16 = arith.constant 16 : index
    %c0_9 = arith.constant 0 : index
    %49 = vector.load %arg1[%c16, %c0_9] : memref<136x146xf32, #tpu.memory_space<vmem>>, vector<8x144xf32>
    %cst_10 = arith.constant dense<0.000000e+00> : vector<8x32xf32>
    %50 = tpu.matmul %49, %48, %cst_10 {dimension_numbers = #tpu.dot_dimension_numbers<[1], [0], [0], [1], [0, 0, 1, 1], [], []>} : vector<8x144xf32>, vector<144x32xf32>, vector<8x32xf32> -> vector<8x32xf32>
    %cst_11 = arith.constant dense<0.000000e+00> : vector<8xf32>
    %51 = vector.multi_reduction <add>, %50, %cst_11 [1] : vector<8x32xf32> to vector<8xf32>
    %52 = vector.shape_cast %51 : vector<8xf32> to vector<8x1xf32>
    %53 = arith.mulf %50, %50 : vector<8x32xf32>
    %cst_12 = arith.constant dense<0.000000e+00> : vector<8xf32>
    %54 = vector.multi_reduction <add>, %53, %cst_12 [1] : vector<8x32xf32> to vector<8xf32>
    %55 = vector.shape_cast %54 : vector<8xf32> to vector<8x1xf32>
    %cst_13 = arith.constant 3.125000e-02 : f32
    %56 = vector.broadcast %cst_13 : f32 to vector<8x1xf32>
    %57 = arith.mulf %52, %56 : vector<8x1xf32>
    %cst_14 = arith.constant 3.125000e-02 : f32
    %58 = vector.broadcast %cst_14 : f32 to vector<8x1xf32>
    %59 = arith.mulf %55, %58 : vector<8x1xf32>
    %60 = arith.mulf %57, %57 : vector<8x1xf32>
    %61 = arith.subf %59, %60 : vector<8x1xf32>
    %cst_15 = arith.constant 9.99999974E-5 : f32
    %62 = vector.broadcast %cst_15 : f32 to vector<8x1xf32>
    %63 = arith.addf %61, %62 : vector<8x1xf32>
    %64 = math.rsqrt %63 : vector<8x1xf32>
    %c16_16 = arith.constant 16 : index
    %c144_17 = arith.constant 144 : index
    %65 = vector.load %arg1[%c16_16, %c144_17] : memref<136x146xf32, #tpu.memory_space<vmem>>, vector<8x1xf32>
    %66 = arith.mulf %64, %65 : vector<8x1xf32>
    %67 = vector.broadcast %57 : vector<8x1xf32> to vector<8x32xf32>
    %68 = arith.subf %50, %67 : vector<8x32xf32>
    %69 = vector.broadcast %66 : vector<8x1xf32> to vector<8x32xf32>
    %70 = arith.mulf %68, %69 : vector<8x32xf32>
    %c16_18 = arith.constant 16 : index
    %c145 = arith.constant 145 : index
    %71 = vector.load %arg1[%c16_18, %c145] : memref<136x146xf32, #tpu.memory_space<vmem>>, vector<8x1xf32>
    %72 = vector.broadcast %71 : vector<8x1xf32> to vector<8x32xf32>
    %73 = arith.addf %70, %72 : vector<8x32xf32>
    %cst_19 = arith.constant 0.000000e+00 : f32
    %74 = vector.broadcast %cst_19 : f32 to vector<8x32xf32>
    %75 = arith.cmpf ogt, %73, %74 : vector<8x32xf32>
    %76 = math.exp %73 : vector<8x32xf32>
    %cst_20 = arith.constant 1.000000e+00 : f32
    %77 = vector.broadcast %cst_20 : f32 to vector<8x32xf32>
    %78 = arith.subf %76, %77 : vector<8x32xf32>
    %79 = arith.select %75, %73, %78 : vector<8x32xi1>, vector<8x32xf32>
    %cst_21 = arith.constant 0.000000e+00 : f32
    %80 = vector.broadcast %cst_21 : f32 to vector<8x5xf32>
    %81 = tpu.concatenate %80, %79, %80 in 1 : vector<8x5xf32>, vector<8x32xf32>, vector<8x5xf32> -> vector<8x42xf32>
    %82 = vector.extract_strided_slice %81 {offsets = [0, 0], sizes = [8, 32], strides = [1, 1]} : vector<8x42xf32> to vector<8x32xf32>
    %83 = vector.broadcast %15 : vector<1x32xf32> to vector<8x32xf32>
    %84 = arith.mulf %82, %83 : vector<8x32xf32>
    %85 = vector.extract_strided_slice %81 {offsets = [0, 1], sizes = [8, 32], strides = [1, 1]} : vector<8x42xf32> to vector<8x32xf32>
    %86 = vector.broadcast %16 : vector<1x32xf32> to vector<8x32xf32>
    %87 = arith.mulf %85, %86 : vector<8x32xf32>
    %88 = vector.extract_strided_slice %81 {offsets = [0, 2], sizes = [8, 32], strides = [1, 1]} : vector<8x42xf32> to vector<8x32xf32>
    %89 = vector.broadcast %17 : vector<1x32xf32> to vector<8x32xf32>
    %90 = arith.mulf %88, %89 : vector<8x32xf32>
    %91 = vector.extract_strided_slice %81 {offsets = [0, 4], sizes = [8, 32], strides = [1, 1]} : vector<8x42xf32> to vector<8x32xf32>
    %92 = vector.broadcast %18 : vector<1x32xf32> to vector<8x32xf32>
    %93 = arith.mulf %91, %92 : vector<8x32xf32>
    %94 = vector.extract_strided_slice %81 {offsets = [0, 5], sizes = [8, 32], strides = [1, 1]} : vector<8x42xf32> to vector<8x32xf32>
    %95 = vector.extract_strided_slice %81 {offsets = [0, 6], sizes = [8, 32], strides = [1, 1]} : vector<8x42xf32> to vector<8x32xf32>
    %96 = vector.broadcast %19 : vector<1x32xf32> to vector<8x32xf32>
    %97 = arith.mulf %95, %96 : vector<8x32xf32>
    %98 = vector.extract_strided_slice %81 {offsets = [0, 8], sizes = [8, 32], strides = [1, 1]} : vector<8x42xf32> to vector<8x32xf32>
    %99 = vector.broadcast %20 : vector<1x32xf32> to vector<8x32xf32>
    %100 = arith.mulf %98, %99 : vector<8x32xf32>
    %101 = vector.extract_strided_slice %81 {offsets = [0, 9], sizes = [8, 32], strides = [1, 1]} : vector<8x42xf32> to vector<8x32xf32>
    %102 = vector.broadcast %21 : vector<1x32xf32> to vector<8x32xf32>
    %103 = arith.mulf %101, %102 : vector<8x32xf32>
    %104 = vector.extract_strided_slice %81 {offsets = [0, 10], sizes = [8, 32], strides = [1, 1]} : vector<8x42xf32> to vector<8x32xf32>
    %105 = vector.broadcast %22 : vector<1x32xf32> to vector<8x32xf32>
    %106 = arith.mulf %104, %105 : vector<8x32xf32>
    %107 = tpu.concatenate %84, %87, %90, %93, %94, %97, %100, %103, %106 in 0 : vector<8x32xf32>, vector<8x32xf32>, vector<8x32xf32>, vector<8x32xf32>, vector<8x32xf32>, vector<8x32xf32>, vector<8x32xf32>, vector<8x32xf32>, vector<8x32xf32> -> vector<72x32xf32>
    %c24 = arith.constant 24 : index
    %c0_22 = arith.constant 0 : index
    %108 = vector.load %arg1[%c24, %c0_22] : memref<136x146xf32, #tpu.memory_space<vmem>>, vector<16x72xf32>
    %cst_23 = arith.constant dense<0.000000e+00> : vector<16x32xf32>
    %109 = tpu.matmul %108, %107, %cst_23 {dimension_numbers = #tpu.dot_dimension_numbers<[1], [0], [0], [1], [0, 0, 1, 1], [], []>} : vector<16x72xf32>, vector<72x32xf32>, vector<16x32xf32> -> vector<16x32xf32>
    %cst_24 = arith.constant dense<0.000000e+00> : vector<16xf32>
    %110 = vector.multi_reduction <add>, %109, %cst_24 [1] : vector<16x32xf32> to vector<16xf32>
    %111 = vector.shape_cast %110 : vector<16xf32> to vector<16x1xf32>
    %112 = arith.mulf %109, %109 : vector<16x32xf32>
    %cst_25 = arith.constant dense<0.000000e+00> : vector<16xf32>
    %113 = vector.multi_reduction <add>, %112, %cst_25 [1] : vector<16x32xf32> to vector<16xf32>
    %114 = vector.shape_cast %113 : vector<16xf32> to vector<16x1xf32>
    %cst_26 = arith.constant 3.125000e-02 : f32
    %115 = vector.broadcast %cst_26 : f32 to vector<16x1xf32>
    %116 = arith.mulf %111, %115 : vector<16x1xf32>
    %cst_27 = arith.constant 3.125000e-02 : f32
    %117 = vector.broadcast %cst_27 : f32 to vector<16x1xf32>
    %118 = arith.mulf %114, %117 : vector<16x1xf32>
    %119 = arith.mulf %116, %116 : vector<16x1xf32>
    %120 = arith.subf %118, %119 : vector<16x1xf32>
    %cst_28 = arith.constant 9.99999974E-5 : f32
    %121 = vector.broadcast %cst_28 : f32 to vector<16x1xf32>
    %122 = arith.addf %120, %121 : vector<16x1xf32>
    %123 = math.rsqrt %122 : vector<16x1xf32>
    %c24_29 = arith.constant 24 : index
    %c144_30 = arith.constant 144 : index
    %124 = vector.load %arg1[%c24_29, %c144_30] : memref<136x146xf32, #tpu.memory_space<vmem>>, vector<16x1xf32>
    %125 = arith.mulf %123, %124 : vector<16x1xf32>
    %126 = vector.broadcast %116 : vector<16x1xf32> to vector<16x32xf32>
    %127 = arith.subf %109, %126 : vector<16x32xf32>
    %128 = vector.broadcast %125 : vector<16x1xf32> to vector<16x32xf32>
    %129 = arith.mulf %127, %128 : vector<16x32xf32>
    %c24_31 = arith.constant 24 : index
    %c145_32 = arith.constant 145 : index
    %130 = vector.load %arg1[%c24_31, %c145_32] : memref<136x146xf32, #tpu.memory_space<vmem>>, vector<16x1xf32>
    %131 = vector.broadcast %130 : vector<16x1xf32> to vector<16x32xf32>
    %132 = arith.addf %129, %131 : vector<16x32xf32>
    %133 = arith.addf %132, %11 : vector<16x32xf32>
    %cst_33 = arith.constant 0.000000e+00 : f32
    %134 = vector.broadcast %cst_33 : f32 to vector<16x32xf32>
    %135 = arith.cmpf ogt, %133, %134 : vector<16x32xf32>
    %136 = math.exp %133 : vector<16x32xf32>
    %cst_34 = arith.constant 1.000000e+00 : f32
    %137 = vector.broadcast %cst_34 : f32 to vector<16x32xf32>
    %138 = arith.subf %136, %137 : vector<16x32xf32>
    %139 = arith.select %135, %133, %138 : vector<16x32xi1>, vector<16x32xf32>
    %cst_35 = arith.constant 0.000000e+00 : f32
    %140 = vector.broadcast %cst_35 : f32 to vector<16x5xf32>
    %141 = tpu.concatenate %140, %139, %140 in 1 : vector<16x5xf32>, vector<16x32xf32>, vector<16x5xf32> -> vector<16x42xf32>
    %142 = vector.extract_strided_slice %141 {offsets = [0, 0], sizes = [16, 32], strides = [1, 1]} : vector<16x42xf32> to vector<16x32xf32>
    %143 = vector.broadcast %15 : vector<1x32xf32> to vector<16x32xf32>
    %144 = arith.mulf %142, %143 : vector<16x32xf32>
    %145 = vector.extract_strided_slice %141 {offsets = [0, 1], sizes = [16, 32], strides = [1, 1]} : vector<16x42xf32> to vector<16x32xf32>
    %146 = vector.broadcast %16 : vector<1x32xf32> to vector<16x32xf32>
    %147 = arith.mulf %145, %146 : vector<16x32xf32>
    %148 = vector.extract_strided_slice %141 {offsets = [0, 2], sizes = [16, 32], strides = [1, 1]} : vector<16x42xf32> to vector<16x32xf32>
    %149 = vector.broadcast %17 : vector<1x32xf32> to vector<16x32xf32>
    %150 = arith.mulf %148, %149 : vector<16x32xf32>
    %151 = vector.extract_strided_slice %141 {offsets = [0, 4], sizes = [16, 32], strides = [1, 1]} : vector<16x42xf32> to vector<16x32xf32>
    %152 = vector.broadcast %18 : vector<1x32xf32> to vector<16x32xf32>
    %153 = arith.mulf %151, %152 : vector<16x32xf32>
    %154 = vector.extract_strided_slice %141 {offsets = [0, 5], sizes = [16, 32], strides = [1, 1]} : vector<16x42xf32> to vector<16x32xf32>
    %155 = vector.extract_strided_slice %141 {offsets = [0, 6], sizes = [16, 32], strides = [1, 1]} : vector<16x42xf32> to vector<16x32xf32>
    %156 = vector.broadcast %19 : vector<1x32xf32> to vector<16x32xf32>
    %157 = arith.mulf %155, %156 : vector<16x32xf32>
    %158 = vector.extract_strided_slice %141 {offsets = [0, 8], sizes = [16, 32], strides = [1, 1]} : vector<16x42xf32> to vector<16x32xf32>
    %159 = vector.broadcast %20 : vector<1x32xf32> to vector<16x32xf32>
    %160 = arith.mulf %158, %159 : vector<16x32xf32>
    %161 = vector.extract_strided_slice %141 {offsets = [0, 9], sizes = [16, 32], strides = [1, 1]} : vector<16x42xf32> to vector<16x32xf32>
    %162 = vector.broadcast %21 : vector<1x32xf32> to vector<16x32xf32>
    %163 = arith.mulf %161, %162 : vector<16x32xf32>
    %164 = vector.extract_strided_slice %141 {offsets = [0, 10], sizes = [16, 32], strides = [1, 1]} : vector<16x42xf32> to vector<16x32xf32>
    %165 = vector.broadcast %22 : vector<1x32xf32> to vector<16x32xf32>
    %166 = arith.mulf %164, %165 : vector<16x32xf32>
    %167 = tpu.concatenate %144, %147, %150, %153, %154, %157, %160, %163, %166 in 0 : vector<16x32xf32>, vector<16x32xf32>, vector<16x32xf32>, vector<16x32xf32>, vector<16x32xf32>, vector<16x32xf32>, vector<16x32xf32>, vector<16x32xf32>, vector<16x32xf32> -> vector<144x32xf32>
    %c40 = arith.constant 40 : index
    %c0_36 = arith.constant 0 : index
    %168 = vector.load %arg1[%c40, %c0_36] : memref<136x146xf32, #tpu.memory_space<vmem>>, vector<8x144xf32>
    %cst_37 = arith.constant dense<0.000000e+00> : vector<8x32xf32>
    %169 = tpu.matmul %168, %167, %cst_37 {dimension_numbers = #tpu.dot_dimension_numbers<[1], [0], [0], [1], [0, 0, 1, 1], [], []>} : vector<8x144xf32>, vector<144x32xf32>, vector<8x32xf32> -> vector<8x32xf32>
    %cst_38 = arith.constant dense<0.000000e+00> : vector<8xf32>
    %170 = vector.multi_reduction <add>, %169, %cst_38 [1] : vector<8x32xf32> to vector<8xf32>
    %171 = vector.shape_cast %170 : vector<8xf32> to vector<8x1xf32>
    %172 = arith.mulf %169, %169 : vector<8x32xf32>
    %cst_39 = arith.constant dense<0.000000e+00> : vector<8xf32>
    %173 = vector.multi_reduction <add>, %172, %cst_39 [1] : vector<8x32xf32> to vector<8xf32>
    %174 = vector.shape_cast %173 : vector<8xf32> to vector<8x1xf32>
    %cst_40 = arith.constant 3.125000e-02 : f32
    %175 = vector.broadcast %cst_40 : f32 to vector<8x1xf32>
    %176 = arith.mulf %171, %175 : vector<8x1xf32>
    %cst_41 = arith.constant 3.125000e-02 : f32
    %177 = vector.broadcast %cst_41 : f32 to vector<8x1xf32>
    %178 = arith.mulf %174, %177 : vector<8x1xf32>
    %179 = arith.mulf %176, %176 : vector<8x1xf32>
    %180 = arith.subf %178, %179 : vector<8x1xf32>
    %cst_42 = arith.constant 9.99999974E-5 : f32
    %181 = vector.broadcast %cst_42 : f32 to vector<8x1xf32>
    %182 = arith.addf %180, %181 : vector<8x1xf32>
    %183 = math.rsqrt %182 : vector<8x1xf32>
    %c40_43 = arith.constant 40 : index
    %c144_44 = arith.constant 144 : index
    %184 = vector.load %arg1[%c40_43, %c144_44] : memref<136x146xf32, #tpu.memory_space<vmem>>, vector<8x1xf32>
    %185 = arith.mulf %183, %184 : vector<8x1xf32>
    %186 = vector.broadcast %176 : vector<8x1xf32> to vector<8x32xf32>
    %187 = arith.subf %169, %186 : vector<8x32xf32>
    %188 = vector.broadcast %185 : vector<8x1xf32> to vector<8x32xf32>
    %189 = arith.mulf %187, %188 : vector<8x32xf32>
    %c40_45 = arith.constant 40 : index
    %c145_46 = arith.constant 145 : index
    %190 = vector.load %arg1[%c40_45, %c145_46] : memref<136x146xf32, #tpu.memory_space<vmem>>, vector<8x1xf32>
    %191 = vector.broadcast %190 : vector<8x1xf32> to vector<8x32xf32>
    %192 = arith.addf %189, %191 : vector<8x32xf32>
    %cst_47 = arith.constant 0.000000e+00 : f32
    %193 = vector.broadcast %cst_47 : f32 to vector<8x32xf32>
    %194 = arith.cmpf ogt, %192, %193 : vector<8x32xf32>
    %195 = math.exp %192 : vector<8x32xf32>
    %cst_48 = arith.constant 1.000000e+00 : f32
    %196 = vector.broadcast %cst_48 : f32 to vector<8x32xf32>
    %197 = arith.subf %195, %196 : vector<8x32xf32>
    %198 = arith.select %194, %192, %197 : vector<8x32xi1>, vector<8x32xf32>
    %cst_49 = arith.constant 0.000000e+00 : f32
    %199 = vector.broadcast %cst_49 : f32 to vector<8x5xf32>
    %200 = tpu.concatenate %199, %198, %199 in 1 : vector<8x5xf32>, vector<8x32xf32>, vector<8x5xf32> -> vector<8x42xf32>
    %201 = vector.extract_strided_slice %200 {offsets = [0, 0], sizes = [8, 32], strides = [1, 1]} : vector<8x42xf32> to vector<8x32xf32>
    %202 = vector.broadcast %15 : vector<1x32xf32> to vector<8x32xf32>
    %203 = arith.mulf %201, %202 : vector<8x32xf32>
    %204 = vector.extract_strided_slice %200 {offsets = [0, 1], sizes = [8, 32], strides = [1, 1]} : vector<8x42xf32> to vector<8x32xf32>
    %205 = vector.broadcast %16 : vector<1x32xf32> to vector<8x32xf32>
    %206 = arith.mulf %204, %205 : vector<8x32xf32>
    %207 = vector.extract_strided_slice %200 {offsets = [0, 2], sizes = [8, 32], strides = [1, 1]} : vector<8x42xf32> to vector<8x32xf32>
    %208 = vector.broadcast %17 : vector<1x32xf32> to vector<8x32xf32>
    %209 = arith.mulf %207, %208 : vector<8x32xf32>
    %210 = vector.extract_strided_slice %200 {offsets = [0, 4], sizes = [8, 32], strides = [1, 1]} : vector<8x42xf32> to vector<8x32xf32>
    %211 = vector.broadcast %18 : vector<1x32xf32> to vector<8x32xf32>
    %212 = arith.mulf %210, %211 : vector<8x32xf32>
    %213 = vector.extract_strided_slice %200 {offsets = [0, 5], sizes = [8, 32], strides = [1, 1]} : vector<8x42xf32> to vector<8x32xf32>
    %214 = vector.extract_strided_slice %200 {offsets = [0, 6], sizes = [8, 32], strides = [1, 1]} : vector<8x42xf32> to vector<8x32xf32>
    %215 = vector.broadcast %19 : vector<1x32xf32> to vector<8x32xf32>
    %216 = arith.mulf %214, %215 : vector<8x32xf32>
    %217 = vector.extract_strided_slice %200 {offsets = [0, 8], sizes = [8, 32], strides = [1, 1]} : vector<8x42xf32> to vector<8x32xf32>
    %218 = vector.broadcast %20 : vector<1x32xf32> to vector<8x32xf32>
    %219 = arith.mulf %217, %218 : vector<8x32xf32>
    %220 = vector.extract_strided_slice %200 {offsets = [0, 9], sizes = [8, 32], strides = [1, 1]} : vector<8x42xf32> to vector<8x32xf32>
    %221 = vector.broadcast %21 : vector<1x32xf32> to vector<8x32xf32>
    %222 = arith.mulf %220, %221 : vector<8x32xf32>
    %223 = vector.extract_strided_slice %200 {offsets = [0, 10], sizes = [8, 32], strides = [1, 1]} : vector<8x42xf32> to vector<8x32xf32>
    %224 = vector.broadcast %22 : vector<1x32xf32> to vector<8x32xf32>
    %225 = arith.mulf %223, %224 : vector<8x32xf32>
    %226 = tpu.concatenate %203, %206, %209, %212, %213, %216, %219, %222, %225 in 0 : vector<8x32xf32>, vector<8x32xf32>, vector<8x32xf32>, vector<8x32xf32>, vector<8x32xf32>, vector<8x32xf32>, vector<8x32xf32>, vector<8x32xf32>, vector<8x32xf32> -> vector<72x32xf32>
    %c48 = arith.constant 48 : index
    %c0_50 = arith.constant 0 : index
    %227 = vector.load %arg1[%c48, %c0_50] : memref<136x146xf32, #tpu.memory_space<vmem>>, vector<16x72xf32>
    %cst_51 = arith.constant dense<0.000000e+00> : vector<16x32xf32>
    %228 = tpu.matmul %227, %226, %cst_51 {dimension_numbers = #tpu.dot_dimension_numbers<[1], [0], [0], [1], [0, 0, 1, 1], [], []>} : vector<16x72xf32>, vector<72x32xf32>, vector<16x32xf32> -> vector<16x32xf32>
    %cst_52 = arith.constant dense<0.000000e+00> : vector<16xf32>
    %229 = vector.multi_reduction <add>, %228, %cst_52 [1] : vector<16x32xf32> to vector<16xf32>
    %230 = vector.shape_cast %229 : vector<16xf32> to vector<16x1xf32>
    %231 = arith.mulf %228, %228 : vector<16x32xf32>
    %cst_53 = arith.constant dense<0.000000e+00> : vector<16xf32>
    %232 = vector.multi_reduction <add>, %231, %cst_53 [1] : vector<16x32xf32> to vector<16xf32>
    %233 = vector.shape_cast %232 : vector<16xf32> to vector<16x1xf32>
    %cst_54 = arith.constant 3.125000e-02 : f32
    %234 = vector.broadcast %cst_54 : f32 to vector<16x1xf32>
    %235 = arith.mulf %230, %234 : vector<16x1xf32>
    %cst_55 = arith.constant 3.125000e-02 : f32
    %236 = vector.broadcast %cst_55 : f32 to vector<16x1xf32>
    %237 = arith.mulf %233, %236 : vector<16x1xf32>
    %238 = arith.mulf %235, %235 : vector<16x1xf32>
    %239 = arith.subf %237, %238 : vector<16x1xf32>
    %cst_56 = arith.constant 9.99999974E-5 : f32
    %240 = vector.broadcast %cst_56 : f32 to vector<16x1xf32>
    %241 = arith.addf %239, %240 : vector<16x1xf32>
    %242 = math.rsqrt %241 : vector<16x1xf32>
    %c48_57 = arith.constant 48 : index
    %c144_58 = arith.constant 144 : index
    %243 = vector.load %arg1[%c48_57, %c144_58] : memref<136x146xf32, #tpu.memory_space<vmem>>, vector<16x1xf32>
    %244 = arith.mulf %242, %243 : vector<16x1xf32>
    %245 = vector.broadcast %235 : vector<16x1xf32> to vector<16x32xf32>
    %246 = arith.subf %228, %245 : vector<16x32xf32>
    %247 = vector.broadcast %244 : vector<16x1xf32> to vector<16x32xf32>
    %248 = arith.mulf %246, %247 : vector<16x32xf32>
    %c48_59 = arith.constant 48 : index
    %c145_60 = arith.constant 145 : index
    %249 = vector.load %arg1[%c48_59, %c145_60] : memref<136x146xf32, #tpu.memory_space<vmem>>, vector<16x1xf32>
    %250 = vector.broadcast %249 : vector<16x1xf32> to vector<16x32xf32>
    %251 = arith.addf %248, %250 : vector<16x32xf32>
    %252 = arith.addf %251, %139 : vector<16x32xf32>
    %cst_61 = arith.constant 0.000000e+00 : f32
    %253 = vector.broadcast %cst_61 : f32 to vector<16x32xf32>
    %254 = arith.cmpf ogt, %252, %253 : vector<16x32xf32>
    %255 = math.exp %252 : vector<16x32xf32>
    %cst_62 = arith.constant 1.000000e+00 : f32
    %256 = vector.broadcast %cst_62 : f32 to vector<16x32xf32>
    %257 = arith.subf %255, %256 : vector<16x32xf32>
    %258 = arith.select %254, %252, %257 : vector<16x32xi1>, vector<16x32xf32>
    %c16_63 = arith.constant 16 : index
    %c0_64 = arith.constant 0 : index
    %259 = vector.load %arg2[%c16_63, %c0_64] : memref<208x512xf32, #tpu.memory_space<vmem>>, vector<32x128xf32>
    %cst_65 = arith.constant dense<0.000000e+00> : vector<16x128xf32>
    %260 = tpu.matmul %258, %259, %cst_65 {dimension_numbers = #tpu.dot_dimension_numbers<[1], [0], [0], [1], [0, 0, 1, 1], [], []>} : vector<16x32xf32>, vector<32x128xf32>, vector<16x128xf32> -> vector<16x128xf32>
    %cst_66 = arith.constant 0.000000e+00 : f32
    %261 = vector.broadcast %cst_66 : f32 to vector<16x9xf32>
    %262 = tpu.concatenate %261, %260, %261 in 1 : vector<16x9xf32>, vector<16x128xf32>, vector<16x9xf32> -> vector<16x146xf32>
    %c48_67 = arith.constant 48 : index
    %c0_68 = arith.constant 0 : index
    %263 = vector.load %arg2[%c48_67, %c0_68] : memref<208x512xf32, #tpu.memory_space<vmem>>, vector<9x128xf32>
    %264 = vector.extract_strided_slice %263 {offsets = [0, 0], sizes = [1, 128], strides = [1, 1]} : vector<9x128xf32> to vector<1x128xf32>
    %265 = vector.extract_strided_slice %263 {offsets = [1, 0], sizes = [1, 128], strides = [1, 1]} : vector<9x128xf32> to vector<1x128xf32>
    %266 = vector.extract_strided_slice %263 {offsets = [2, 0], sizes = [1, 128], strides = [1, 1]} : vector<9x128xf32> to vector<1x128xf32>
    %267 = vector.extract_strided_slice %263 {offsets = [3, 0], sizes = [1, 128], strides = [1, 1]} : vector<9x128xf32> to vector<1x128xf32>
    %268 = vector.extract_strided_slice %263 {offsets = [5, 0], sizes = [1, 128], strides = [1, 1]} : vector<9x128xf32> to vector<1x128xf32>
    %269 = vector.extract_strided_slice %263 {offsets = [6, 0], sizes = [1, 128], strides = [1, 1]} : vector<9x128xf32> to vector<1x128xf32>
    %270 = vector.extract_strided_slice %263 {offsets = [7, 0], sizes = [1, 128], strides = [1, 1]} : vector<9x128xf32> to vector<1x128xf32>
    %271 = vector.extract_strided_slice %263 {offsets = [8, 0], sizes = [1, 128], strides = [1, 1]} : vector<9x128xf32> to vector<1x128xf32>
    %272 = vector.extract_strided_slice %262 {offsets = [0, 0], sizes = [16, 128], strides = [1, 1]} : vector<16x146xf32> to vector<16x128xf32>
    %273 = vector.broadcast %264 : vector<1x128xf32> to vector<16x128xf32>
    %274 = arith.mulf %272, %273 : vector<16x128xf32>
    %275 = vector.extract_strided_slice %262 {offsets = [0, 1], sizes = [16, 128], strides = [1, 1]} : vector<16x146xf32> to vector<16x128xf32>
    %276 = vector.broadcast %265 : vector<1x128xf32> to vector<16x128xf32>
    %277 = arith.mulf %275, %276 : vector<16x128xf32>
    %278 = vector.extract_strided_slice %262 {offsets = [0, 2], sizes = [16, 128], strides = [1, 1]} : vector<16x146xf32> to vector<16x128xf32>
    %279 = vector.broadcast %266 : vector<1x128xf32> to vector<16x128xf32>
    %280 = arith.mulf %278, %279 : vector<16x128xf32>
    %281 = vector.extract_strided_slice %262 {offsets = [0, 8], sizes = [16, 128], strides = [1, 1]} : vector<16x146xf32> to vector<16x128xf32>
    %282 = vector.broadcast %267 : vector<1x128xf32> to vector<16x128xf32>
    %283 = arith.mulf %281, %282 : vector<16x128xf32>
    %284 = vector.extract_strided_slice %262 {offsets = [0, 9], sizes = [16, 128], strides = [1, 1]} : vector<16x146xf32> to vector<16x128xf32>
    %285 = vector.extract_strided_slice %262 {offsets = [0, 10], sizes = [16, 128], strides = [1, 1]} : vector<16x146xf32> to vector<16x128xf32>
    %286 = vector.broadcast %268 : vector<1x128xf32> to vector<16x128xf32>
    %287 = arith.mulf %285, %286 : vector<16x128xf32>
    %288 = vector.extract_strided_slice %262 {offsets = [0, 16], sizes = [16, 128], strides = [1, 1]} : vector<16x146xf32> to vector<16x128xf32>
    %289 = vector.broadcast %269 : vector<1x128xf32> to vector<16x128xf32>
    %290 = arith.mulf %288, %289 : vector<16x128xf32>
    %291 = vector.extract_strided_slice %262 {offsets = [0, 17], sizes = [16, 128], strides = [1, 1]} : vector<16x146xf32> to vector<16x128xf32>
    %292 = vector.broadcast %270 : vector<1x128xf32> to vector<16x128xf32>
    %293 = arith.mulf %291, %292 : vector<16x128xf32>
    %294 = vector.extract_strided_slice %262 {offsets = [0, 18], sizes = [16, 128], strides = [1, 1]} : vector<16x146xf32> to vector<16x128xf32>
    %295 = vector.broadcast %271 : vector<1x128xf32> to vector<16x128xf32>
    %296 = arith.mulf %294, %295 : vector<16x128xf32>
    %297 = tpu.concatenate %274, %277, %280, %283, %284, %287, %290, %293, %296 in 0 : vector<16x128xf32>, vector<16x128xf32>, vector<16x128xf32>, vector<16x128xf32>, vector<16x128xf32>, vector<16x128xf32>, vector<16x128xf32>, vector<16x128xf32>, vector<16x128xf32> -> vector<144x128xf32>
    %c64 = arith.constant 64 : index
    %c0_69 = arith.constant 0 : index
    %298 = vector.load %arg1[%c64, %c0_69] : memref<136x146xf32, #tpu.memory_space<vmem>>, vector<16x144xf32>
    %cst_70 = arith.constant dense<0.000000e+00> : vector<16x128xf32>
    %299 = tpu.matmul %298, %297, %cst_70 {dimension_numbers = #tpu.dot_dimension_numbers<[1], [0], [0], [1], [0, 0, 1, 1], [], []>} : vector<16x144xf32>, vector<144x128xf32>, vector<16x128xf32> -> vector<16x128xf32>
    %c64_71 = arith.constant 64 : index
    %c144_72 = arith.constant 144 : index
    %300 = vector.load %arg1[%c64_71, %c144_72] : memref<136x146xf32, #tpu.memory_space<vmem>>, vector<16x1xf32>
    %301 = vector.broadcast %300 : vector<16x1xf32> to vector<16x128xf32>
    %302 = arith.addf %299, %301 : vector<16x128xf32>
    %cst_73 = arith.constant 0.000000e+00 : f32
    %303 = vector.broadcast %cst_73 : f32 to vector<16x9xf32>
    %304 = tpu.concatenate %303, %260, %303 in 1 : vector<16x9xf32>, vector<16x128xf32>, vector<16x9xf32> -> vector<16x146xf32>
    %305 = vector.extract_strided_slice %304 {offsets = [0, 0], sizes = [16, 128], strides = [1, 1]} : vector<16x146xf32> to vector<16x128xf32>
    %306 = vector.broadcast %264 : vector<1x128xf32> to vector<16x128xf32>
    %307 = arith.mulf %305, %306 : vector<16x128xf32>
    %308 = vector.extract_strided_slice %304 {offsets = [0, 1], sizes = [16, 128], strides = [1, 1]} : vector<16x146xf32> to vector<16x128xf32>
    %309 = vector.broadcast %265 : vector<1x128xf32> to vector<16x128xf32>
    %310 = arith.mulf %308, %309 : vector<16x128xf32>
    %311 = vector.extract_strided_slice %304 {offsets = [0, 2], sizes = [16, 128], strides = [1, 1]} : vector<16x146xf32> to vector<16x128xf32>
    %312 = vector.broadcast %266 : vector<1x128xf32> to vector<16x128xf32>
    %313 = arith.mulf %311, %312 : vector<16x128xf32>
    %314 = vector.extract_strided_slice %304 {offsets = [0, 8], sizes = [16, 128], strides = [1, 1]} : vector<16x146xf32> to vector<16x128xf32>
    %315 = vector.broadcast %267 : vector<1x128xf32> to vector<16x128xf32>
    %316 = arith.mulf %314, %315 : vector<16x128xf32>
    %317 = vector.extract_strided_slice %304 {offsets = [0, 9], sizes = [16, 128], strides = [1, 1]} : vector<16x146xf32> to vector<16x128xf32>
    %318 = vector.extract_strided_slice %304 {offsets = [0, 10], sizes = [16, 128], strides = [1, 1]} : vector<16x146xf32> to vector<16x128xf32>
    %319 = vector.broadcast %268 : vector<1x128xf32> to vector<16x128xf32>
    %320 = arith.mulf %318, %319 : vector<16x128xf32>
    %321 = vector.extract_strided_slice %304 {offsets = [0, 16], sizes = [16, 128], strides = [1, 1]} : vector<16x146xf32> to vector<16x128xf32>
    %322 = vector.broadcast %269 : vector<1x128xf32> to vector<16x128xf32>
    %323 = arith.mulf %321, %322 : vector<16x128xf32>
    %324 = vector.extract_strided_slice %304 {offsets = [0, 17], sizes = [16, 128], strides = [1, 1]} : vector<16x146xf32> to vector<16x128xf32>
    %325 = vector.broadcast %270 : vector<1x128xf32> to vector<16x128xf32>
    %326 = arith.mulf %324, %325 : vector<16x128xf32>
    %327 = vector.extract_strided_slice %304 {offsets = [0, 18], sizes = [16, 128], strides = [1, 1]} : vector<16x146xf32> to vector<16x128xf32>
    %328 = vector.broadcast %271 : vector<1x128xf32> to vector<16x128xf32>
    %329 = arith.mulf %327, %328 : vector<16x128xf32>
    %330 = tpu.concatenate %307, %310, %313, %316, %317, %320, %323, %326, %329 in 0 : vector<16x128xf32>, vector<16x128xf32>, vector<16x128xf32>, vector<16x128xf32>, vector<16x128xf32>, vector<16x128xf32>, vector<16x128xf32>, vector<16x128xf32>, vector<16x128xf32> -> vector<144x128xf32>
    %c80 = arith.constant 80 : index
    %c0_74 = arith.constant 0 : index
    %331 = vector.load %arg1[%c80, %c0_74] : memref<136x146xf32, #tpu.memory_space<vmem>>, vector<8x144xf32>
    %cst_75 = arith.constant dense<0.000000e+00> : vector<8x128xf32>
    %332 = tpu.matmul %331, %330, %cst_75 {dimension_numbers = #tpu.dot_dimension_numbers<[1], [0], [0], [1], [0, 0, 1, 1], [], []>} : vector<8x144xf32>, vector<144x128xf32>, vector<8x128xf32> -> vector<8x128xf32>
    %cst_76 = arith.constant dense<0.000000e+00> : vector<8xf32>
    %333 = vector.multi_reduction <add>, %332, %cst_76 [1] : vector<8x128xf32> to vector<8xf32>
    %334 = vector.shape_cast %333 : vector<8xf32> to vector<8x1xf32>
    %335 = arith.mulf %332, %332 : vector<8x128xf32>
    %cst_77 = arith.constant dense<0.000000e+00> : vector<8xf32>
    %336 = vector.multi_reduction <add>, %335, %cst_77 [1] : vector<8x128xf32> to vector<8xf32>
    %337 = vector.shape_cast %336 : vector<8xf32> to vector<8x1xf32>
    %cst_78 = arith.constant 7.812500e-03 : f32
    %338 = vector.broadcast %cst_78 : f32 to vector<8x1xf32>
    %339 = arith.mulf %334, %338 : vector<8x1xf32>
    %cst_79 = arith.constant 7.812500e-03 : f32
    %340 = vector.broadcast %cst_79 : f32 to vector<8x1xf32>
    %341 = arith.mulf %337, %340 : vector<8x1xf32>
    %342 = arith.mulf %339, %339 : vector<8x1xf32>
    %343 = arith.subf %341, %342 : vector<8x1xf32>
    %cst_80 = arith.constant 9.99999974E-5 : f32
    %344 = vector.broadcast %cst_80 : f32 to vector<8x1xf32>
    %345 = arith.addf %343, %344 : vector<8x1xf32>
    %346 = math.rsqrt %345 : vector<8x1xf32>
    %c80_81 = arith.constant 80 : index
    %c144_82 = arith.constant 144 : index
    %347 = vector.load %arg1[%c80_81, %c144_82] : memref<136x146xf32, #tpu.memory_space<vmem>>, vector<8x1xf32>
    %348 = arith.mulf %346, %347 : vector<8x1xf32>
    %349 = vector.broadcast %339 : vector<8x1xf32> to vector<8x128xf32>
    %350 = arith.subf %332, %349 : vector<8x128xf32>
    %351 = vector.broadcast %348 : vector<8x1xf32> to vector<8x128xf32>
    %352 = arith.mulf %350, %351 : vector<8x128xf32>
    %c80_83 = arith.constant 80 : index
    %c145_84 = arith.constant 145 : index
    %353 = vector.load %arg1[%c80_83, %c145_84] : memref<136x146xf32, #tpu.memory_space<vmem>>, vector<8x1xf32>
    %354 = vector.broadcast %353 : vector<8x1xf32> to vector<8x128xf32>
    %355 = arith.addf %352, %354 : vector<8x128xf32>
    %cst_85 = arith.constant 0.000000e+00 : f32
    %356 = vector.broadcast %cst_85 : f32 to vector<8x128xf32>
    %357 = arith.cmpf ogt, %355, %356 : vector<8x128xf32>
    %358 = math.exp %355 : vector<8x128xf32>
    %cst_86 = arith.constant 1.000000e+00 : f32
    %359 = vector.broadcast %cst_86 : f32 to vector<8x128xf32>
    %360 = arith.subf %358, %359 : vector<8x128xf32>
    %361 = arith.select %357, %355, %360 : vector<8x128xi1>, vector<8x128xf32>
    %cst_87 = arith.constant 0.000000e+00 : f32
    %362 = vector.broadcast %cst_87 : f32 to vector<8x9xf32>
    %363 = tpu.concatenate %362, %361, %362 in 1 : vector<8x9xf32>, vector<8x128xf32>, vector<8x9xf32> -> vector<8x146xf32>
    %364 = vector.extract_strided_slice %363 {offsets = [0, 0], sizes = [8, 128], strides = [1, 1]} : vector<8x146xf32> to vector<8x128xf32>
    %365 = vector.broadcast %264 : vector<1x128xf32> to vector<8x128xf32>
    %366 = arith.mulf %364, %365 : vector<8x128xf32>
    %367 = vector.extract_strided_slice %363 {offsets = [0, 1], sizes = [8, 128], strides = [1, 1]} : vector<8x146xf32> to vector<8x128xf32>
    %368 = vector.broadcast %265 : vector<1x128xf32> to vector<8x128xf32>
    %369 = arith.mulf %367, %368 : vector<8x128xf32>
    %370 = vector.extract_strided_slice %363 {offsets = [0, 2], sizes = [8, 128], strides = [1, 1]} : vector<8x146xf32> to vector<8x128xf32>
    %371 = vector.broadcast %266 : vector<1x128xf32> to vector<8x128xf32>
    %372 = arith.mulf %370, %371 : vector<8x128xf32>
    %373 = vector.extract_strided_slice %363 {offsets = [0, 8], sizes = [8, 128], strides = [1, 1]} : vector<8x146xf32> to vector<8x128xf32>
    %374 = vector.broadcast %267 : vector<1x128xf32> to vector<8x128xf32>
    %375 = arith.mulf %373, %374 : vector<8x128xf32>
    %376 = vector.extract_strided_slice %363 {offsets = [0, 9], sizes = [8, 128], strides = [1, 1]} : vector<8x146xf32> to vector<8x128xf32>
    %377 = vector.extract_strided_slice %363 {offsets = [0, 10], sizes = [8, 128], strides = [1, 1]} : vector<8x146xf32> to vector<8x128xf32>
    %378 = vector.broadcast %268 : vector<1x128xf32> to vector<8x128xf32>
    %379 = arith.mulf %377, %378 : vector<8x128xf32>
    %380 = vector.extract_strided_slice %363 {offsets = [0, 16], sizes = [8, 128], strides = [1, 1]} : vector<8x146xf32> to vector<8x128xf32>
    %381 = vector.broadcast %269 : vector<1x128xf32> to vector<8x128xf32>
    %382 = arith.mulf %380, %381 : vector<8x128xf32>
    %383 = vector.extract_strided_slice %363 {offsets = [0, 17], sizes = [8, 128], strides = [1, 1]} : vector<8x146xf32> to vector<8x128xf32>
    %384 = vector.broadcast %270 : vector<1x128xf32> to vector<8x128xf32>
    %385 = arith.mulf %383, %384 : vector<8x128xf32>
    %386 = vector.extract_strided_slice %363 {offsets = [0, 18], sizes = [8, 128], strides = [1, 1]} : vector<8x146xf32> to vector<8x128xf32>
    %387 = vector.broadcast %271 : vector<1x128xf32> to vector<8x128xf32>
    %388 = arith.mulf %386, %387 : vector<8x128xf32>
    %389 = tpu.concatenate %366, %369, %372, %375, %376, %379, %382, %385, %388 in 0 : vector<8x128xf32>, vector<8x128xf32>, vector<8x128xf32>, vector<8x128xf32>, vector<8x128xf32>, vector<8x128xf32>, vector<8x128xf32>, vector<8x128xf32>, vector<8x128xf32> -> vector<72x128xf32>
    %c88 = arith.constant 88 : index
    %c0_88 = arith.constant 0 : index
    %390 = vector.load %arg1[%c88, %c0_88] : memref<136x146xf32, #tpu.memory_space<vmem>>, vector<16x72xf32>
    %cst_89 = arith.constant dense<0.000000e+00> : vector<16x128xf32>
    %391 = tpu.matmul %390, %389, %cst_89 {dimension_numbers = #tpu.dot_dimension_numbers<[1], [0], [0], [1], [0, 0, 1, 1], [], []>} : vector<16x72xf32>, vector<72x128xf32>, vector<16x128xf32> -> vector<16x128xf32>
    %cst_90 = arith.constant dense<0.000000e+00> : vector<16xf32>
    %392 = vector.multi_reduction <add>, %391, %cst_90 [1] : vector<16x128xf32> to vector<16xf32>
    %393 = vector.shape_cast %392 : vector<16xf32> to vector<16x1xf32>
    %394 = arith.mulf %391, %391 : vector<16x128xf32>
    %cst_91 = arith.constant dense<0.000000e+00> : vector<16xf32>
    %395 = vector.multi_reduction <add>, %394, %cst_91 [1] : vector<16x128xf32> to vector<16xf32>
    %396 = vector.shape_cast %395 : vector<16xf32> to vector<16x1xf32>
    %cst_92 = arith.constant 7.812500e-03 : f32
    %397 = vector.broadcast %cst_92 : f32 to vector<16x1xf32>
    %398 = arith.mulf %393, %397 : vector<16x1xf32>
    %cst_93 = arith.constant 7.812500e-03 : f32
    %399 = vector.broadcast %cst_93 : f32 to vector<16x1xf32>
    %400 = arith.mulf %396, %399 : vector<16x1xf32>
    %401 = arith.mulf %398, %398 : vector<16x1xf32>
    %402 = arith.subf %400, %401 : vector<16x1xf32>
    %cst_94 = arith.constant 9.99999974E-5 : f32
    %403 = vector.broadcast %cst_94 : f32 to vector<16x1xf32>
    %404 = arith.addf %402, %403 : vector<16x1xf32>
    %405 = math.rsqrt %404 : vector<16x1xf32>
    %c88_95 = arith.constant 88 : index
    %c144_96 = arith.constant 144 : index
    %406 = vector.load %arg1[%c88_95, %c144_96] : memref<136x146xf32, #tpu.memory_space<vmem>>, vector<16x1xf32>
    %407 = arith.mulf %405, %406 : vector<16x1xf32>
    %408 = vector.broadcast %398 : vector<16x1xf32> to vector<16x128xf32>
    %409 = arith.subf %391, %408 : vector<16x128xf32>
    %410 = vector.broadcast %407 : vector<16x1xf32> to vector<16x128xf32>
    %411 = arith.mulf %409, %410 : vector<16x128xf32>
    %c88_97 = arith.constant 88 : index
    %c145_98 = arith.constant 145 : index
    %412 = vector.load %arg1[%c88_97, %c145_98] : memref<136x146xf32, #tpu.memory_space<vmem>>, vector<16x1xf32>
    %413 = vector.broadcast %412 : vector<16x1xf32> to vector<16x128xf32>
    %414 = arith.addf %411, %413 : vector<16x128xf32>
    %415 = arith.addf %414, %302 : vector<16x128xf32>
    %cst_99 = arith.constant 0.000000e+00 : f32
    %416 = vector.broadcast %cst_99 : f32 to vector<16x128xf32>
    %417 = arith.cmpf ogt, %415, %416 : vector<16x128xf32>
    %418 = math.exp %415 : vector<16x128xf32>
    %cst_100 = arith.constant 1.000000e+00 : f32
    %419 = vector.broadcast %cst_100 : f32 to vector<16x128xf32>
    %420 = arith.subf %418, %419 : vector<16x128xf32>
    %421 = arith.select %417, %415, %420 : vector<16x128xi1>, vector<16x128xf32>
    %c64_101 = arith.constant 64 : index
    %c0_102 = arith.constant 0 : index
    %422 = vector.load %arg2[%c64_101, %c0_102] : memref<208x512xf32, #tpu.memory_space<vmem>>, vector<128x512xf32>
    %cst_103 = arith.constant dense<0.000000e+00> : vector<16x512xf32>
    %423 = tpu.matmul %421, %422, %cst_103 {dimension_numbers = #tpu.dot_dimension_numbers<[1], [0], [0], [1], [0, 0, 1, 1], [], []>} : vector<16x128xf32>, vector<128x512xf32>, vector<16x512xf32> -> vector<16x512xf32>
    %cst_104 = arith.constant 0.000000e+00 : f32
    %424 = vector.broadcast %cst_104 : f32 to vector<16x17xf32>
    %425 = tpu.concatenate %424, %423, %424 in 1 : vector<16x17xf32>, vector<16x512xf32>, vector<16x17xf32> -> vector<16x546xf32>
    %c192 = arith.constant 192 : index
    %c0_105 = arith.constant 0 : index
    %426 = vector.load %arg2[%c192, %c0_105] : memref<208x512xf32, #tpu.memory_space<vmem>>, vector<9x512xf32>
    %427 = vector.extract_strided_slice %426 {offsets = [0, 0], sizes = [1, 512], strides = [1, 1]} : vector<9x512xf32> to vector<1x512xf32>
    %428 = vector.extract_strided_slice %426 {offsets = [1, 0], sizes = [1, 512], strides = [1, 1]} : vector<9x512xf32> to vector<1x512xf32>
    %429 = vector.extract_strided_slice %426 {offsets = [2, 0], sizes = [1, 512], strides = [1, 1]} : vector<9x512xf32> to vector<1x512xf32>
    %430 = vector.extract_strided_slice %426 {offsets = [3, 0], sizes = [1, 512], strides = [1, 1]} : vector<9x512xf32> to vector<1x512xf32>
    %431 = vector.extract_strided_slice %426 {offsets = [5, 0], sizes = [1, 512], strides = [1, 1]} : vector<9x512xf32> to vector<1x512xf32>
    %432 = vector.extract_strided_slice %426 {offsets = [6, 0], sizes = [1, 512], strides = [1, 1]} : vector<9x512xf32> to vector<1x512xf32>
    %433 = vector.extract_strided_slice %426 {offsets = [7, 0], sizes = [1, 512], strides = [1, 1]} : vector<9x512xf32> to vector<1x512xf32>
    %434 = vector.extract_strided_slice %426 {offsets = [8, 0], sizes = [1, 512], strides = [1, 1]} : vector<9x512xf32> to vector<1x512xf32>
    %435 = vector.extract_strided_slice %425 {offsets = [0, 0], sizes = [16, 512], strides = [1, 1]} : vector<16x546xf32> to vector<16x512xf32>
    %436 = vector.broadcast %427 : vector<1x512xf32> to vector<16x512xf32>
    %437 = arith.mulf %435, %436 : vector<16x512xf32>
    %438 = vector.extract_strided_slice %425 {offsets = [0, 1], sizes = [16, 512], strides = [1, 1]} : vector<16x546xf32> to vector<16x512xf32>
    %439 = vector.broadcast %428 : vector<1x512xf32> to vector<16x512xf32>
    %440 = arith.mulf %438, %439 : vector<16x512xf32>
    %441 = vector.extract_strided_slice %425 {offsets = [0, 2], sizes = [16, 512], strides = [1, 1]} : vector<16x546xf32> to vector<16x512xf32>
    %442 = vector.broadcast %429 : vector<1x512xf32> to vector<16x512xf32>
    %443 = arith.mulf %441, %442 : vector<16x512xf32>
    %444 = vector.extract_strided_slice %425 {offsets = [0, 16], sizes = [16, 512], strides = [1, 1]} : vector<16x546xf32> to vector<16x512xf32>
    %445 = vector.broadcast %430 : vector<1x512xf32> to vector<16x512xf32>
    %446 = arith.mulf %444, %445 : vector<16x512xf32>
    %447 = vector.extract_strided_slice %425 {offsets = [0, 17], sizes = [16, 512], strides = [1, 1]} : vector<16x546xf32> to vector<16x512xf32>
    %448 = vector.extract_strided_slice %425 {offsets = [0, 18], sizes = [16, 512], strides = [1, 1]} : vector<16x546xf32> to vector<16x512xf32>
    %449 = vector.broadcast %431 : vector<1x512xf32> to vector<16x512xf32>
    %450 = arith.mulf %448, %449 : vector<16x512xf32>
    %451 = vector.extract_strided_slice %425 {offsets = [0, 32], sizes = [16, 512], strides = [1, 1]} : vector<16x546xf32> to vector<16x512xf32>
    %452 = vector.broadcast %432 : vector<1x512xf32> to vector<16x512xf32>
    %453 = arith.mulf %451, %452 : vector<16x512xf32>
    %454 = vector.extract_strided_slice %425 {offsets = [0, 33], sizes = [16, 512], strides = [1, 1]} : vector<16x546xf32> to vector<16x512xf32>
    %455 = vector.broadcast %433 : vector<1x512xf32> to vector<16x512xf32>
    %456 = arith.mulf %454, %455 : vector<16x512xf32>
    %457 = vector.extract_strided_slice %425 {offsets = [0, 34], sizes = [16, 512], strides = [1, 1]} : vector<16x546xf32> to vector<16x512xf32>
    %458 = vector.broadcast %434 : vector<1x512xf32> to vector<16x512xf32>
    %459 = arith.mulf %457, %458 : vector<16x512xf32>
    %460 = tpu.concatenate %437, %440, %443, %446, %447, %450, %453, %456, %459 in 0 : vector<16x512xf32>, vector<16x512xf32>, vector<16x512xf32>, vector<16x512xf32>, vector<16x512xf32>, vector<16x512xf32>, vector<16x512xf32>, vector<16x512xf32>, vector<16x512xf32> -> vector<144x512xf32>
    %c104 = arith.constant 104 : index
    %c0_106 = arith.constant 0 : index
    %461 = vector.load %arg1[%c104, %c0_106] : memref<136x146xf32, #tpu.memory_space<vmem>>, vector<8x144xf32>
    %cst_107 = arith.constant dense<0.000000e+00> : vector<8x512xf32>
    %462 = tpu.matmul %461, %460, %cst_107 {dimension_numbers = #tpu.dot_dimension_numbers<[1], [0], [0], [1], [0, 0, 1, 1], [], []>} : vector<8x144xf32>, vector<144x512xf32>, vector<8x512xf32> -> vector<8x512xf32>
    %c104_108 = arith.constant 104 : index
    %c144_109 = arith.constant 144 : index
    %463 = vector.load %arg1[%c104_108, %c144_109] : memref<136x146xf32, #tpu.memory_space<vmem>>, vector<8x1xf32>
    %464 = vector.broadcast %463 : vector<8x1xf32> to vector<8x512xf32>
    %465 = arith.addf %462, %464 : vector<8x512xf32>
    %cst_110 = arith.constant 0.000000e+00 : f32
    %466 = vector.broadcast %cst_110 : f32 to vector<16x17xf32>
    %467 = tpu.concatenate %466, %423, %466 in 1 : vector<16x17xf32>, vector<16x512xf32>, vector<16x17xf32> -> vector<16x546xf32>
    %468 = vector.extract_strided_slice %467 {offsets = [0, 0], sizes = [16, 512], strides = [1, 1]} : vector<16x546xf32> to vector<16x512xf32>
    %469 = vector.broadcast %427 : vector<1x512xf32> to vector<16x512xf32>
    %470 = arith.mulf %468, %469 : vector<16x512xf32>
    %471 = vector.extract_strided_slice %467 {offsets = [0, 1], sizes = [16, 512], strides = [1, 1]} : vector<16x546xf32> to vector<16x512xf32>
    %472 = vector.broadcast %428 : vector<1x512xf32> to vector<16x512xf32>
    %473 = arith.mulf %471, %472 : vector<16x512xf32>
    %474 = vector.extract_strided_slice %467 {offsets = [0, 2], sizes = [16, 512], strides = [1, 1]} : vector<16x546xf32> to vector<16x512xf32>
    %475 = vector.broadcast %429 : vector<1x512xf32> to vector<16x512xf32>
    %476 = arith.mulf %474, %475 : vector<16x512xf32>
    %477 = vector.extract_strided_slice %467 {offsets = [0, 16], sizes = [16, 512], strides = [1, 1]} : vector<16x546xf32> to vector<16x512xf32>
    %478 = vector.broadcast %430 : vector<1x512xf32> to vector<16x512xf32>
    %479 = arith.mulf %477, %478 : vector<16x512xf32>
    %480 = vector.extract_strided_slice %467 {offsets = [0, 17], sizes = [16, 512], strides = [1, 1]} : vector<16x546xf32> to vector<16x512xf32>
    %481 = vector.extract_strided_slice %467 {offsets = [0, 18], sizes = [16, 512], strides = [1, 1]} : vector<16x546xf32> to vector<16x512xf32>
    %482 = vector.broadcast %431 : vector<1x512xf32> to vector<16x512xf32>
    %483 = arith.mulf %481, %482 : vector<16x512xf32>
    %484 = vector.extract_strided_slice %467 {offsets = [0, 32], sizes = [16, 512], strides = [1, 1]} : vector<16x546xf32> to vector<16x512xf32>
    %485 = vector.broadcast %432 : vector<1x512xf32> to vector<16x512xf32>
    %486 = arith.mulf %484, %485 : vector<16x512xf32>
    %487 = vector.extract_strided_slice %467 {offsets = [0, 33], sizes = [16, 512], strides = [1, 1]} : vector<16x546xf32> to vector<16x512xf32>
    %488 = vector.broadcast %433 : vector<1x512xf32> to vector<16x512xf32>
    %489 = arith.mulf %487, %488 : vector<16x512xf32>
    %490 = vector.extract_strided_slice %467 {offsets = [0, 34], sizes = [16, 512], strides = [1, 1]} : vector<16x546xf32> to vector<16x512xf32>
    %491 = vector.broadcast %434 : vector<1x512xf32> to vector<16x512xf32>
    %492 = arith.mulf %490, %491 : vector<16x512xf32>
    %493 = tpu.concatenate %470, %473, %476, %479, %480, %483, %486, %489, %492 in 0 : vector<16x512xf32>, vector<16x512xf32>, vector<16x512xf32>, vector<16x512xf32>, vector<16x512xf32>, vector<16x512xf32>, vector<16x512xf32>, vector<16x512xf32>, vector<16x512xf32> -> vector<144x512xf32>
    %c112 = arith.constant 112 : index
    %c0_111 = arith.constant 0 : index
    %494 = vector.load %arg1[%c112, %c0_111] : memref<136x146xf32, #tpu.memory_space<vmem>>, vector<8x144xf32>
    %cst_112 = arith.constant dense<0.000000e+00> : vector<8x512xf32>
    %495 = tpu.matmul %494, %493, %cst_112 {dimension_numbers = #tpu.dot_dimension_numbers<[1], [0], [0], [1], [0, 0, 1, 1], [], []>} : vector<8x144xf32>, vector<144x512xf32>, vector<8x512xf32> -> vector<8x512xf32>
    %cst_113 = arith.constant dense<0.000000e+00> : vector<8xf32>
    %496 = vector.multi_reduction <add>, %495, %cst_113 [1] : vector<8x512xf32> to vector<8xf32>
    %497 = vector.shape_cast %496 : vector<8xf32> to vector<8x1xf32>
    %498 = arith.mulf %495, %495 : vector<8x512xf32>
    %cst_114 = arith.constant dense<0.000000e+00> : vector<8xf32>
    %499 = vector.multi_reduction <add>, %498, %cst_114 [1] : vector<8x512xf32> to vector<8xf32>
    %500 = vector.shape_cast %499 : vector<8xf32> to vector<8x1xf32>
    %cst_115 = arith.constant 0.001953125 : f32
    %501 = vector.broadcast %cst_115 : f32 to vector<8x1xf32>
    %502 = arith.mulf %497, %501 : vector<8x1xf32>
    %cst_116 = arith.constant 0.001953125 : f32
    %503 = vector.broadcast %cst_116 : f32 to vector<8x1xf32>
    %504 = arith.mulf %500, %503 : vector<8x1xf32>
    %505 = arith.mulf %502, %502 : vector<8x1xf32>
    %506 = arith.subf %504, %505 : vector<8x1xf32>
    %cst_117 = arith.constant 9.99999974E-5 : f32
    %507 = vector.broadcast %cst_117 : f32 to vector<8x1xf32>
    %508 = arith.addf %506, %507 : vector<8x1xf32>
    %509 = math.rsqrt %508 : vector<8x1xf32>
    %c112_118 = arith.constant 112 : index
    %c144_119 = arith.constant 144 : index
    %510 = vector.load %arg1[%c112_118, %c144_119] : memref<136x146xf32, #tpu.memory_space<vmem>>, vector<8x1xf32>
    %511 = arith.mulf %509, %510 : vector<8x1xf32>
    %512 = vector.broadcast %502 : vector<8x1xf32> to vector<8x512xf32>
    %513 = arith.subf %495, %512 : vector<8x512xf32>
    %514 = vector.broadcast %511 : vector<8x1xf32> to vector<8x512xf32>
    %515 = arith.mulf %513, %514 : vector<8x512xf32>
    %c112_120 = arith.constant 112 : index
    %c145_121 = arith.constant 145 : index
    %516 = vector.load %arg1[%c112_120, %c145_121] : memref<136x146xf32, #tpu.memory_space<vmem>>, vector<8x1xf32>
    %517 = vector.broadcast %516 : vector<8x1xf32> to vector<8x512xf32>
    %518 = arith.addf %515, %517 : vector<8x512xf32>
    %cst_122 = arith.constant 0.000000e+00 : f32
    %519 = vector.broadcast %cst_122 : f32 to vector<8x512xf32>
    %520 = arith.cmpf ogt, %518, %519 : vector<8x512xf32>
    %521 = math.exp %518 : vector<8x512xf32>
    %cst_123 = arith.constant 1.000000e+00 : f32
    %522 = vector.broadcast %cst_123 : f32 to vector<8x512xf32>
    %523 = arith.subf %521, %522 : vector<8x512xf32>
    %524 = arith.select %520, %518, %523 : vector<8x512xi1>, vector<8x512xf32>
    %cst_124 = arith.constant 0.000000e+00 : f32
    %525 = vector.broadcast %cst_124 : f32 to vector<8x17xf32>
    %526 = tpu.concatenate %525, %524, %525 in 1 : vector<8x17xf32>, vector<8x512xf32>, vector<8x17xf32> -> vector<8x546xf32>
    %527 = vector.extract_strided_slice %526 {offsets = [0, 0], sizes = [8, 512], strides = [1, 1]} : vector<8x546xf32> to vector<8x512xf32>
    %528 = vector.broadcast %427 : vector<1x512xf32> to vector<8x512xf32>
    %529 = arith.mulf %527, %528 : vector<8x512xf32>
    %530 = vector.extract_strided_slice %526 {offsets = [0, 1], sizes = [8, 512], strides = [1, 1]} : vector<8x546xf32> to vector<8x512xf32>
    %531 = vector.broadcast %428 : vector<1x512xf32> to vector<8x512xf32>
    %532 = arith.mulf %530, %531 : vector<8x512xf32>
    %533 = vector.extract_strided_slice %526 {offsets = [0, 2], sizes = [8, 512], strides = [1, 1]} : vector<8x546xf32> to vector<8x512xf32>
    %534 = vector.broadcast %429 : vector<1x512xf32> to vector<8x512xf32>
    %535 = arith.mulf %533, %534 : vector<8x512xf32>
    %536 = vector.extract_strided_slice %526 {offsets = [0, 16], sizes = [8, 512], strides = [1, 1]} : vector<8x546xf32> to vector<8x512xf32>
    %537 = vector.broadcast %430 : vector<1x512xf32> to vector<8x512xf32>
    %538 = arith.mulf %536, %537 : vector<8x512xf32>
    %539 = vector.extract_strided_slice %526 {offsets = [0, 17], sizes = [8, 512], strides = [1, 1]} : vector<8x546xf32> to vector<8x512xf32>
    %540 = vector.extract_strided_slice %526 {offsets = [0, 18], sizes = [8, 512], strides = [1, 1]} : vector<8x546xf32> to vector<8x512xf32>
    %541 = vector.broadcast %431 : vector<1x512xf32> to vector<8x512xf32>
    %542 = arith.mulf %540, %541 : vector<8x512xf32>
    %543 = vector.extract_strided_slice %526 {offsets = [0, 32], sizes = [8, 512], strides = [1, 1]} : vector<8x546xf32> to vector<8x512xf32>
    %544 = vector.broadcast %432 : vector<1x512xf32> to vector<8x512xf32>
    %545 = arith.mulf %543, %544 : vector<8x512xf32>
    %546 = vector.extract_strided_slice %526 {offsets = [0, 33], sizes = [8, 512], strides = [1, 1]} : vector<8x546xf32> to vector<8x512xf32>
    %547 = vector.broadcast %433 : vector<1x512xf32> to vector<8x512xf32>
    %548 = arith.mulf %546, %547 : vector<8x512xf32>
    %549 = vector.extract_strided_slice %526 {offsets = [0, 34], sizes = [8, 512], strides = [1, 1]} : vector<8x546xf32> to vector<8x512xf32>
    %550 = vector.broadcast %434 : vector<1x512xf32> to vector<8x512xf32>
    %551 = arith.mulf %549, %550 : vector<8x512xf32>
    %552 = tpu.concatenate %529, %532, %535, %538, %539, %542, %545, %548, %551 in 0 : vector<8x512xf32>, vector<8x512xf32>, vector<8x512xf32>, vector<8x512xf32>, vector<8x512xf32>, vector<8x512xf32>, vector<8x512xf32>, vector<8x512xf32>, vector<8x512xf32> -> vector<72x512xf32>
    %c120 = arith.constant 120 : index
    %c0_125 = arith.constant 0 : index
    %553 = vector.load %arg1[%c120, %c0_125] : memref<136x146xf32, #tpu.memory_space<vmem>>, vector<8x72xf32>
    %cst_126 = arith.constant dense<0.000000e+00> : vector<8x512xf32>
    %554 = tpu.matmul %553, %552, %cst_126 {dimension_numbers = #tpu.dot_dimension_numbers<[1], [0], [0], [1], [0, 0, 1, 1], [], []>} : vector<8x72xf32>, vector<72x512xf32>, vector<8x512xf32> -> vector<8x512xf32>
    %cst_127 = arith.constant dense<0.000000e+00> : vector<8xf32>
    %555 = vector.multi_reduction <add>, %554, %cst_127 [1] : vector<8x512xf32> to vector<8xf32>
    %556 = vector.shape_cast %555 : vector<8xf32> to vector<8x1xf32>
    %557 = arith.mulf %554, %554 : vector<8x512xf32>
    %cst_128 = arith.constant dense<0.000000e+00> : vector<8xf32>
    %558 = vector.multi_reduction <add>, %557, %cst_128 [1] : vector<8x512xf32> to vector<8xf32>
    %559 = vector.shape_cast %558 : vector<8xf32> to vector<8x1xf32>
    %cst_129 = arith.constant 0.001953125 : f32
    %560 = vector.broadcast %cst_129 : f32 to vector<8x1xf32>
    %561 = arith.mulf %556, %560 : vector<8x1xf32>
    %cst_130 = arith.constant 0.001953125 : f32
    %562 = vector.broadcast %cst_130 : f32 to vector<8x1xf32>
    %563 = arith.mulf %559, %562 : vector<8x1xf32>
    %564 = arith.mulf %561, %561 : vector<8x1xf32>
    %565 = arith.subf %563, %564 : vector<8x1xf32>
    %cst_131 = arith.constant 9.99999974E-5 : f32
    %566 = vector.broadcast %cst_131 : f32 to vector<8x1xf32>
    %567 = arith.addf %565, %566 : vector<8x1xf32>
    %568 = math.rsqrt %567 : vector<8x1xf32>
    %c120_132 = arith.constant 120 : index
    %c144_133 = arith.constant 144 : index
    %569 = vector.load %arg1[%c120_132, %c144_133] : memref<136x146xf32, #tpu.memory_space<vmem>>, vector<8x1xf32>
    %570 = arith.mulf %568, %569 : vector<8x1xf32>
    %571 = vector.broadcast %561 : vector<8x1xf32> to vector<8x512xf32>
    %572 = arith.subf %554, %571 : vector<8x512xf32>
    %573 = vector.broadcast %570 : vector<8x1xf32> to vector<8x512xf32>
    %574 = arith.mulf %572, %573 : vector<8x512xf32>
    %c120_134 = arith.constant 120 : index
    %c145_135 = arith.constant 145 : index
    %575 = vector.load %arg1[%c120_134, %c145_135] : memref<136x146xf32, #tpu.memory_space<vmem>>, vector<8x1xf32>
    %576 = vector.broadcast %575 : vector<8x1xf32> to vector<8x512xf32>
    %577 = arith.addf %574, %576 : vector<8x512xf32>
    %578 = arith.addf %577, %465 : vector<8x512xf32>
    %cst_136 = arith.constant 0.000000e+00 : f32
    %579 = vector.broadcast %cst_136 : f32 to vector<8x512xf32>
    %580 = arith.cmpf ogt, %578, %579 : vector<8x512xf32>
    %581 = math.exp %578 : vector<8x512xf32>
    %cst_137 = arith.constant 1.000000e+00 : f32
    %582 = vector.broadcast %cst_137 : f32 to vector<8x512xf32>
    %583 = arith.subf %581, %582 : vector<8x512xf32>
    %584 = arith.select %580, %578, %583 : vector<8x512xi1>, vector<8x512xf32>
    %cst_138 = arith.constant 0.000000e+00 : f32
    %585 = vector.broadcast %cst_138 : f32 to vector<8x17xf32>
    %586 = tpu.concatenate %585, %584, %585 in 1 : vector<8x17xf32>, vector<8x512xf32>, vector<8x17xf32> -> vector<8x546xf32>
    %587 = vector.extract_strided_slice %586 {offsets = [0, 0], sizes = [8, 512], strides = [1, 1]} : vector<8x546xf32> to vector<8x512xf32>
    %588 = vector.broadcast %427 : vector<1x512xf32> to vector<8x512xf32>
    %589 = arith.mulf %587, %588 : vector<8x512xf32>
    %590 = vector.extract_strided_slice %586 {offsets = [0, 1], sizes = [8, 512], strides = [1, 1]} : vector<8x546xf32> to vector<8x512xf32>
    %591 = vector.broadcast %428 : vector<1x512xf32> to vector<8x512xf32>
    %592 = arith.mulf %590, %591 : vector<8x512xf32>
    %593 = vector.extract_strided_slice %586 {offsets = [0, 2], sizes = [8, 512], strides = [1, 1]} : vector<8x546xf32> to vector<8x512xf32>
    %594 = vector.broadcast %429 : vector<1x512xf32> to vector<8x512xf32>
    %595 = arith.mulf %593, %594 : vector<8x512xf32>
    %596 = vector.extract_strided_slice %586 {offsets = [0, 16], sizes = [8, 512], strides = [1, 1]} : vector<8x546xf32> to vector<8x512xf32>
    %597 = vector.broadcast %430 : vector<1x512xf32> to vector<8x512xf32>
    %598 = arith.mulf %596, %597 : vector<8x512xf32>
    %599 = vector.extract_strided_slice %586 {offsets = [0, 17], sizes = [8, 512], strides = [1, 1]} : vector<8x546xf32> to vector<8x512xf32>
    %600 = vector.extract_strided_slice %586 {offsets = [0, 18], sizes = [8, 512], strides = [1, 1]} : vector<8x546xf32> to vector<8x512xf32>
    %601 = vector.broadcast %431 : vector<1x512xf32> to vector<8x512xf32>
    %602 = arith.mulf %600, %601 : vector<8x512xf32>
    %603 = vector.extract_strided_slice %586 {offsets = [0, 32], sizes = [8, 512], strides = [1, 1]} : vector<8x546xf32> to vector<8x512xf32>
    %604 = vector.broadcast %432 : vector<1x512xf32> to vector<8x512xf32>
    %605 = arith.mulf %603, %604 : vector<8x512xf32>
    %606 = vector.extract_strided_slice %586 {offsets = [0, 33], sizes = [8, 512], strides = [1, 1]} : vector<8x546xf32> to vector<8x512xf32>
    %607 = vector.broadcast %433 : vector<1x512xf32> to vector<8x512xf32>
    %608 = arith.mulf %606, %607 : vector<8x512xf32>
    %609 = vector.extract_strided_slice %586 {offsets = [0, 34], sizes = [8, 512], strides = [1, 1]} : vector<8x546xf32> to vector<8x512xf32>
    %610 = vector.broadcast %434 : vector<1x512xf32> to vector<8x512xf32>
    %611 = arith.mulf %609, %610 : vector<8x512xf32>
    %612 = tpu.concatenate %589, %592, %595, %598, %599, %602, %605, %608, %611 in 0 : vector<8x512xf32>, vector<8x512xf32>, vector<8x512xf32>, vector<8x512xf32>, vector<8x512xf32>, vector<8x512xf32>, vector<8x512xf32>, vector<8x512xf32>, vector<8x512xf32> -> vector<72x512xf32>
    %c128 = arith.constant 128 : index
    %c0_139 = arith.constant 0 : index
    %613 = vector.load %arg1[%c128, %c0_139] : memref<136x146xf32, #tpu.memory_space<vmem>>, vector<3x72xf32>
    %cst_140 = arith.constant dense<0.000000e+00> : vector<3x512xf32>
    %614 = tpu.matmul %613, %612, %cst_140 {dimension_numbers = #tpu.dot_dimension_numbers<[1], [0], [0], [1], [0, 0, 1, 1], [], []>} : vector<3x72xf32>, vector<72x512xf32>, vector<3x512xf32> -> vector<3x512xf32>
    %c128_141 = arith.constant 128 : index
    %c144_142 = arith.constant 144 : index
    %615 = vector.load %arg1[%c128_141, %c144_142] : memref<136x146xf32, #tpu.memory_space<vmem>>, vector<3x1xf32>
    %616 = vector.broadcast %615 : vector<3x1xf32> to vector<3x512xf32>
    %617 = arith.addf %614, %616 : vector<3x512xf32>
    %618 = math.tanh %617 : vector<3x512xf32>
    %c0_143 = arith.constant 0 : index
    %c0_144 = arith.constant 0 : index
    %619 = vector.load %arg3[%c0_143, %c0_144] : memref<3x512xf32, #tpu.memory_space<vmem>>, vector<3x512xf32>
    tpu.vector_store %arg3[%c0_143, %c0_144], %618 {strides = array<i32>} : memref<3x512xf32, #tpu.memory_space<vmem>>, vector<3x512xf32>,
    return
  }
}

</mosaic_0001>

<llo_original>
// kernel: fwd.1
$region0: #{fwd.1}
  #allocation0 [shape = 'u32[]', space=smem, size = 0x4, offset = 0x4, fixed_abs, tag = 'smem constant byte address 0x4 - core index']
  #allocation1 [shape = 'u32[144,128]{1,0:T(1,128)}', space=vmem, size = 0x12000, scoped, tag = 'internal scratch']
  %s0 = inlined_call_operand.vmem [shape: f32[4,32], index: 0, kind: input, shape index: {}]
  %s1 = inlined_call_operand.hbm [shape: f32[136,146], index: 1, kind: input, shape index: {}]
  %s2 = inlined_call_operand.hbm [shape: f32[208,512], index: 2, kind: input, shape index: {}]
  %s3 = inlined_call_operand.vmem [shape: f32[3,512], index: 3, kind: output, shape index: {}]
  %s4 = sld [smem:[#allocation0]]
  $region30: #{fwd.1} parent=0
    _
  %s6 = ssub.s32 1, %s4
  %s7 = scalar_select 0, %s6, %s4
  $region1: #{fwd.1} parent=0
    #allocation2 [shape = 'u8[139264]{0}', space=vmem, size = 0x22000, scoped, tag = 'input window, operand 1, single buffered']
    #allocation3 [shape = 's32[1]{0}', space=sflag, size = 0x4, scoped, tag = 'scoped memory for fwd.1']
    #allocation4 [shape = 'u8[425984]{0}', space=vmem, size = 0x68000, scoped, tag = 'input window, operand 2, single buffered']
    #allocation5 [shape = 's32[1]{0}', space=sflag, size = 0x4, scoped, tag = 'scoped memory for fwd.1']
    %8 = vsyncpa [#allocation3], 0
    %9 = vsyncpa [#allocation5], 0
    // Predicated region
    $region2: #{fwd.1} parent=1 // pred_check
      _
    $region3: #{fwd.1} parent=1 // pred_check_branch
      %11 = sbr.rel (0) target = $region5
    $region4: #{fwd.1} parent=1 // pred_region
      _
    $region5: #{fwd.1} parent=1 // pred_fallthru
      _
    // Predicated region
    $region6: #{fwd.1} parent=1 // pred_check
      _
    $region7: #{fwd.1} parent=1 // pred_check_branch
      %13 = sbr.rel (0) target = $region9
    $region8: #{fwd.1} parent=1 // pred_region
      %s15 = ssub.s32 4352, 4352
      %16 = vsyncadd [#allocation3], %s15
      %s17 = sshll.u32 [#allocation2], 4
      %s18 = int_to_ptr.vmem [resolvable:$true] %s17
      %23 = dma.hbm_to_vmem [thread:$0]  %s1, 4352, %s18, [#allocation3], 256, 256, 16
    $region9: #{fwd.1} parent=1 // pred_fallthru
      _
    // Predicated region
    $region10: #{fwd.1} parent=1 // pred_check
      _
    $region11: #{fwd.1} parent=1 // pred_check_branch
      %25 = sbr.rel (0) target = $region13
    $region12: #{fwd.1} parent=1 // pred_region
      %s27 = ssub.s32 13312, 13312
      %28 = vsyncadd [#allocation5], %s27
      %s29 = sshll.u32 [#allocation4], 4
      %s30 = int_to_ptr.vmem [resolvable:$true] %s29
      %35 = dma.hbm_to_vmem [thread:$0]  %s2, 13312, %s30, [#allocation5], 512, 512, 32
    $region13: #{fwd.1} parent=1 // pred_fallthru
      _
    // Predicated region
    $region14: #{fwd.1} parent=1 // pred_check
      _
    $region15: #{fwd.1} parent=1 // pred_check_branch
      %37 = sbr.rel (0) target = $region17
    $region16: #{fwd.1} parent=1 // pred_region
      %38 = dma.done [#allocation3], 4352
    $region17: #{fwd.1} parent=1 // pred_fallthru
      _
    // Predicated region
    $region18: #{fwd.1} parent=1 // pred_check
      _
    $region19: #{fwd.1} parent=1 // pred_check_branch
      %40 = sbr.rel (0) target = $region21
    $region20: #{fwd.1} parent=1 // pred_region
      %41 = dma.done [#allocation5], 13312
    $region21: #{fwd.1} parent=1 // pred_fallthru
      _
    %v42 = vld [vmem:[#allocation2] sm:$0xff]
    %v43 = vld [vmem:[#allocation2 + $0x10] sm:$0xff]
    %v44 = vld [vmem:[%s0] sm:$0xf]
    %v45 = vld [vmem:[#allocation2 + $0x8] sm:$0xff]
    %v46 = vld [vmem:[#allocation2 + $0x18] sm:$0xff]
    %48 = vset.pattern.permute.xlu0 16
    %49 = vperm.xlu0 %48, %v45
    %v50 = vpop.permute.xlu0 %49
    %53 = vset.pattern.permute.xlu0 16
    %54 = vperm.xlu0 %53, %v46
    %v55 = vpop.permute.xlu0 %54
    %vm57 = vcmask 31744
    %v59 = vsel %vm57, %v42, 0
    %v62 = vsel %vm57, %v43, 0
    %vm64 = vcmask 1043456
    %v66 = vsel %vm64, %v44, 0
    %68 = vmatprep.subr.mxu0 0.0
    %69 = vmatpush1.msra.mxu0 0.0
    %70 = vmatprep.subr.mxu0 0.0
    %71 = vmatpush1.msra.mxu0 0.0
    %72 = vmatprep.subr.mxu0 0.0
    %73 = vmatpush1.msra.mxu0 0.0
    %74 = vmatprep.subr.mxu0 0.0
    %75 = vmatpush1.msra.mxu0 0.0
    %76 = vmatprep.subr.mxu0 0.0
    %77 = vmatpush1.msra.mxu0 0.0
    %78 = vmatprep.subr.mxu0 0.0
    %79 = vmatpush1.msra.mxu0 0.0
    %80 = vmatprep.subr.mxu0 0.0
    %81 = vmatpush1.msra.mxu0 0.0
    %82 = vmatprep.subr.mxu0 0.0
    %83 = vmatpush1.msra.mxu0 0.0
    %84 = vmatprep.subr.mxu0 0.0
    %85 = vmatpush1.msra.mxu0 0.0
    %86 = vmatprep.subr.mxu0 0.0
    %87 = vmatpush1.msra.mxu0 0.0
    %88 = vmatprep.subr.mxu0 0.0
    %89 = vmatpush1.msra.mxu0 0.0
    %90 = vmatprep.subr.mxu0 0.0
    %91 = vmatpush1.msra.mxu0 0.0
    %92 = vmatprep.subr.mxu0 0.0
    %93 = vmatpush1.msra.mxu0 0.0
    %94 = vmatprep.subr.mxu0 0.0
    %95 = vmatpush1.msra.mxu0 0.0
    %96 = vmatprep.subr.mxu0 0.0
    %97 = vmatpush1.msra.mxu0 0.0
    %98 = vmatprep.subr.mxu0 0.0
    %99 = vmatpush1.msra.mxu0 %v66
    %100 = vmatprep.subr.mxu0 0.0
    %101 = vmatpush2.msra.mxu0 0.0
    %102 = vmatprep.subr.mxu0 0.0
    %103 = vmatpush2.msra.mxu0 0.0
    %104 = vmatprep.subr.mxu0 0.0
    %105 = vmatpush2.msra.mxu0 0.0
    %106 = vmatprep.subr.mxu0 0.0
    %107 = vmatpush2.msra.mxu0 0.0
    %108 = vmatprep.subr.mxu0 0.0
    %109 = vmatpush2.msra.mxu0 0.0
    %110 = vmatprep.subr.mxu0 0.0
    %111 = vmatpush2.msra.mxu0 0.0
    %112 = vmatprep.subr.mxu0 0.0
    %113 = vmatpush2.msra.mxu0 0.0
    %114 = vmatprep.subr.mxu0 0.0
    %115 = vmatpush2.msra.mxu0 0.0
    %116 = vmatprep.subr.mxu0 0.0
    %117 = vmatpush2.msra.mxu0 0.0
    %118 = vmatprep.subr.mxu0 0.0
    %119 = vmatpush2.msra.mxu0 0.0
    %120 = vmatprep.subr.mxu0 0.0
    %121 = vmatpush2.msra.mxu0 0.0
    %122 = vmatprep.subr.mxu0 0.0
    %123 = vmatpush2.msra.mxu0 0.0
    %124 = vmatprep.subr.mxu0 0.0
    %125 = vmatpush2.msra.mxu0 0.0
    %126 = vmatprep.subr.mxu0 0.0
    %127 = vmatpush2.msra.mxu0 0.0
    %128 = vmatprep.subr.mxu0 0.0
    %129 = vmatpush2.msra.mxu0 0.0
    %130 = vmatprep.subr.mxu0 0.0
    %131 = vmatpush2.msra.mxu0 0.0
    %132 = vmatprep.mubr.f32.mxu0 0.0
    %133 = vmatmul.mubr.f32.gmra.mxu0 %v59
    %v134 = vpop.f32.mrf.mxu0
    %v135 = vadd.f32 %v50, %v134
    %v136 = vpop.f32.mrf.mxu0
    %137 = vmatprep.mubr.f32.mxu0 0.0
    %138 = vmatmul.mubr.f32.gmra.mxu0 %v62
    %v139 = vpop.f32.mrf.mxu0
    %v140 = vadd.f32 %v55, %v139
    %v141 = vpop.f32.mrf.mxu0
    %142 = vdwg.mxu0
    %vm143 = vcmp.gt.f32.partialorder %v135, 0.0
    %vm144 = vcmp.gt.f32.partialorder %v140, 0.0
    %v145 = vmul.f32 %v135, 1.442695
    %v146 = vpow.pop %v145
    %v147 = vmul.f32 %v140, 1.442695
    %v148 = vpow.pop %v147
    %v149 = vsub.f32 %v146, 1.0
    %v150 = vsub.f32 %v148, 1.0
    %v151 = vsel %vm143, %v135, %v149
    %v152 = vsel %vm144, %v140, %v150
    %155 = vrot.lane.b32.xlu0 %v151, 5
    %v156 = vpop.permute.xlu0 %155
    %157 = vrot.lane.b32.xlu0 %v152, 5
    %v158 = vpop.permute.xlu0 %157
    %vm161 = vcmask 39936
    %v162 = vsel %vm161, 0.0, %v156
    %v163 = vsel %vm161, 0.0, %v158
    %vm164 = vcmask 302080
    %v165 = vsel %vm164, %v162, 0.0
    %v166 = vsel %vm164, %v163, 0.0
    %v167 = vld [vmem:[#allocation4] sm:$0xff]
    %v168 = vld [vmem:[#allocation4 + $0x20] sm:$0x1]
    %v169 = vlaneseq
    %v170 = vshrl.u32 %v169, 7
    %v171 = vsub.s32 0, %v170
    %v172 = vrot.slane %v167, %v171
    %v173 = vmul.f32 %v165, %v172
    %v174 = vmul.f32 %v166, %v172
    %v175 = vlaneseq
    %v176 = vshrl.u32 %v175, 7
    %v177 = vsub.s32 1, %v176
    %v178 = vrot.slane %v167, %v177
    %180 = vrot.lane.b32.xlu0 %v178, 1
    %v181 = vpop.permute.xlu0 %180
    %v183 = vmul.f32 %v165, %v181
    %v184 = vmul.f32 %v166, %v181
    %v185 = vlaneseq
    %v186 = vshrl.u32 %v185, 7
    %v187 = vsub.s32 2, %v186
    %v188 = vrot.slane %v167, %v187
    %190 = vrot.lane.b32.xlu0 %v188, 2
    %v191 = vpop.permute.xlu0 %190
    %v193 = vmul.f32 %v165, %v191
    %v194 = vmul.f32 %v166, %v191
    %v195 = vlaneseq
    %v196 = vshrl.u32 %v195, 7
    %v197 = vsub.s32 3, %v196
    %v198 = vrot.slane %v167, %v197
    %200 = vrot.lane.b32.xlu0 %v198, 4
    %v201 = vpop.permute.xlu0 %200
    %v203 = vmul.f32 %v165, %v201
    %v204 = vmul.f32 %v166, %v201
    %v205 = vlaneseq
    %v206 = vshrl.u32 %v205, 7
    %v207 = vsub.s32 5, %v206
    %v208 = vrot.slane %v167, %v207
    %210 = vrot.lane.b32.xlu0 %v208, 6
    %v211 = vpop.permute.xlu0 %210
    %v213 = vmul.f32 %v165, %v211
    %v214 = vmul.f32 %v166, %v211
    %v215 = vlaneseq
    %v216 = vshrl.u32 %v215, 7
    %v217 = vsub.s32 6, %v216
    %v218 = vrot.slane %v167, %v217
    %220 = vrot.lane.b32.xlu0 %v218, 8
    %v221 = vpop.permute.xlu0 %220
    %v223 = vmul.f32 %v165, %v221
    %v224 = vmul.f32 %v166, %v221
    %v225 = vlaneseq
    %v226 = vshrl.u32 %v225, 7
    %v227 = vsub.s32 7, %v226
    %v228 = vrot.slane %v167, %v227
    %230 = vrot.lane.b32.xlu0 %v228, 9
    %v231 = vpop.permute.xlu0 %230
    %v233 = vmul.f32 %v165, %v231
    %v234 = vmul.f32 %v166, %v231
    %v235 = vlaneseq
    %v236 = vshrl.u32 %v235, 7
    %v237 = vsub.s32 0, %v236
    %v238 = vrot.slane %v168, %v237
    %240 = vrot.lane.b32.xlu0 %v238, 10
    %v241 = vpop.permute.xlu0 %240
    %v243 = vmul.f32 %v165, %v241
    %v244 = vmul.f32 %v166, %v241
    %247 = vrot.lane.b32.xlu0 %v183, 127
    %v248 = vpop.permute.xlu0 %247
    %249 = vrot.lane.b32.xlu0 %v184, 127
    %v250 = vpop.permute.xlu0 %249
    %255 = vrot.lane.b32.xlu0 %v193, 126
    %v256 = vpop.permute.xlu0 %255
    %257 = vrot.lane.b32.xlu0 %v194, 126
    %v258 = vpop.permute.xlu0 %257
    %263 = vrot.lane.b32.xlu0 %v203, 124
    %v264 = vpop.permute.xlu0 %263
    %265 = vrot.lane.b32.xlu0 %v204, 124
    %v266 = vpop.permute.xlu0 %265
    %271 = vrot.lane.b32.xlu0 %v165, 123
    %v272 = vpop.permute.xlu0 %271
    %273 = vrot.lane.b32.xlu0 %v166, 123
    %v274 = vpop.permute.xlu0 %273
    %279 = vrot.lane.b32.xlu0 %v213, 122
    %v280 = vpop.permute.xlu0 %279
    %281 = vrot.lane.b32.xlu0 %v214, 122
    %v282 = vpop.permute.xlu0 %281
    %287 = vrot.lane.b32.xlu0 %v223, 120
    %v288 = vpop.permute.xlu0 %287
    %289 = vrot.lane.b32.xlu0 %v224, 120
    %v290 = vpop.permute.xlu0 %289
    %295 = vrot.lane.b32.xlu0 %v233, 119
    %v296 = vpop.permute.xlu0 %295
    %297 = vrot.lane.b32.xlu0 %v234, 119
    %v298 = vpop.permute.xlu0 %297
    %303 = vrot.lane.b32.xlu0 %v243, 118
    %v304 = vpop.permute.xlu0 %303
    %305 = vrot.lane.b32.xlu0 %v244, 118
    %v306 = vpop.permute.xlu0 %305
    %v309 = vld [vmem:[#allocation2 + $0x20] sm:$0xff]
    %v310 = vld [vmem:[#allocation2 + $0x28] sm:$0xff]
    %vm311 = vcmask 130048
    %v313 = vsel %vm311, %v310, 0
    %315 = vmatprep.subr.mxu0 0.0
    %316 = vmatpush1.msra.mxu0 %v298
    %317 = vmatprep.subr.mxu0 0.0
    %318 = vmatpush1.msra.mxu0 %v296
    %319 = vmatprep.subr.mxu0 0.0
    %320 = vmatpush1.msra.mxu0 %v290
    %321 = vmatprep.subr.mxu0 0.0
    %322 = vmatpush1.msra.mxu0 %v288
    %323 = vmatprep.subr.mxu0 0.0
    %324 = vmatpush1.msra.mxu0 %v282
    %325 = vmatprep.subr.mxu0 0.0
    %326 = vmatpush1.msra.mxu0 %v280
    %327 = vmatprep.subr.mxu0 0.0
    %328 = vmatpush1.msra.mxu0 %v274
    %329 = vmatprep.subr.mxu0 0.0
    %330 = vmatpush1.msra.mxu0 %v272
    %331 = vmatprep.subr.mxu0 0.0
    %332 = vmatpush1.msra.mxu0 %v266
    %333 = vmatprep.subr.mxu0 0.0
    %334 = vmatpush1.msra.mxu0 %v264
    %335 = vmatprep.subr.mxu0 0.0
    %336 = vmatpush1.msra.mxu0 %v258
    %337 = vmatprep.subr.mxu0 0.0
    %338 = vmatpush1.msra.mxu0 %v256
    %339 = vmatprep.subr.mxu0 0.0
    %340 = vmatpush1.msra.mxu0 %v250
    %341 = vmatprep.subr.mxu0 0.0
    %342 = vmatpush1.msra.mxu0 %v248
    %343 = vmatprep.subr.mxu0 0.0
    %344 = vmatpush1.msra.mxu0 %v174
    %345 = vmatprep.subr.mxu0 0.0
    %346 = vmatpush1.msra.mxu0 %v173
    %347 = vmatprep.subr.mxu0 0.0
    %348 = vmatpush2.msra.mxu0 0.0
    %349 = vmatprep.subr.mxu0 0.0
    %350 = vmatpush2.msra.mxu0 0.0
    %351 = vmatprep.subr.mxu0 0.0
    %352 = vmatpush2.msra.mxu0 0.0
    %353 = vmatprep.subr.mxu0 0.0
    %354 = vmatpush2.msra.mxu0 0.0
    %355 = vmatprep.subr.mxu0 0.0
    %356 = vmatpush2.msra.mxu0 0.0
    %357 = vmatprep.subr.mxu0 0.0
    %358 = vmatpush2.msra.mxu0 0.0
    %359 = vmatprep.subr.mxu0 0.0
    %360 = vmatpush2.msra.mxu0 0.0
    %361 = vmatprep.subr.mxu0 0.0
    %362 = vmatpush2.msra.mxu0 0.0
    %363 = vmatprep.subr.mxu0 0.0
    %364 = vmatpush2.msra.mxu0 0.0
    %365 = vmatprep.subr.mxu0 0.0
    %366 = vmatpush2.msra.mxu0 0.0
    %367 = vmatprep.subr.mxu0 0.0
    %368 = vmatpush2.msra.mxu0 0.0
    %369 = vmatprep.subr.mxu0 0.0
    %370 = vmatpush2.msra.mxu0 0.0
    %371 = vmatprep.subr.mxu0 0.0
    %372 = vmatpush2.msra.mxu0 0.0
    %373 = vmatprep.subr.mxu0 0.0
    %374 = vmatpush2.msra.mxu0 0.0
    %375 = vmatprep.subr.mxu0 0.0
    %376 = vmatpush2.msra.mxu0 %v306
    %377 = vmatprep.subr.mxu0 0.0
    %378 = vmatpush2.msra.mxu0 %v304
    %379 = vmatprep.mubr.f32.mxu0 %v313
    %380 = vmatmul.mubr.f32.gmra.mxu0 %v309
    %v381 = vpop.f32.mrf.mxu0
    %v382 = vadd.f32 0.0, %v381
    %v383 = vpop.f32.mrf.mxu0
    %384 = vdwg.mxu0
    %vm385 = vcmask 261120
    %v386 = vsel %vm385, %v382, 0.0
    %387 = vadd.xlane.f32.xlu0 %v386
    %v388 = vpop.xlane.xlu0 %387
    %v389 = vmul.f32 %v382, %v382
    %v390 = vsel %vm385, %v389, 0.0
    %391 = vadd.xlane.f32.xlu0 %v390
    %v392 = vpop.xlane.xlu0 %391
    %v393 = vmul.f32 %v388, 0.03125
    %v394 = vmul.f32 %v392, 0.03125
    %v395 = vmul.f32 %v393, %v393
    %v396 = vsub.f32 %v394, %v395
    %v397 = vadd.f32 %v396, 0.0001
    %v398 = vrsqrt.pop %v397
    %v399 = vmul.f32 %v398, %v310
    %v400 = vsub.f32 %v382, %v393
    %402 = vset.pattern.permute.xlu0 16
    %403 = vperm.xlu0 %402, %v399
    %v404 = vpop.permute.xlu0 %403
    %v406 = vmul.f32 %v400, %v404
    %407 = vset.pattern.permute.xlu0 17
    %408 = vperm.xlu0 %407, %v310
    %v409 = vpop.permute.xlu0 %408
    %v411 = vadd.f32 %v406, %v409
    %vm412 = vcmp.gt.f32.partialorder %v411, 0.0
    %v413 = vmul.f32 %v411, 1.442695
    %v414 = vpow.pop %v413
    %v415 = vsub.f32 %v414, 1.0
    %v416 = vsel %vm412, %v411, %v415
    %418 = vrot.lane.b32.xlu0 %v416, 5
    %v419 = vpop.permute.xlu0 %418
    %v421 = vsel %vm161, 0.0, %v419
    %v422 = vsel %vm164, %v421, 0.0
    %v423 = vmul.f32 %v422, %v172
    %v424 = vmul.f32 %v422, %v181
    %v425 = vmul.f32 %v422, %v191
    %v426 = vmul.f32 %v422, %v201
    %v427 = vmul.f32 %v422, %v211
    %v428 = vmul.f32 %v422, %v221
    %v429 = vmul.f32 %v422, %v231
    %v430 = vmul.f32 %v422, %v241
    %432 = vrot.lane.b32.xlu0 %v424, 127
    %v433 = vpop.permute.xlu0 %432
    %436 = vrot.lane.b32.xlu0 %v425, 126
    %v437 = vpop.permute.xlu0 %436
    %440 = vrot.lane.b32.xlu0 %v426, 124
    %v441 = vpop.permute.xlu0 %440
    %444 = vrot.lane.b32.xlu0 %v422, 123
    %v445 = vpop.permute.xlu0 %444
    %448 = vrot.lane.b32.xlu0 %v427, 122
    %v449 = vpop.permute.xlu0 %448
    %452 = vrot.lane.b32.xlu0 %v428, 120
    %v453 = vpop.permute.xlu0 %452
    %456 = vrot.lane.b32.xlu0 %v429, 119
    %v457 = vpop.permute.xlu0 %456
    %460 = vrot.lane.b32.xlu0 %v430, 118
    %v461 = vpop.permute.xlu0 %460
    %v463 = vld [vmem:[#allocation2 + $0x30] sm:$0xff]
    %v464 = vld [vmem:[#allocation2 + $0x40] sm:$0xff]
    %vm465 = vcmask 588800
    %v467 = vsel %vm465, %v463, 0
    %v470 = vsel %vm465, %v464, 0
    %472 = vmatprep.subr.mxu0 0.0
    %473 = vmatpush1.msra.mxu0 0.0
    %474 = vmatprep.subr.mxu0 0.0
    %475 = vmatpush1.msra.mxu0 0.0
    %476 = vmatprep.subr.mxu0 0.0
    %477 = vmatpush1.msra.mxu0 0.0
    %478 = vmatprep.subr.mxu0 0.0
    %479 = vmatpush1.msra.mxu0 0.0
    %480 = vmatprep.subr.mxu0 0.0
    %481 = vmatpush1.msra.mxu0 0.0
    %482 = vmatprep.subr.mxu0 0.0
    %483 = vmatpush1.msra.mxu0 0.0
    %484 = vmatprep.subr.mxu0 0.0
    %485 = vmatpush1.msra.mxu0 0.0
    %486 = vmatprep.subr.mxu0 0.0
    %487 = vmatpush1.msra.mxu0 %v461
    %488 = vmatprep.subr.mxu0 0.0
    %489 = vmatpush1.msra.mxu0 %v457
    %490 = vmatprep.subr.mxu0 0.0
    %491 = vmatpush1.msra.mxu0 %v453
    %492 = vmatprep.subr.mxu0 0.0
    %493 = vmatpush1.msra.mxu0 %v449
    %494 = vmatprep.subr.mxu0 0.0
    %495 = vmatpush1.msra.mxu0 %v445
    %496 = vmatprep.subr.mxu0 0.0
    %497 = vmatpush1.msra.mxu0 %v441
    %498 = vmatprep.subr.mxu0 0.0
    %499 = vmatpush1.msra.mxu0 %v437
    %500 = vmatprep.subr.mxu0 0.0
    %501 = vmatpush1.msra.mxu0 %v433
    %502 = vmatprep.subr.mxu0 0.0
    %503 = vmatpush1.msra.mxu0 %v423
    %504 = vmatprep.subr.mxu0 0.0
    %505 = vmatpush2.msra.mxu0 0.0
    %506 = vmatprep.subr.mxu0 0.0
    %507 = vmatpush2.msra.mxu0 0.0
    %508 = vmatprep.subr.mxu0 0.0
    %509 = vmatpush2.msra.mxu0 0.0
    %510 = vmatprep.subr.mxu0 0.0
    %511 = vmatpush2.msra.mxu0 0.0
    %512 = vmatprep.subr.mxu0 0.0
    %513 = vmatpush2.msra.mxu0 0.0
    %514 = vmatprep.subr.mxu0 0.0
    %515 = vmatpush2.msra.mxu0 0.0
    %516 = vmatprep.subr.mxu0 0.0
    %517 = vmatpush2.msra.mxu0 0.0
    %518 = vmatprep.subr.mxu0 0.0
    %519 = vmatpush2.msra.mxu0 0.0
    %520 = vmatprep.subr.mxu0 0.0
    %521 = vmatpush2.msra.mxu0 0.0
    %522 = vmatprep.subr.mxu0 0.0
    %523 = vmatpush2.msra.mxu0 0.0
    %524 = vmatprep.subr.mxu0 0.0
    %525 = vmatpush2.msra.mxu0 0.0
    %526 = vmatprep.subr.mxu0 0.0
    %527 = vmatpush2.msra.mxu0 0.0
    %528 = vmatprep.subr.mxu0 0.0
    %529 = vmatpush2.msra.mxu0 0.0
    %530 = vmatprep.subr.mxu0 0.0
    %531 = vmatpush2.msra.mxu0 0.0
    %532 = vmatprep.subr.mxu0 0.0
    %533 = vmatpush2.msra.mxu0 0.0
    %534 = vmatprep.subr.mxu0 0.0
    %535 = vmatpush2.msra.mxu0 0.0
    %536 = vmatprep.mubr.f32.mxu0 0.0
    %537 = vmatmul.mubr.f32.gmra.mxu0 %v467
    %v538 = vpop.f32.mrf.mxu0
    %v539 = vadd.f32 0.0, %v538
    %v540 = vpop.f32.mrf.mxu0
    %541 = vmatprep.mubr.f32.mxu0 0.0
    %542 = vmatmul.mubr.f32.gmra.mxu0 %v470
    %v543 = vpop.f32.mrf.mxu0
    %v544 = vadd.f32 0.0, %v543
    %v545 = vpop.f32.mrf.mxu0
    %546 = vdwg.mxu0
    %v547 = vsel %vm385, %v539, 0.0
    %548 = vadd.xlane.f32.xlu0 %v547
    %v549 = vpop.xlane.xlu0 %548
    %v550 = vsel %vm385, %v544, 0.0
    %551 = vadd.xlane.f32.xlu0 %v550
    %v552 = vpop.xlane.xlu0 %551
    %v553 = vmul.f32 %v539, %v539
    %v554 = vmul.f32 %v544, %v544
    %v555 = vsel %vm385, %v553, 0.0
    %556 = vadd.xlane.f32.xlu0 %v555
    %v557 = vpop.xlane.xlu0 %556
    %v558 = vsel %vm385, %v554, 0.0
    %559 = vadd.xlane.f32.xlu0 %v558
    %v560 = vpop.xlane.xlu0 %559
    %v561 = vmul.f32 %v549, 0.03125
    %v562 = vmul.f32 %v552, 0.03125
    %v563 = vmul.f32 %v557, 0.03125
    %v564 = vmul.f32 %v560, 0.03125
    %v565 = vmul.f32 %v561, %v561
    %v566 = vmul.f32 %v562, %v562
    %v567 = vsub.f32 %v563, %v565
    %v568 = vsub.f32 %v564, %v566
    %v569 = vadd.f32 %v567, 0.0001
    %v570 = vadd.f32 %v568, 0.0001
    %v571 = vrsqrt.pop %v569
    %v572 = vrsqrt.pop %v570
    %v573 = vld [vmem:[#allocation2 + $0x38] sm:$0xff]
    %v574 = vld [vmem:[#allocation2 + $0x48] sm:$0xff]
    %v575 = vmul.f32 %v571, %v573
    %v576 = vmul.f32 %v572, %v574
    %v577 = vsub.f32 %v539, %v561
    %v578 = vsub.f32 %v544, %v562
    %580 = vset.pattern.permute.xlu0 16
    %581 = vperm.xlu0 %580, %v575
    %v582 = vpop.permute.xlu0 %581
    %585 = vset.pattern.permute.xlu0 16
    %586 = vperm.xlu0 %585, %v576
    %v587 = vpop.permute.xlu0 %586
    %v589 = vmul.f32 %v577, %v582
    %v590 = vmul.f32 %v578, %v587
    %592 = vset.pattern.permute.xlu0 17
    %593 = vperm.xlu0 %592, %v573
    %v594 = vpop.permute.xlu0 %593
    %597 = vset.pattern.permute.xlu0 17
    %598 = vperm.xlu0 %597, %v574
    %v599 = vpop.permute.xlu0 %598
    %v601 = vadd.f32 %v589, %v594
    %v602 = vadd.f32 %v590, %v599
    %v603 = vadd.f32 %v601, %v151
    %v604 = vadd.f32 %v602, %v152
    %vm605 = vcmp.gt.f32.partialorder %v603, 0.0
    %vm606 = vcmp.gt.f32.partialorder %v604, 0.0
    %v607 = vmul.f32 %v603, 1.442695
    %v608 = vpow.pop %v607
    %v609 = vmul.f32 %v604, 1.442695
    %v610 = vpow.pop %v609
    %v611 = vsub.f32 %v608, 1.0
    %v612 = vsub.f32 %v610, 1.0
    %v613 = vsel %vm605, %v603, %v611
    %v614 = vsel %vm606, %v604, %v612
    %617 = vrot.lane.b32.xlu0 %v613, 5
    %v618 = vpop.permute.xlu0 %617
    %619 = vrot.lane.b32.xlu0 %v614, 5
    %v620 = vpop.permute.xlu0 %619
    %v623 = vsel %vm161, 0.0, %v618
    %v624 = vsel %vm161, 0.0, %v620
    %v625 = vsel %vm164, %v623, 0.0
    %v626 = vsel %vm164, %v624, 0.0
    %v627 = vmul.f32 %v625, %v172
    %v628 = vmul.f32 %v626, %v172
    %v629 = vmul.f32 %v625, %v181
    %v630 = vmul.f32 %v626, %v181
    %v631 = vmul.f32 %v625, %v191
    %v632 = vmul.f32 %v626, %v191
    %v633 = vmul.f32 %v625, %v201
    %v634 = vmul.f32 %v626, %v201
    %v635 = vmul.f32 %v625, %v211
    %v636 = vmul.f32 %v626, %v211
    %v637 = vmul.f32 %v625, %v221
    %v638 = vmul.f32 %v626, %v221
    %v639 = vmul.f32 %v625, %v231
    %v640 = vmul.f32 %v626, %v231
    %v641 = vmul.f32 %v625, %v241
    %v642 = vmul.f32 %v626, %v241
    %645 = vrot.lane.b32.xlu0 %v629, 127
    %v646 = vpop.permute.xlu0 %645
    %647 = vrot.lane.b32.xlu0 %v630, 127
    %v648 = vpop.permute.xlu0 %647
    %653 = vrot.lane.b32.xlu0 %v631, 126
    %v654 = vpop.permute.xlu0 %653
    %655 = vrot.lane.b32.xlu0 %v632, 126
    %v656 = vpop.permute.xlu0 %655
    %661 = vrot.lane.b32.xlu0 %v633, 124
    %v662 = vpop.permute.xlu0 %661
    %663 = vrot.lane.b32.xlu0 %v634, 124
    %v664 = vpop.permute.xlu0 %663
    %669 = vrot.lane.b32.xlu0 %v625, 123
    %v670 = vpop.permute.xlu0 %669
    %671 = vrot.lane.b32.xlu0 %v626, 123
    %v672 = vpop.permute.xlu0 %671
    %677 = vrot.lane.b32.xlu0 %v635, 122
    %v678 = vpop.permute.xlu0 %677
    %679 = vrot.lane.b32.xlu0 %v636, 122
    %v680 = vpop.permute.xlu0 %679
    %685 = vrot.lane.b32.xlu0 %v637, 120
    %v686 = vpop.permute.xlu0 %685
    %687 = vrot.lane.b32.xlu0 %v638, 120
    %v688 = vpop.permute.xlu0 %687
    %693 = vrot.lane.b32.xlu0 %v639, 119
    %v694 = vpop.permute.xlu0 %693
    %695 = vrot.lane.b32.xlu0 %v640, 119
    %v696 = vpop.permute.xlu0 %695
    %701 = vrot.lane.b32.xlu0 %v641, 118
    %v702 = vpop.permute.xlu0 %701
    %703 = vrot.lane.b32.xlu0 %v642, 118
    %v704 = vpop.permute.xlu0 %703
    %v707 = vld [vmem:[#allocation2 + $0x50] sm:$0xff]
    %v708 = vld [vmem:[#allocation2 + $0x58] sm:$0xff]
    %v710 = vsel %vm311, %v708, 0
    %712 = vmatprep.subr.mxu0 0.0
    %713 = vmatpush1.msra.mxu0 %v696
    %714 = vmatprep.subr.mxu0 0.0
    %715 = vmatpush1.msra.mxu0 %v694
    %716 = vmatprep.subr.mxu0 0.0
    %717 = vmatpush1.msra.mxu0 %v688
    %718 = vmatprep.subr.mxu0 0.0
    %719 = vmatpush1.msra.mxu0 %v686
    %720 = vmatprep.subr.mxu0 0.0
    %721 = vmatpush1.msra.mxu0 %v680
    %722 = vmatprep.subr.mxu0 0.0
    %723 = vmatpush1.msra.mxu0 %v678
    %724 = vmatprep.subr.mxu0 0.0
    %725 = vmatpush1.msra.mxu0 %v672
    %726 = vmatprep.subr.mxu0 0.0
    %727 = vmatpush1.msra.mxu0 %v670
    %728 = vmatprep.subr.mxu0 0.0
    %729 = vmatpush1.msra.mxu0 %v664
    %730 = vmatprep.subr.mxu0 0.0
    %731 = vmatpush1.msra.mxu0 %v662
    %732 = vmatprep.subr.mxu0 0.0
    %733 = vmatpush1.msra.mxu0 %v656
    %734 = vmatprep.subr.mxu0 0.0
    %735 = vmatpush1.msra.mxu0 %v654
    %736 = vmatprep.subr.mxu0 0.0
    %737 = vmatpush1.msra.mxu0 %v648
    %738 = vmatprep.subr.mxu0 0.0
    %739 = vmatpush1.msra.mxu0 %v646
    %740 = vmatprep.subr.mxu0 0.0
    %741 = vmatpush1.msra.mxu0 %v628
    %742 = vmatprep.subr.mxu0 0.0
    %743 = vmatpush1.msra.mxu0 %v627
    %744 = vmatprep.subr.mxu0 0.0
    %745 = vmatpush2.msra.mxu0 0.0
    %746 = vmatprep.subr.mxu0 0.0
    %747 = vmatpush2.msra.mxu0 0.0
    %748 = vmatprep.subr.mxu0 0.0
    %749 = vmatpush2.msra.mxu0 0.0
    %750 = vmatprep.subr.mxu0 0.0
    %751 = vmatpush2.msra.mxu0 0.0
    %752 = vmatprep.subr.mxu0 0.0
    %753 = vmatpush2.msra.mxu0 0.0
    %754 = vmatprep.subr.mxu0 0.0
    %755 = vmatpush2.msra.mxu0 0.0
    %756 = vmatprep.subr.mxu0 0.0
    %757 = vmatpush2.msra.mxu0 0.0
    %758 = vmatprep.subr.mxu0 0.0
    %759 = vmatpush2.msra.mxu0 0.0
    %760 = vmatprep.subr.mxu0 0.0
    %761 = vmatpush2.msra.mxu0 0.0
    %762 = vmatprep.subr.mxu0 0.0
    %763 = vmatpush2.msra.mxu0 0.0
    %764 = vmatprep.subr.mxu0 0.0
    %765 = vmatpush2.msra.mxu0 0.0
    %766 = vmatprep.subr.mxu0 0.0
    %767 = vmatpush2.msra.mxu0 0.0
    %768 = vmatprep.subr.mxu0 0.0
    %769 = vmatpush2.msra.mxu0 0.0
    %770 = vmatprep.subr.mxu0 0.0
    %771 = vmatpush2.msra.mxu0 0.0
    %772 = vmatprep.subr.mxu0 0.0
    %773 = vmatpush2.msra.mxu0 %v704
    %774 = vmatprep.subr.mxu0 0.0
    %775 = vmatpush2.msra.mxu0 %v702
    %776 = vmatprep.mubr.f32.mxu0 %v710
    %777 = vmatmul.mubr.f32.gmra.mxu0 %v707
    %v778 = vpop.f32.mrf.mxu0
    %v779 = vadd.f32 0.0, %v778
    %v780 = vpop.f32.mrf.mxu0
    %781 = vdwg.mxu0
    %v782 = vsel %vm385, %v779, 0.0
    %783 = vadd.xlane.f32.xlu0 %v782
    %v784 = vpop.xlane.xlu0 %783
    %v785 = vmul.f32 %v779, %v779
    %v786 = vsel %vm385, %v785, 0.0
    %787 = vadd.xlane.f32.xlu0 %v786
    %v788 = vpop.xlane.xlu0 %787
    %v789 = vmul.f32 %v784, 0.03125
    %v790 = vmul.f32 %v788, 0.03125
    %v791 = vmul.f32 %v789, %v789
    %v792 = vsub.f32 %v790, %v791
    %v793 = vadd.f32 %v792, 0.0001
    %v794 = vrsqrt.pop %v793
    %v795 = vmul.f32 %v794, %v708
    %v796 = vsub.f32 %v779, %v789
    %798 = vset.pattern.permute.xlu0 16
    %799 = vperm.xlu0 %798, %v795
    %v800 = vpop.permute.xlu0 %799
    %v802 = vmul.f32 %v796, %v800
    %803 = vset.pattern.permute.xlu0 17
    %804 = vperm.xlu0 %803, %v708
    %v805 = vpop.permute.xlu0 %804
    %v807 = vadd.f32 %v802, %v805
    %vm808 = vcmp.gt.f32.partialorder %v807, 0.0
    %v809 = vmul.f32 %v807, 1.442695
    %v810 = vpow.pop %v809
    %v811 = vsub.f32 %v810, 1.0
    %v812 = vsel %vm808, %v807, %v811
    %814 = vrot.lane.b32.xlu0 %v812, 5
    %v815 = vpop.permute.xlu0 %814
    %v817 = vsel %vm161, 0.0, %v815
    %v818 = vsel %vm164, %v817, 0.0
    %v819 = vmul.f32 %v818, %v172
    %v820 = vmul.f32 %v818, %v181
    %v821 = vmul.f32 %v818, %v191
    %v822 = vmul.f32 %v818, %v201
    %v823 = vmul.f32 %v818, %v211
    %v824 = vmul.f32 %v818, %v221
    %v825 = vmul.f32 %v818, %v231
    %v826 = vmul.f32 %v818, %v241
    %828 = vrot.lane.b32.xlu0 %v820, 127
    %v829 = vpop.permute.xlu0 %828
    %832 = vrot.lane.b32.xlu0 %v821, 126
    %v833 = vpop.permute.xlu0 %832
    %836 = vrot.lane.b32.xlu0 %v822, 124
    %v837 = vpop.permute.xlu0 %836
    %840 = vrot.lane.b32.xlu0 %v818, 123
    %v841 = vpop.permute.xlu0 %840
    %844 = vrot.lane.b32.xlu0 %v823, 122
    %v845 = vpop.permute.xlu0 %844
    %848 = vrot.lane.b32.xlu0 %v824, 120
    %v849 = vpop.permute.xlu0 %848
    %852 = vrot.lane.b32.xlu0 %v825, 119
    %v853 = vpop.permute.xlu0 %852
    %856 = vrot.lane.b32.xlu0 %v826, 118
    %v857 = vpop.permute.xlu0 %856
    %v859 = vld [vmem:[#allocation2 + $0x60] sm:$0xff]
    %v860 = vld [vmem:[#allocation2 + $0x70] sm:$0xff]
    %v862 = vsel %vm465, %v859, 0
    %v865 = vsel %vm465, %v860, 0
    %867 = vmatprep.subr.mxu0 0.0
    %868 = vmatpush1.msra.mxu0 0.0
    %869 = vmatprep.subr.mxu0 0.0
    %870 = vmatpush1.msra.mxu0 0.0
    %871 = vmatprep.subr.mxu0 0.0
    %872 = vmatpush1.msra.mxu0 0.0
    %873 = vmatprep.subr.mxu0 0.0
    %874 = vmatpush1.msra.mxu0 0.0
    %875 = vmatprep.subr.mxu0 0.0
    %876 = vmatpush1.msra.mxu0 0.0
    %877 = vmatprep.subr.mxu0 0.0
    %878 = vmatpush1.msra.mxu0 0.0
    %879 = vmatprep.subr.mxu0 0.0
    %880 = vmatpush1.msra.mxu0 0.0
    %881 = vmatprep.subr.mxu0 0.0
    %882 = vmatpush1.msra.mxu0 %v857
    %883 = vmatprep.subr.mxu0 0.0
    %884 = vmatpush1.msra.mxu0 %v853
    %885 = vmatprep.subr.mxu0 0.0
    %886 = vmatpush1.msra.mxu0 %v849
    %887 = vmatprep.subr.mxu0 0.0
    %888 = vmatpush1.msra.mxu0 %v845
    %889 = vmatprep.subr.mxu0 0.0
    %890 = vmatpush1.msra.mxu0 %v841
    %891 = vmatprep.subr.mxu0 0.0
    %892 = vmatpush1.msra.mxu0 %v837
    %893 = vmatprep.subr.mxu0 0.0
    %894 = vmatpush1.msra.mxu0 %v833
    %895 = vmatprep.subr.mxu0 0.0
    %896 = vmatpush1.msra.mxu0 %v829
    %897 = vmatprep.subr.mxu0 0.0
    %898 = vmatpush1.msra.mxu0 %v819
    %899 = vmatprep.subr.mxu0 0.0
    %900 = vmatpush2.msra.mxu0 0.0
    %901 = vmatprep.subr.mxu0 0.0
    %902 = vmatpush2.msra.mxu0 0.0
    %903 = vmatprep.subr.mxu0 0.0
    %904 = vmatpush2.msra.mxu0 0.0
    %905 = vmatprep.subr.mxu0 0.0
    %906 = vmatpush2.msra.mxu0 0.0
    %907 = vmatprep.subr.mxu0 0.0
    %908 = vmatpush2.msra.mxu0 0.0
    %909 = vmatprep.subr.mxu0 0.0
    %910 = vmatpush2.msra.mxu0 0.0
    %911 = vmatprep.subr.mxu0 0.0
    %912 = vmatpush2.msra.mxu0 0.0
    %913 = vmatprep.subr.mxu0 0.0
    %914 = vmatpush2.msra.mxu0 0.0
    %915 = vmatprep.subr.mxu0 0.0
    %916 = vmatpush2.msra.mxu0 0.0
    %917 = vmatprep.subr.mxu0 0.0
    %918 = vmatpush2.msra.mxu0 0.0
    %919 = vmatprep.subr.mxu0 0.0
    %920 = vmatpush2.msra.mxu0 0.0
    %921 = vmatprep.subr.mxu0 0.0
    %922 = vmatpush2.msra.mxu0 0.0
    %923 = vmatprep.subr.mxu0 0.0
    %924 = vmatpush2.msra.mxu0 0.0
    %925 = vmatprep.subr.mxu0 0.0
    %926 = vmatpush2.msra.mxu0 0.0
    %927 = vmatprep.subr.mxu0 0.0
    %928 = vmatpush2.msra.mxu0 0.0
    %929 = vmatprep.subr.mxu0 0.0
    %930 = vmatpush2.msra.mxu0 0.0
    %931 = vmatprep.mubr.f32.mxu0 0.0
    %932 = vmatmul.mubr.f32.gmra.mxu0 %v862
    %v933 = vpop.f32.mrf.mxu0
    %v934 = vadd.f32 0.0, %v933
    %v935 = vpop.f32.mrf.mxu0
    %936 = vmatprep.mubr.f32.mxu0 0.0
    %937 = vmatmul.mubr.f32.gmra.mxu0 %v865
    %v938 = vpop.f32.mrf.mxu0
    %v939 = vadd.f32 0.0, %v938
    %v940 = vpop.f32.mrf.mxu0
    %941 = vdwg.mxu0
    %v942 = vsel %vm385, %v934, 0.0
    %943 = vadd.xlane.f32.xlu0 %v942
    %v944 = vpop.xlane.xlu0 %943
    %v945 = vsel %vm385, %v939, 0.0
    %946 = vadd.xlane.f32.xlu0 %v945
    %v947 = vpop.xlane.xlu0 %946
    %v948 = vmul.f32 %v934, %v934
    %v949 = vmul.f32 %v939, %v939
    %v950 = vsel %vm385, %v948, 0.0
    %951 = vadd.xlane.f32.xlu0 %v950
    %v952 = vpop.xlane.xlu0 %951
    %v953 = vsel %vm385, %v949, 0.0
    %954 = vadd.xlane.f32.xlu0 %v953
    %v955 = vpop.xlane.xlu0 %954
    %v956 = vmul.f32 %v944, 0.03125
    %v957 = vmul.f32 %v947, 0.03125
    %v958 = vmul.f32 %v952, 0.03125
    %v959 = vmul.f32 %v955, 0.03125
    %v960 = vmul.f32 %v956, %v956
    %v961 = vmul.f32 %v957, %v957
    %v962 = vsub.f32 %v958, %v960
    %v963 = vsub.f32 %v959, %v961
    %v964 = vadd.f32 %v962, 0.0001
    %v965 = vadd.f32 %v963, 0.0001
    %v966 = vrsqrt.pop %v964
    %v967 = vrsqrt.pop %v965
    %v968 = vld [vmem:[#allocation2 + $0x68] sm:$0xff]
    %v969 = vld [vmem:[#allocation2 + $0x78] sm:$0xff]
    %v970 = vmul.f32 %v966, %v968
    %v971 = vmul.f32 %v967, %v969
    %v972 = vsub.f32 %v934, %v956
    %v973 = vsub.f32 %v939, %v957
    %975 = vset.pattern.permute.xlu0 16
    %976 = vperm.xlu0 %975, %v970
    %v977 = vpop.permute.xlu0 %976
    %980 = vset.pattern.permute.xlu0 16
    %981 = vperm.xlu0 %980, %v971
    %v982 = vpop.permute.xlu0 %981
    %v984 = vmul.f32 %v972, %v977
    %v985 = vmul.f32 %v973, %v982
    %987 = vset.pattern.permute.xlu0 17
    %988 = vperm.xlu0 %987, %v968
    %v989 = vpop.permute.xlu0 %988
    %992 = vset.pattern.permute.xlu0 17
    %993 = vperm.xlu0 %992, %v969
    %v994 = vpop.permute.xlu0 %993
    %v996 = vadd.f32 %v984, %v989
    %v997 = vadd.f32 %v985, %v994
    %v998 = vadd.f32 %v996, %v613
    %v999 = vadd.f32 %v997, %v614
    %vm1000 = vcmp.gt.f32.partialorder %v998, 0.0
    %vm1001 = vcmp.gt.f32.partialorder %v999, 0.0
    %v1002 = vmul.f32 %v998, 1.442695
    %v1003 = vpow.pop %v1002
    %v1004 = vmul.f32 %v999, 1.442695
    %v1005 = vpow.pop %v1004
    %v1006 = vsub.f32 %v1003, 1.0
    %v1007 = vsub.f32 %v1005, 1.0
    %v1008 = vsel %vm1000, %v998, %v1006
    %v1009 = vsel %vm1001, %v999, %v1007
    %v1010 = vld [vmem:[#allocation4 + $0x40] sm:$0xff]
    %v1011 = vld [vmem:[#allocation4 + $0x60] sm:$0xff]
    %v1012 = vld [vmem:[#allocation4 + $0x80] sm:$0xff]
    %v1013 = vld [vmem:[#allocation4 + $0xa0] sm:$0xff]
    %v1015 = vsel %vm385, %v1008, 0
    %v1018 = vsel %vm385, %v1009, 0
    %1020 = vmatprep.subr.mxu0 0.0
    %1021 = vmatpush1.msra.mxu0 0.0
    %1022 = vmatprep.subr.mxu0 0.0
    %1023 = vmatpush1.msra.mxu0 0.0
    %1024 = vmatprep.subr.mxu0 0.0
    %1025 = vmatpush1.msra.mxu0 0.0
    %1026 = vmatprep.subr.mxu0 0.0
    %1027 = vmatpush1.msra.mxu0 0.0
    %1028 = vmatprep.subr.mxu0 0.0
    %1029 = vmatpush1.msra.mxu0 0.0
    %1030 = vmatprep.subr.mxu0 0.0
    %1031 = vmatpush1.msra.mxu0 0.0
    %1032 = vmatprep.subr.mxu0 0.0
    %1033 = vmatpush1.msra.mxu0 0.0
    %1034 = vmatprep.subr.mxu0 0.0
    %1035 = vmatpush1.msra.mxu0 0.0
    %1036 = vmatprep.subr.mxu0 0.0
    %1037 = vmatpush1.msra.mxu0 0.0
    %1038 = vmatprep.subr.mxu0 0.0
    %1039 = vmatpush1.msra.mxu0 0.0
    %1040 = vmatprep.subr.mxu0 0.0
    %1041 = vmatpush1.msra.mxu0 0.0
    %1042 = vmatprep.subr.mxu0 0.0
    %1043 = vmatpush1.msra.mxu0 0.0
    %1044 = vmatprep.subr.mxu0 0.0
    %1045 = vmatpush1.msra.mxu0 %v1013
    %1046 = vmatprep.subr.mxu0 0.0
    %1047 = vmatpush1.msra.mxu0 %v1012
    %1048 = vmatprep.subr.mxu0 0.0
    %1049 = vmatpush1.msra.mxu0 %v1011
    %1050 = vmatprep.subr.mxu0 0.0
    %1051 = vmatpush1.msra.mxu0 %v1010
    %1052 = vmatprep.subr.mxu0 0.0
    %1053 = vmatpush2.msra.mxu0 0.0
    %1054 = vmatprep.subr.mxu0 0.0
    %1055 = vmatpush2.msra.mxu0 0.0
    %1056 = vmatprep.subr.mxu0 0.0
    %1057 = vmatpush2.msra.mxu0 0.0
    %1058 = vmatprep.subr.mxu0 0.0
    %1059 = vmatpush2.msra.mxu0 0.0
    %1060 = vmatprep.subr.mxu0 0.0
    %1061 = vmatpush2.msra.mxu0 0.0
    %1062 = vmatprep.subr.mxu0 0.0
    %1063 = vmatpush2.msra.mxu0 0.0
    %1064 = vmatprep.subr.mxu0 0.0
    %1065 = vmatpush2.msra.mxu0 0.0
    %1066 = vmatprep.subr.mxu0 0.0
    %1067 = vmatpush2.msra.mxu0 0.0
    %1068 = vmatprep.subr.mxu0 0.0
    %1069 = vmatpush2.msra.mxu0 0.0
    %1070 = vmatprep.subr.mxu0 0.0
    %1071 = vmatpush2.msra.mxu0 0.0
    %1072 = vmatprep.subr.mxu0 0.0
    %1073 = vmatpush2.msra.mxu0 0.0
    %1074 = vmatprep.subr.mxu0 0.0
    %1075 = vmatpush2.msra.mxu0 0.0
    %1076 = vmatprep.subr.mxu0 0.0
    %1077 = vmatpush2.msra.mxu0 0.0
    %1078 = vmatprep.subr.mxu0 0.0
    %1079 = vmatpush2.msra.mxu0 0.0
    %1080 = vmatprep.subr.mxu0 0.0
    %1081 = vmatpush2.msra.mxu0 0.0
    %1082 = vmatprep.subr.mxu0 0.0
    %1083 = vmatpush2.msra.mxu0 0.0
    %1084 = vmatprep.mubr.f32.mxu0 0.0
    %1085 = vmatmul.mubr.f32.gmra.mxu0 %v1015
    %v1086 = vpop.f32.mrf.mxu0
    %v1087 = vadd.f32 0.0, %v1086
    %v1088 = vpop.f32.mrf.mxu0
    %1089 = vmatprep.mubr.f32.mxu0 0.0
    %1090 = vmatmul.mubr.f32.gmra.mxu0 %v1018
    %v1091 = vpop.f32.mrf.mxu0
    %v1092 = vadd.f32 0.0, %v1091
    %v1093 = vpop.f32.mrf.mxu0
    %1094 = vdwg.mxu0
    %1097 = vrot.lane.b32.xlu0 %v1087, 9
    %v1098 = vpop.permute.xlu0 %1097
    %1099 = vrot.lane.b32.xlu0 %v1092, 9
    %v1100 = vpop.permute.xlu0 %1099
    %vm1103 = vcmask 72704
    %v1104 = vsel %vm1103, 0.0, %v1098
    %v1105 = vsel %vm1103, 0.0, %v1100
    %v1106 = vsel %vm1103, %v1098, 0.0
    %v1107 = vsel %vm1103, %v1100, 0.0
    %v1108 = vld [vmem:[#allocation4 + $0xc0] sm:$0xff]
    %v1109 = vld [vmem:[#allocation4 + $0xe0] sm:$0x1]
    %v1110 = vlaneseq
    %v1111 = vshrl.u32 %v1110, 7
    %v1112 = vsub.s32 0, %v1111
    %v1113 = vrot.slane %v1108, %v1112
    %v1114 = vmul.f32 %v1104, %v1113
    %v1115 = vmul.f32 %v1105, %v1113
    %v1116 = vlaneseq
    %v1117 = vshrl.u32 %v1116, 7
    %v1118 = vsub.s32 1, %v1117
    %v1119 = vrot.slane %v1108, %v1118
    %1121 = vrot.lane.b32.xlu0 %v1119, 1
    %v1122 = vpop.permute.xlu0 %1121
    %v1124 = vmul.f32 %v1104, %v1122
    %v1125 = vmul.f32 %v1106, %v1122
    %v1126 = vmul.f32 %v1105, %v1122
    %v1127 = vmul.f32 %v1107, %v1122
    %v1128 = vlaneseq
    %v1129 = vshrl.u32 %v1128, 7
    %v1130 = vsub.s32 2, %v1129
    %v1131 = vrot.slane %v1108, %v1130
    %1133 = vrot.lane.b32.xlu0 %v1131, 2
    %v1134 = vpop.permute.xlu0 %1133
    %v1136 = vmul.f32 %v1104, %v1134
    %v1137 = vmul.f32 %v1106, %v1134
    %v1138 = vmul.f32 %v1105, %v1134
    %v1139 = vmul.f32 %v1107, %v1134
    %v1140 = vlaneseq
    %v1141 = vshrl.u32 %v1140, 7
    %v1142 = vsub.s32 3, %v1141
    %v1143 = vrot.slane %v1108, %v1142
    %1145 = vrot.lane.b32.xlu0 %v1143, 8
    %v1146 = vpop.permute.xlu0 %1145
    %v1148 = vmul.f32 %v1104, %v1146
    %v1149 = vmul.f32 %v1106, %v1146
    %v1150 = vmul.f32 %v1105, %v1146
    %v1151 = vmul.f32 %v1107, %v1146
    %v1152 = vlaneseq
    %v1153 = vshrl.u32 %v1152, 7
    %v1154 = vsub.s32 5, %v1153
    %v1155 = vrot.slane %v1108, %v1154
    %1157 = vrot.lane.b32.xlu0 %v1155, 10
    %v1158 = vpop.permute.xlu0 %1157
    %v1160 = vmul.f32 %v1104, %v1158
    %v1161 = vmul.f32 %v1106, %v1158
    %v1162 = vmul.f32 %v1105, %v1158
    %v1163 = vmul.f32 %v1107, %v1158
    %v1164 = vlaneseq
    %v1165 = vshrl.u32 %v1164, 7
    %v1166 = vsub.s32 6, %v1165
    %v1167 = vrot.slane %v1108, %v1166
    %1169 = vrot.lane.b32.xlu0 %v1167, 16
    %v1170 = vpop.permute.xlu0 %1169
    %v1172 = vmul.f32 %v1104, %v1170
    %v1173 = vmul.f32 %v1106, %v1170
    %v1174 = vmul.f32 %v1105, %v1170
    %v1175 = vmul.f32 %v1107, %v1170
    %v1176 = vlaneseq
    %v1177 = vshrl.u32 %v1176, 7
    %v1178 = vsub.s32 7, %v1177
    %v1179 = vrot.slane %v1108, %v1178
    %1181 = vrot.lane.b32.xlu0 %v1179, 17
    %v1182 = vpop.permute.xlu0 %1181
    %v1184 = vmul.f32 %v1104, %v1182
    %v1185 = vmul.f32 %v1106, %v1182
    %v1186 = vmul.f32 %v1105, %v1182
    %v1187 = vmul.f32 %v1107, %v1182
    %v1188 = vlaneseq
    %v1189 = vshrl.u32 %v1188, 7
    %v1190 = vsub.s32 0, %v1189
    %v1191 = vrot.slane %v1109, %v1190
    %1193 = vrot.lane.b32.xlu0 %v1191, 18
    %v1194 = vpop.permute.xlu0 %1193
    %v1196 = vmul.f32 %v1104, %v1194
    %v1197 = vmul.f32 %v1106, %v1194
    %v1198 = vmul.f32 %v1105, %v1194
    %v1199 = vmul.f32 %v1107, %v1194
    %1204 = vrot.lane.b32.xlu0 %v1124, 127
    %v1205 = vpop.permute.xlu0 %1204
    %1206 = vrot.lane.b32.xlu0 %v1125, 127
    %v1207 = vpop.permute.xlu0 %1206
    %1208 = vrot.lane.b32.xlu0 %v1126, 127
    %v1209 = vpop.permute.xlu0 %1208
    %1210 = vrot.lane.b32.xlu0 %v1127, 127
    %v1211 = vpop.permute.xlu0 %1210
    %vm1212 = vcmask 1039360
    %v1213 = vsel %vm1212, %v1205, %v1207
    %v1214 = vsel %vm1212, %v1209, %v1211
    %1221 = vrot.lane.b32.xlu0 %v1136, 126
    %v1222 = vpop.permute.xlu0 %1221
    %1223 = vrot.lane.b32.xlu0 %v1137, 126
    %v1224 = vpop.permute.xlu0 %1223
    %1225 = vrot.lane.b32.xlu0 %v1138, 126
    %v1226 = vpop.permute.xlu0 %1225
    %1227 = vrot.lane.b32.xlu0 %v1139, 126
    %v1228 = vpop.permute.xlu0 %1227
    %vm1229 = vcmask 1031168
    %v1230 = vsel %vm1229, %v1222, %v1224
    %v1231 = vsel %vm1229, %v1226, %v1228
    %1238 = vrot.lane.b32.xlu0 %v1148, 120
    %v1239 = vpop.permute.xlu0 %1238
    %1240 = vrot.lane.b32.xlu0 %v1149, 120
    %v1241 = vpop.permute.xlu0 %1240
    %1242 = vrot.lane.b32.xlu0 %v1150, 120
    %v1243 = vpop.permute.xlu0 %1242
    %1244 = vrot.lane.b32.xlu0 %v1151, 120
    %v1245 = vpop.permute.xlu0 %1244
    %vm1246 = vcmask 982016
    %v1247 = vsel %vm1246, %v1239, %v1241
    %v1248 = vsel %vm1246, %v1243, %v1245
    %1255 = vrot.lane.b32.xlu0 %v1104, 119
    %v1256 = vpop.permute.xlu0 %1255
    %1257 = vrot.lane.b32.xlu0 %v1106, 119
    %v1258 = vpop.permute.xlu0 %1257
    %1259 = vrot.lane.b32.xlu0 %v1105, 119
    %v1260 = vpop.permute.xlu0 %1259
    %1261 = vrot.lane.b32.xlu0 %v1107, 119
    %v1262 = vpop.permute.xlu0 %1261
    %vm1263 = vcmask 973824
    %v1264 = vsel %vm1263, %v1256, %v1258
    %v1265 = vsel %vm1263, %v1260, %v1262
    %1272 = vrot.lane.b32.xlu0 %v1160, 118
    %v1273 = vpop.permute.xlu0 %1272
    %1274 = vrot.lane.b32.xlu0 %v1161, 118
    %v1275 = vpop.permute.xlu0 %1274
    %1276 = vrot.lane.b32.xlu0 %v1162, 118
    %v1277 = vpop.permute.xlu0 %1276
    %1278 = vrot.lane.b32.xlu0 %v1163, 118
    %v1279 = vpop.permute.xlu0 %1278
    %vm1280 = vcmask 965632
    %v1281 = vsel %vm1280, %v1273, %v1275
    %v1282 = vsel %vm1280, %v1277, %v1279
    %1289 = vrot.lane.b32.xlu0 %v1172, 112
    %v1290 = vpop.permute.xlu0 %1289
    %1291 = vrot.lane.b32.xlu0 %v1173, 112
    %v1292 = vpop.permute.xlu0 %1291
    %1293 = vrot.lane.b32.xlu0 %v1174, 112
    %v1294 = vpop.permute.xlu0 %1293
    %1295 = vrot.lane.b32.xlu0 %v1175, 112
    %v1296 = vpop.permute.xlu0 %1295
    %vm1297 = vcmask 916480
    %v1298 = vsel %vm1297, %v1290, %v1292
    %v1299 = vsel %vm1297, %v1294, %v1296
    %1306 = vrot.lane.b32.xlu0 %v1184, 111
    %v1307 = vpop.permute.xlu0 %1306
    %1308 = vrot.lane.b32.xlu0 %v1185, 111
    %v1309 = vpop.permute.xlu0 %1308
    %1310 = vrot.lane.b32.xlu0 %v1186, 111
    %v1311 = vpop.permute.xlu0 %1310
    %1312 = vrot.lane.b32.xlu0 %v1187, 111
    %v1313 = vpop.permute.xlu0 %1312
    %vm1314 = vcmask 908288
    %v1315 = vsel %vm1314, %v1307, %v1309
    %v1316 = vsel %vm1314, %v1311, %v1313
    %1323 = vrot.lane.b32.xlu0 %v1196, 110
    %v1324 = vpop.permute.xlu0 %1323
    %1325 = vrot.lane.b32.xlu0 %v1197, 110
    %v1326 = vpop.permute.xlu0 %1325
    %1327 = vrot.lane.b32.xlu0 %v1198, 110
    %v1328 = vpop.permute.xlu0 %1327
    %1329 = vrot.lane.b32.xlu0 %v1199, 110
    %v1330 = vpop.permute.xlu0 %1329
    %vm1331 = vcmask 900096
    %v1332 = vsel %vm1331, %v1324, %v1326
    %v1333 = vsel %vm1331, %v1328, %v1330
    %v1336 = vld [vmem:[#allocation2 + $0x80] sm:$0xff]
    %v1337 = vld [vmem:[#allocation2 + $0x88] sm:$0xff]
    %v1338 = vld [vmem:[#allocation2 + $0x90] sm:$0xff]
    %v1339 = vld [vmem:[#allocation2 + $0x98] sm:$0xff]
    %1341 = vset.pattern.permute.xlu0 16
    %1342 = vperm.xlu0 %1341, %v1337
    %v1343 = vpop.permute.xlu0 %1342
    %1346 = vset.pattern.permute.xlu0 16
    %1347 = vperm.xlu0 %1346, %v1339
    %v1348 = vpop.permute.xlu0 %1347
    %v1350 = vsel %vm311, %v1337, 0
    %v1352 = vsel %vm311, %v1339, 0
    %1354 = vmatprep.subr.mxu0 0.0
    %1355 = vmatpush1.msra.mxu0 %v1316
    %1356 = vmatprep.subr.mxu0 0.0
    %1357 = vmatpush1.msra.mxu0 %v1315
    %1358 = vmatprep.subr.mxu0 0.0
    %1359 = vmatpush1.msra.mxu0 %v1299
    %1360 = vmatprep.subr.mxu0 0.0
    %1361 = vmatpush1.msra.mxu0 %v1298
    %1362 = vmatprep.subr.mxu0 0.0
    %1363 = vmatpush1.msra.mxu0 %v1282
    %1364 = vmatprep.subr.mxu0 0.0
    %1365 = vmatpush1.msra.mxu0 %v1281
    %1366 = vmatprep.subr.mxu0 0.0
    %1367 = vmatpush1.msra.mxu0 %v1265
    %1368 = vmatprep.subr.mxu0 0.0
    %1369 = vmatpush1.msra.mxu0 %v1264
    %1370 = vmatprep.subr.mxu0 0.0
    %1371 = vmatpush1.msra.mxu0 %v1248
    %1372 = vmatprep.subr.mxu0 0.0
    %1373 = vmatpush1.msra.mxu0 %v1247
    %1374 = vmatprep.subr.mxu0 0.0
    %1375 = vmatpush1.msra.mxu0 %v1231
    %1376 = vmatprep.subr.mxu0 0.0
    %1377 = vmatpush1.msra.mxu0 %v1230
    %1378 = vmatprep.subr.mxu0 0.0
    %1379 = vmatpush1.msra.mxu0 %v1214
    %1380 = vmatprep.subr.mxu0 0.0
    %1381 = vmatpush1.msra.mxu0 %v1213
    %1382 = vmatprep.subr.mxu0 0.0
    %1383 = vmatpush1.msra.mxu0 %v1115
    %1384 = vmatprep.subr.mxu0 0.0
    %1385 = vmatpush1.msra.mxu0 %v1114
    %1386 = vmatprep.subr.mxu0 0.0
    %1387 = vmatpush2.msra.mxu0 0.0
    %1388 = vmatprep.subr.mxu0 0.0
    %1389 = vmatpush2.msra.mxu0 0.0
    %1390 = vmatprep.subr.mxu0 0.0
    %1391 = vmatpush2.msra.mxu0 0.0
    %1392 = vmatprep.subr.mxu0 0.0
    %1393 = vmatpush2.msra.mxu0 0.0
    %1394 = vmatprep.subr.mxu0 0.0
    %1395 = vmatpush2.msra.mxu0 0.0
    %1396 = vmatprep.subr.mxu0 0.0
    %1397 = vmatpush2.msra.mxu0 0.0
    %1398 = vmatprep.subr.mxu0 0.0
    %1399 = vmatpush2.msra.mxu0 0.0
    %1400 = vmatprep.subr.mxu0 0.0
    %1401 = vmatpush2.msra.mxu0 0.0
    %1402 = vmatprep.subr.mxu0 0.0
    %1403 = vmatpush2.msra.mxu0 0.0
    %1404 = vmatprep.subr.mxu0 0.0
    %1405 = vmatpush2.msra.mxu0 0.0
    %1406 = vmatprep.subr.mxu0 0.0
    %1407 = vmatpush2.msra.mxu0 0.0
    %1408 = vmatprep.subr.mxu0 0.0
    %1409 = vmatpush2.msra.mxu0 0.0
    %1410 = vmatprep.subr.mxu0 0.0
    %1411 = vmatpush2.msra.mxu0 0.0
    %1412 = vmatprep.subr.mxu0 0.0
    %1413 = vmatpush2.msra.mxu0 0.0
    %1414 = vmatprep.subr.mxu0 0.0
    %1415 = vmatpush2.msra.mxu0 %v1333
    %1416 = vmatprep.subr.mxu0 0.0
    %1417 = vmatpush2.msra.mxu0 %v1332
    %1418 = vmatprep.mubr.f32.mxu0 %v1350
    %1419 = vmatmul.mubr.f32.gmra.mxu0 %v1336
    %v1420 = vpop.f32.mrf.mxu0
    %v1421 = vadd.f32 %v1343, %v1420
    %v1422 = vpop.f32.mrf.mxu0
    %1423 = vmatprep.mubr.f32.mxu0 %v1352
    %1424 = vmatmul.mubr.f32.gmra.mxu0 %v1338
    %v1425 = vpop.f32.mrf.mxu0
    %v1426 = vadd.f32 %v1348, %v1425
    %v1427 = vpop.f32.mrf.mxu0
    %1428 = vdwg.mxu0
    %v1429 = vld [vmem:[#allocation2 + $0xa0] sm:$0xff]
    %v1430 = vld [vmem:[#allocation2 + $0xa8] sm:$0xff]
    %v1432 = vsel %vm311, %v1430, 0
    %1434 = vmatprep.subr.mxu0 0.0
    %1435 = vmatpush1.msra.mxu0 %v1316
    %1436 = vmatprep.subr.mxu0 0.0
    %1437 = vmatpush1.msra.mxu0 %v1315
    %1438 = vmatprep.subr.mxu0 0.0
    %1439 = vmatpush1.msra.mxu0 %v1299
    %1440 = vmatprep.subr.mxu0 0.0
    %1441 = vmatpush1.msra.mxu0 %v1298
    %1442 = vmatprep.subr.mxu0 0.0
    %1443 = vmatpush1.msra.mxu0 %v1282
    %1444 = vmatprep.subr.mxu0 0.0
    %1445 = vmatpush1.msra.mxu0 %v1281
    %1446 = vmatprep.subr.mxu0 0.0
    %1447 = vmatpush1.msra.mxu0 %v1265
    %1448 = vmatprep.subr.mxu0 0.0
    %1449 = vmatpush1.msra.mxu0 %v1264
    %1450 = vmatprep.subr.mxu0 0.0
    %1451 = vmatpush1.msra.mxu0 %v1248
    %1452 = vmatprep.subr.mxu0 0.0
    %1453 = vmatpush1.msra.mxu0 %v1247
    %1454 = vmatprep.subr.mxu0 0.0
    %1455 = vmatpush1.msra.mxu0 %v1231
    %1456 = vmatprep.subr.mxu0 0.0
    %1457 = vmatpush1.msra.mxu0 %v1230
    %1458 = vmatprep.subr.mxu0 0.0
    %1459 = vmatpush1.msra.mxu0 %v1214
    %1460 = vmatprep.subr.mxu0 0.0
    %1461 = vmatpush1.msra.mxu0 %v1213
    %1462 = vmatprep.subr.mxu0 0.0
    %1463 = vmatpush1.msra.mxu0 %v1115
    %1464 = vmatprep.subr.mxu0 0.0
    %1465 = vmatpush1.msra.mxu0 %v1114
    %1466 = vmatprep.subr.mxu0 0.0
    %1467 = vmatpush2.msra.mxu0 0.0
    %1468 = vmatprep.subr.mxu0 0.0
    %1469 = vmatpush2.msra.mxu0 0.0
    %1470 = vmatprep.subr.mxu0 0.0
    %1471 = vmatpush2.msra.mxu0 0.0
    %1472 = vmatprep.subr.mxu0 0.0
    %1473 = vmatpush2.msra.mxu0 0.0
    %1474 = vmatprep.subr.mxu0 0.0
    %1475 = vmatpush2.msra.mxu0 0.0
    %1476 = vmatprep.subr.mxu0 0.0
    %1477 = vmatpush2.msra.mxu0 0.0
    %1478 = vmatprep.subr.mxu0 0.0
    %1479 = vmatpush2.msra.mxu0 0.0
    %1480 = vmatprep.subr.mxu0 0.0
    %1481 = vmatpush2.msra.mxu0 0.0
    %1482 = vmatprep.subr.mxu0 0.0
    %1483 = vmatpush2.msra.mxu0 0.0
    %1484 = vmatprep.subr.mxu0 0.0
    %1485 = vmatpush2.msra.mxu0 0.0
    %1486 = vmatprep.subr.mxu0 0.0
    %1487 = vmatpush2.msra.mxu0 0.0
    %1488 = vmatprep.subr.mxu0 0.0
    %1489 = vmatpush2.msra.mxu0 0.0
    %1490 = vmatprep.subr.mxu0 0.0
    %1491 = vmatpush2.msra.mxu0 0.0
    %1492 = vmatprep.subr.mxu0 0.0
    %1493 = vmatpush2.msra.mxu0 0.0
    %1494 = vmatprep.subr.mxu0 0.0
    %1495 = vmatpush2.msra.mxu0 %v1333
    %1496 = vmatprep.subr.mxu0 0.0
    %1497 = vmatpush2.msra.mxu0 %v1332
    %1498 = vmatprep.mubr.f32.mxu0 %v1432
    %1499 = vmatmul.mubr.f32.gmra.mxu0 %v1429
    %v1500 = vpop.f32.mrf.mxu0
    %v1501 = vadd.f32 0.0, %v1500
    %v1502 = vpop.f32.mrf.mxu0
    %1503 = vdwg.mxu0
    %1504 = vadd.xlane.f32.xlu0 %v1501
    %v1505 = vpop.xlane.xlu0 %1504
    %v1506 = vmul.f32 %v1501, %v1501
    %1507 = vadd.xlane.f32.xlu0 %v1506
    %v1508 = vpop.xlane.xlu0 %1507
    %v1509 = vmul.f32 %v1505, 0.0078125
    %v1510 = vmul.f32 %v1508, 0.0078125
    %v1511 = vmul.f32 %v1509, %v1509
    %v1512 = vsub.f32 %v1510, %v1511
    %v1513 = vadd.f32 %v1512, 0.0001
    %v1514 = vrsqrt.pop %v1513
    %v1515 = vmul.f32 %v1514, %v1430
    %v1516 = vsub.f32 %v1501, %v1509
    %1518 = vset.pattern.permute.xlu0 16
    %1519 = vperm.xlu0 %1518, %v1515
    %v1520 = vpop.permute.xlu0 %1519
    %v1522 = vmul.f32 %v1516, %v1520
    %1523 = vset.pattern.permute.xlu0 17
    %1524 = vperm.xlu0 %1523, %v1430
    %v1525 = vpop.permute.xlu0 %1524
    %v1527 = vadd.f32 %v1522, %v1525
    %vm1528 = vcmp.gt.f32.partialorder %v1527, 0.0
    %v1529 = vmul.f32 %v1527, 1.442695
    %v1530 = vpow.pop %v1529
    %v1531 = vsub.f32 %v1530, 1.0
    %v1532 = vsel %vm1528, %v1527, %v1531
    %1534 = vrot.lane.b32.xlu0 %v1532, 9
    %v1535 = vpop.permute.xlu0 %1534
    %v1537 = vsel %vm1103, 0.0, %v1535
    %v1538 = vsel %vm1103, %v1535, 0.0
    %v1539 = vmul.f32 %v1537, %v1113
    %v1540 = vmul.f32 %v1537, %v1122
    %v1541 = vmul.f32 %v1538, %v1122
    %v1542 = vmul.f32 %v1537, %v1134
    %v1543 = vmul.f32 %v1538, %v1134
    %v1544 = vmul.f32 %v1537, %v1146
    %v1545 = vmul.f32 %v1538, %v1146
    %v1546 = vmul.f32 %v1537, %v1158
    %v1547 = vmul.f32 %v1538, %v1158
    %v1548 = vmul.f32 %v1537, %v1170
    %v1549 = vmul.f32 %v1538, %v1170
    %v1550 = vmul.f32 %v1537, %v1182
    %v1551 = vmul.f32 %v1538, %v1182
    %v1552 = vmul.f32 %v1537, %v1194
    %v1553 = vmul.f32 %v1538, %v1194
    %1556 = vrot.lane.b32.xlu0 %v1540, 127
    %v1557 = vpop.permute.xlu0 %1556
    %1558 = vrot.lane.b32.xlu0 %v1541, 127
    %v1559 = vpop.permute.xlu0 %1558
    %v1560 = vsel %vm1212, %v1557, %v1559
    %1564 = vrot.lane.b32.xlu0 %v1542, 126
    %v1565 = vpop.permute.xlu0 %1564
    %1566 = vrot.lane.b32.xlu0 %v1543, 126
    %v1567 = vpop.permute.xlu0 %1566
    %v1568 = vsel %vm1229, %v1565, %v1567
    %1572 = vrot.lane.b32.xlu0 %v1544, 120
    %v1573 = vpop.permute.xlu0 %1572
    %1574 = vrot.lane.b32.xlu0 %v1545, 120
    %v1575 = vpop.permute.xlu0 %1574
    %v1576 = vsel %vm1246, %v1573, %v1575
    %1580 = vrot.lane.b32.xlu0 %v1537, 119
    %v1581 = vpop.permute.xlu0 %1580
    %1582 = vrot.lane.b32.xlu0 %v1538, 119
    %v1583 = vpop.permute.xlu0 %1582
    %v1584 = vsel %vm1263, %v1581, %v1583
    %1588 = vrot.lane.b32.xlu0 %v1546, 118
    %v1589 = vpop.permute.xlu0 %1588
    %1590 = vrot.lane.b32.xlu0 %v1547, 118
    %v1591 = vpop.permute.xlu0 %1590
    %v1592 = vsel %vm1280, %v1589, %v1591
    %1596 = vrot.lane.b32.xlu0 %v1548, 112
    %v1597 = vpop.permute.xlu0 %1596
    %1598 = vrot.lane.b32.xlu0 %v1549, 112
    %v1599 = vpop.permute.xlu0 %1598
    %v1600 = vsel %vm1297, %v1597, %v1599
    %1604 = vrot.lane.b32.xlu0 %v1550, 111
    %v1605 = vpop.permute.xlu0 %1604
    %1606 = vrot.lane.b32.xlu0 %v1551, 111
    %v1607 = vpop.permute.xlu0 %1606
    %v1608 = vsel %vm1314, %v1605, %v1607
    %1612 = vrot.lane.b32.xlu0 %v1552, 110
    %v1613 = vpop.permute.xlu0 %1612
    %1614 = vrot.lane.b32.xlu0 %v1553, 110
    %v1615 = vpop.permute.xlu0 %1614
    %v1616 = vsel %vm1331, %v1613, %v1615
    %v1618 = vld [vmem:[#allocation2 + $0xb0] sm:$0xff]
    %v1619 = vld [vmem:[#allocation2 + $0xc0] sm:$0xff]
    %v1621 = vsel %vm465, %v1618, 0
    %v1624 = vsel %vm465, %v1619, 0
    %1626 = vmatprep.subr.mxu0 0.0
    %1627 = vmatpush1.msra.mxu0 0.0
    %1628 = vmatprep.subr.mxu0 0.0
    %1629 = vmatpush1.msra.mxu0 0.0
    %1630 = vmatprep.subr.mxu0 0.0
    %1631 = vmatpush1.msra.mxu0 0.0
    %1632 = vmatprep.subr.mxu0 0.0
    %1633 = vmatpush1.msra.mxu0 0.0
    %1634 = vmatprep.subr.mxu0 0.0
    %1635 = vmatpush1.msra.mxu0 0.0
    %1636 = vmatprep.subr.mxu0 0.0
    %1637 = vmatpush1.msra.mxu0 0.0
    %1638 = vmatprep.subr.mxu0 0.0
    %1639 = vmatpush1.msra.mxu0 0.0
    %1640 = vmatprep.subr.mxu0 0.0
    %1641 = vmatpush1.msra.mxu0 %v1616
    %1642 = vmatprep.subr.mxu0 0.0
    %1643 = vmatpush1.msra.mxu0 %v1608
    %1644 = vmatprep.subr.mxu0 0.0
    %1645 = vmatpush1.msra.mxu0 %v1600
    %1646 = vmatprep.subr.mxu0 0.0
    %1647 = vmatpush1.msra.mxu0 %v1592
    %1648 = vmatprep.subr.mxu0 0.0
    %1649 = vmatpush1.msra.mxu0 %v1584
    %1650 = vmatprep.subr.mxu0 0.0
    %1651 = vmatpush1.msra.mxu0 %v1576
    %1652 = vmatprep.subr.mxu0 0.0
    %1653 = vmatpush1.msra.mxu0 %v1568
    %1654 = vmatprep.subr.mxu0 0.0
    %1655 = vmatpush1.msra.mxu0 %v1560
    %1656 = vmatprep.subr.mxu0 0.0
    %1657 = vmatpush1.msra.mxu0 %v1539
    %1658 = vmatprep.subr.mxu0 0.0
    %1659 = vmatpush2.msra.mxu0 0.0
    %1660 = vmatprep.subr.mxu0 0.0
    %1661 = vmatpush2.msra.mxu0 0.0
    %1662 = vmatprep.subr.mxu0 0.0
    %1663 = vmatpush2.msra.mxu0 0.0
    %1664 = vmatprep.subr.mxu0 0.0
    %1665 = vmatpush2.msra.mxu0 0.0
    %1666 = vmatprep.subr.mxu0 0.0
    %1667 = vmatpush2.msra.mxu0 0.0
    %1668 = vmatprep.subr.mxu0 0.0
    %1669 = vmatpush2.msra.mxu0 0.0
    %1670 = vmatprep.subr.mxu0 0.0
    %1671 = vmatpush2.msra.mxu0 0.0
    %1672 = vmatprep.subr.mxu0 0.0
    %1673 = vmatpush2.msra.mxu0 0.0
    %1674 = vmatprep.subr.mxu0 0.0
    %1675 = vmatpush2.msra.mxu0 0.0
    %1676 = vmatprep.subr.mxu0 0.0
    %1677 = vmatpush2.msra.mxu0 0.0
    %1678 = vmatprep.subr.mxu0 0.0
    %1679 = vmatpush2.msra.mxu0 0.0
    %1680 = vmatprep.subr.mxu0 0.0
    %1681 = vmatpush2.msra.mxu0 0.0
    %1682 = vmatprep.subr.mxu0 0.0
    %1683 = vmatpush2.msra.mxu0 0.0
    %1684 = vmatprep.subr.mxu0 0.0
    %1685 = vmatpush2.msra.mxu0 0.0
    %1686 = vmatprep.subr.mxu0 0.0
    %1687 = vmatpush2.msra.mxu0 0.0
    %1688 = vmatprep.subr.mxu0 0.0
    %1689 = vmatpush2.msra.mxu0 0.0
    %1690 = vmatprep.mubr.f32.mxu0 0.0
    %1691 = vmatmul.mubr.f32.gmra.mxu0 %v1621
    %v1692 = vpop.f32.mrf.mxu0
    %v1693 = vadd.f32 0.0, %v1692
    %v1694 = vpop.f32.mrf.mxu0
    %1695 = vmatprep.mubr.f32.mxu0 0.0
    %1696 = vmatmul.mubr.f32.gmra.mxu0 %v1624
    %v1697 = vpop.f32.mrf.mxu0
    %v1698 = vadd.f32 0.0, %v1697
    %v1699 = vpop.f32.mrf.mxu0
    %1700 = vdwg.mxu0
    %1701 = vadd.xlane.f32.xlu0 %v1693
    %v1702 = vpop.xlane.xlu0 %1701
    %1703 = vadd.xlane.f32.xlu0 %v1698
    %v1704 = vpop.xlane.xlu0 %1703
    %v1705 = vmul.f32 %v1693, %v1693
    %v1706 = vmul.f32 %v1698, %v1698
    %1707 = vadd.xlane.f32.xlu0 %v1705
    %v1708 = vpop.xlane.xlu0 %1707
    %1709 = vadd.xlane.f32.xlu0 %v1706
    %v1710 = vpop.xlane.xlu0 %1709
    %v1711 = vmul.f32 %v1702, 0.0078125
    %v1712 = vmul.f32 %v1704, 0.0078125
    %v1713 = vmul.f32 %v1708, 0.0078125
    %v1714 = vmul.f32 %v1710, 0.0078125
    %v1715 = vmul.f32 %v1711, %v1711
    %v1716 = vmul.f32 %v1712, %v1712
    %v1717 = vsub.f32 %v1713, %v1715
    %v1718 = vsub.f32 %v1714, %v1716
    %v1719 = vadd.f32 %v1717, 0.0001
    %v1720 = vadd.f32 %v1718, 0.0001
    %v1721 = vrsqrt.pop %v1719
    %v1722 = vrsqrt.pop %v1720
    %v1723 = vld [vmem:[#allocation2 + $0xb8] sm:$0xff]
    %v1724 = vld [vmem:[#allocation2 + $0xc8] sm:$0xff]
    %v1725 = vmul.f32 %v1721, %v1723
    %v1726 = vmul.f32 %v1722, %v1724
    %v1727 = vsub.f32 %v1693, %v1711
    %v1728 = vsub.f32 %v1698, %v1712
    %1730 = vset.pattern.permute.xlu0 16
    %1731 = vperm.xlu0 %1730, %v1725
    %v1732 = vpop.permute.xlu0 %1731
    %1735 = vset.pattern.permute.xlu0 16
    %1736 = vperm.xlu0 %1735, %v1726
    %v1737 = vpop.permute.xlu0 %1736
    %v1739 = vmul.f32 %v1727, %v1732
    %v1740 = vmul.f32 %v1728, %v1737
    %1742 = vset.pattern.permute.xlu0 17
    %1743 = vperm.xlu0 %1742, %v1723
    %v1744 = vpop.permute.xlu0 %1743
    %1747 = vset.pattern.permute.xlu0 17
    %1748 = vperm.xlu0 %1747, %v1724
    %v1749 = vpop.permute.xlu0 %1748
    %v1751 = vadd.f32 %v1739, %v1744
    %v1752 = vadd.f32 %v1740, %v1749
    %v1753 = vadd.f32 %v1751, %v1421
    %v1754 = vadd.f32 %v1752, %v1426
    %vm1755 = vcmp.gt.f32.partialorder %v1753, 0.0
    %vm1756 = vcmp.gt.f32.partialorder %v1754, 0.0
    %v1757 = vmul.f32 %v1753, 1.442695
    %v1758 = vpow.pop %v1757
    %v1759 = vmul.f32 %v1754, 1.442695
    %v1760 = vpow.pop %v1759
    %v1761 = vsub.f32 %v1758, 1.0
    %v1762 = vsub.f32 %v1760, 1.0
    %v1763 = vsel %vm1755, %v1753, %v1761
    %v1764 = vsel %vm1756, %v1754, %v1762
    %v1765 = vld [vmem:[#allocation4 + $0x100] sm:$0xff]
    %v1766 = vld [vmem:[#allocation4 + $0x108] sm:$0xff]
    %v1767 = vld [vmem:[#allocation4 + $0x110] sm:$0xff]
    %v1768 = vld [vmem:[#allocation4 + $0x118] sm:$0xff]
    %v1769 = vld [vmem:[#allocation4 + $0x120] sm:$0xff]
    %v1770 = vld [vmem:[#allocation4 + $0x128] sm:$0xff]
    %v1771 = vld [vmem:[#allocation4 + $0x130] sm:$0xff]
    %v1772 = vld [vmem:[#allocation4 + $0x138] sm:$0xff]
    %v1773 = vld [vmem:[#allocation4 + $0x140] sm:$0xff]
    %v1774 = vld [vmem:[#allocation4 + $0x148] sm:$0xff]
    %v1775 = vld [vmem:[#allocation4 + $0x150] sm:$0xff]
    %v1776 = vld [vmem:[#allocation4 + $0x158] sm:$0xff]
    %v1777 = vld [vmem:[#allocation4 + $0x160] sm:$0xff]
    %v1778 = vld [vmem:[#allocation4 + $0x168] sm:$0xff]
    %v1779 = vld [vmem:[#allocation4 + $0x170] sm:$0xff]
    %v1780 = vld [vmem:[#allocation4 + $0x178] sm:$0xff]
    %v1781 = vld [vmem:[#allocation4 + $0x180] sm:$0xff]
    %v1782 = vld [vmem:[#allocation4 + $0x188] sm:$0xff]
    %v1783 = vld [vmem:[#allocation4 + $0x190] sm:$0xff]
    %v1784 = vld [vmem:[#allocation4 + $0x198] sm:$0xff]
    %v1785 = vld [vmem:[#allocation4 + $0x1a0] sm:$0xff]
    %v1786 = vld [vmem:[#allocation4 + $0x1a8] sm:$0xff]
    %v1787 = vld [vmem:[#allocation4 + $0x1b0] sm:$0xff]
    %v1788 = vld [vmem:[#allocation4 + $0x1b8] sm:$0xff]
    %v1789 = vld [vmem:[#allocation4 + $0x1c0] sm:$0xff]
    %v1790 = vld [vmem:[#allocation4 + $0x1c8] sm:$0xff]
    %v1791 = vld [vmem:[#allocation4 + $0x1d0] sm:$0xff]
    %v1792 = vld [vmem:[#allocation4 + $0x1d8] sm:$0xff]
    %v1793 = vld [vmem:[#allocation4 + $0x1e0] sm:$0xff]
    %v1794 = vld [vmem:[#allocation4 + $0x1e8] sm:$0xff]
    %v1795 = vld [vmem:[#allocation4 + $0x1f0] sm:$0xff]
    %v1796 = vld [vmem:[#allocation4 + $0x1f8] sm:$0xff]
    %v1797 = vld [vmem:[#allocation4 + $0x200] sm:$0xff]
    %v1798 = vld [vmem:[#allocation4 + $0x208] sm:$0xff]
    %v1799 = vld [vmem:[#allocation4 + $0x210] sm:$0xff]
    %v1800 = vld [vmem:[#allocation4 + $0x218] sm:$0xff]
    %v1801 = vld [vmem:[#allocation4 + $0x220] sm:$0xff]
    %v1802 = vld [vmem:[#allocation4 + $0x228] sm:$0xff]
    %v1803 = vld [vmem:[#allocation4 + $0x230] sm:$0xff]
    %v1804 = vld [vmem:[#allocation4 + $0x238] sm:$0xff]
    %v1805 = vld [vmem:[#allocation4 + $0x240] sm:$0xff]
    %v1806 = vld [vmem:[#allocation4 + $0x248] sm:$0xff]
    %v1807 = vld [vmem:[#allocation4 + $0x250] sm:$0xff]
    %v1808 = vld [vmem:[#allocation4 + $0x258] sm:$0xff]
    %v1809 = vld [vmem:[#allocation4 + $0x260] sm:$0xff]
    %v1810 = vld [vmem:[#allocation4 + $0x268] sm:$0xff]
    %v1811 = vld [vmem:[#allocation4 + $0x270] sm:$0xff]
    %v1812 = vld [vmem:[#allocation4 + $0x278] sm:$0xff]
    %v1813 = vld [vmem:[#allocation4 + $0x280] sm:$0xff]
    %v1814 = vld [vmem:[#allocation4 + $0x288] sm:$0xff]
    %v1815 = vld [vmem:[#allocation4 + $0x290] sm:$0xff]
    %v1816 = vld [vmem:[#allocation4 + $0x298] sm:$0xff]
    %v1817 = vld [vmem:[#allocation4 + $0x2a0] sm:$0xff]
    %v1818 = vld [vmem:[#allocation4 + $0x2a8] sm:$0xff]
    %v1819 = vld [vmem:[#allocation4 + $0x2b0] sm:$0xff]
    %v1820 = vld [vmem:[#allocation4 + $0x2b8] sm:$0xff]
    %v1821 = vld [vmem:[#allocation4 + $0x2c0] sm:$0xff]
    %v1822 = vld [vmem:[#allocation4 + $0x2c8] sm:$0xff]
    %v1823 = vld [vmem:[#allocation4 + $0x2d0] sm:$0xff]
    %v1824 = vld [vmem:[#allocation4 + $0x2d8] sm:$0xff]
    %v1825 = vld [vmem:[#allocation4 + $0x2e0] sm:$0xff]
    %v1826 = vld [vmem:[#allocation4 + $0x2e8] sm:$0xff]
    %v1827 = vld [vmem:[#allocation4 + $0x2f0] sm:$0xff]
    %v1828 = vld [vmem:[#allocation4 + $0x2f8] sm:$0xff]
    %1829 = vmatprep.subr.mxu0 %v1826
    %1830 = vmatpush1.msra.mxu0 %v1825
    %1831 = vmatprep.subr.mxu0 %v1822
    %1832 = vmatpush1.msra.mxu0 %v1821
    %1833 = vmatprep.subr.mxu0 %v1818
    %1834 = vmatpush1.msra.mxu0 %v1817
    %1835 = vmatprep.subr.mxu0 %v1814
    %1836 = vmatpush1.msra.mxu0 %v1813
    %1837 = vmatprep.subr.mxu0 %v1810
    %1838 = vmatpush1.msra.mxu0 %v1809
    %1839 = vmatprep.subr.mxu0 %v1806
    %1840 = vmatpush1.msra.mxu0 %v1805
    %1841 = vmatprep.subr.mxu0 %v1802
    %1842 = vmatpush1.msra.mxu0 %v1801
    %1843 = vmatprep.subr.mxu0 %v1798
    %1844 = vmatpush1.msra.mxu0 %v1797
    %1845 = vmatprep.subr.mxu0 %v1794
    %1846 = vmatpush1.msra.mxu0 %v1793
    %1847 = vmatprep.subr.mxu0 %v1790
    %1848 = vmatpush1.msra.mxu0 %v1789
    %1849 = vmatprep.subr.mxu0 %v1786
    %1850 = vmatpush1.msra.mxu0 %v1785
    %1851 = vmatprep.subr.mxu0 %v1782
    %1852 = vmatpush1.msra.mxu0 %v1781
    %1853 = vmatprep.subr.mxu0 %v1778
    %1854 = vmatpush1.msra.mxu0 %v1777
    %1855 = vmatprep.subr.mxu0 %v1774
    %1856 = vmatpush1.msra.mxu0 %v1773
    %1857 = vmatprep.subr.mxu0 %v1770
    %1858 = vmatpush1.msra.mxu0 %v1769
    %1859 = vmatprep.subr.mxu0 %v1766
    %1860 = vmatpush1.msra.mxu0 %v1765
    %1861 = vmatprep.subr.mxu0 0.0
    %1862 = vmatpush2.msra.mxu0 0.0
    %1863 = vmatprep.subr.mxu0 0.0
    %1864 = vmatpush2.msra.mxu0 0.0
    %1865 = vmatprep.subr.mxu0 0.0
    %1866 = vmatpush2.msra.mxu0 0.0
    %1867 = vmatprep.subr.mxu0 0.0
    %1868 = vmatpush2.msra.mxu0 0.0
    %1869 = vmatprep.subr.mxu0 0.0
    %1870 = vmatpush2.msra.mxu0 0.0
    %1871 = vmatprep.subr.mxu0 0.0
    %1872 = vmatpush2.msra.mxu0 0.0
    %1873 = vmatprep.subr.mxu0 0.0
    %1874 = vmatpush2.msra.mxu0 0.0
    %1875 = vmatprep.subr.mxu0 0.0
    %1876 = vmatpush2.msra.mxu0 0.0
    %1877 = vmatprep.subr.mxu0 0.0
    %1878 = vmatpush2.msra.mxu0 0.0
    %1879 = vmatprep.subr.mxu0 0.0
    %1880 = vmatpush2.msra.mxu0 0.0
    %1881 = vmatprep.subr.mxu0 0.0
    %1882 = vmatpush2.msra.mxu0 0.0
    %1883 = vmatprep.subr.mxu0 0.0
    %1884 = vmatpush2.msra.mxu0 0.0
    %1885 = vmatprep.subr.mxu0 0.0
    %1886 = vmatpush2.msra.mxu0 0.0
    %1887 = vmatprep.subr.mxu0 0.0
    %1888 = vmatpush2.msra.mxu0 0.0
    %1889 = vmatprep.subr.mxu0 0.0
    %1890 = vmatpush2.msra.mxu0 0.0
    %1891 = vmatprep.subr.mxu0 0.0
    %1892 = vmatpush2.msra.mxu0 0.0
    %1893 = vmatprep.mubr.f32.mxu0 0.0
    %1894 = vmatmul.mubr.f32.gmra.mxu0 %v1763
    %v1895 = vpop.f32.mrf.mxu0
    %v1896 = vadd.f32 0.0, %v1895
    %v1897 = vpop.f32.mrf.mxu0
    %v1898 = vadd.f32 0.0, %v1897
    %1899 = vmatprep.mubr.f32.mxu0 0.0
    %1900 = vmatmul.mubr.f32.gmra.mxu0 %v1764
    %v1901 = vpop.f32.mrf.mxu0
    %v1902 = vadd.f32 0.0, %v1901
    %v1903 = vpop.f32.mrf.mxu0
    %v1904 = vadd.f32 0.0, %v1903
    %1905 = vdwg.mxu0
    %1906 = vmatprep.subr.mxu0 %v1828
    %1907 = vmatpush1.msra.mxu0 %v1827
    %1908 = vmatprep.subr.mxu0 %v1824
    %1909 = vmatpush1.msra.mxu0 %v1823
    %1910 = vmatprep.subr.mxu0 %v1820
    %1911 = vmatpush1.msra.mxu0 %v1819
    %1912 = vmatprep.subr.mxu0 %v1816
    %1913 = vmatpush1.msra.mxu0 %v1815
    %1914 = vmatprep.subr.mxu0 %v1812
    %1915 = vmatpush1.msra.mxu0 %v1811
    %1916 = vmatprep.subr.mxu0 %v1808
    %1917 = vmatpush1.msra.mxu0 %v1807
    %1918 = vmatprep.subr.mxu0 %v1804
    %1919 = vmatpush1.msra.mxu0 %v1803
    %1920 = vmatprep.subr.mxu0 %v1800
    %1921 = vmatpush1.msra.mxu0 %v1799
    %1922 = vmatprep.subr.mxu0 %v1796
    %1923 = vmatpush1.msra.mxu0 %v1795
    %1924 = vmatprep.subr.mxu0 %v1792
    %1925 = vmatpush1.msra.mxu0 %v1791
    %1926 = vmatprep.subr.mxu0 %v1788
    %1927 = vmatpush1.msra.mxu0 %v1787
    %1928 = vmatprep.subr.mxu0 %v1784
    %1929 = vmatpush1.msra.mxu0 %v1783
    %1930 = vmatprep.subr.mxu0 %v1780
    %1931 = vmatpush1.msra.mxu0 %v1779
    %1932 = vmatprep.subr.mxu0 %v1776
    %1933 = vmatpush1.msra.mxu0 %v1775
    %1934 = vmatprep.subr.mxu0 %v1772
    %1935 = vmatpush1.msra.mxu0 %v1771
    %1936 = vmatprep.subr.mxu0 %v1768
    %1937 = vmatpush1.msra.mxu0 %v1767
    %1938 = vmatprep.subr.mxu0 0.0
    %1939 = vmatpush2.msra.mxu0 0.0
    %1940 = vmatprep.subr.mxu0 0.0
    %1941 = vmatpush2.msra.mxu0 0.0
    %1942 = vmatprep.subr.mxu0 0.0
    %1943 = vmatpush2.msra.mxu0 0.0
    %1944 = vmatprep.subr.mxu0 0.0
    %1945 = vmatpush2.msra.mxu0 0.0
    %1946 = vmatprep.subr.mxu0 0.0
    %1947 = vmatpush2.msra.mxu0 0.0
    %1948 = vmatprep.subr.mxu0 0.0
    %1949 = vmatpush2.msra.mxu0 0.0
    %1950 = vmatprep.subr.mxu0 0.0
    %1951 = vmatpush2.msra.mxu0 0.0
    %1952 = vmatprep.subr.mxu0 0.0
    %1953 = vmatpush2.msra.mxu0 0.0
    %1954 = vmatprep.subr.mxu0 0.0
    %1955 = vmatpush2.msra.mxu0 0.0
    %1956 = vmatprep.subr.mxu0 0.0
    %1957 = vmatpush2.msra.mxu0 0.0
    %1958 = vmatprep.subr.mxu0 0.0
    %1959 = vmatpush2.msra.mxu0 0.0
    %1960 = vmatprep.subr.mxu0 0.0
    %1961 = vmatpush2.msra.mxu0 0.0
    %1962 = vmatprep.subr.mxu0 0.0
    %1963 = vmatpush2.msra.mxu0 0.0
    %1964 = vmatprep.subr.mxu0 0.0
    %1965 = vmatpush2.msra.mxu0 0.0
    %1966 = vmatprep.subr.mxu0 0.0
    %1967 = vmatpush2.msra.mxu0 0.0
    %1968 = vmatprep.subr.mxu0 0.0
    %1969 = vmatpush2.msra.mxu0 0.0
    %1970 = vmatprep.mubr.f32.mxu0 0.0
    %1971 = vmatmul.mubr.f32.gmra.mxu0 %v1763
    %v1972 = vpop.f32.mrf.mxu0
    %v1973 = vadd.f32 0.0, %v1972
    %v1974 = vpop.f32.mrf.mxu0
    %v1975 = vadd.f32 0.0, %v1974
    %1976 = vmatprep.mubr.f32.mxu0 0.0
    %1977 = vmatmul.mubr.f32.gmra.mxu0 %v1764
    %v1978 = vpop.f32.mrf.mxu0
    %v1979 = vadd.f32 0.0, %v1978
    %v1980 = vpop.f32.mrf.mxu0
    %v1981 = vadd.f32 0.0, %v1980
    %1982 = vdwg.mxu0
    %1991 = vrot.lane.b32.xlu0 %v1896, 17
    %v1992 = vpop.permute.xlu0 %1991
    %1993 = vrot.lane.b32.xlu0 %v1898, 17
    %v1994 = vpop.permute.xlu0 %1993
    %1995 = vrot.lane.b32.xlu0 %v1973, 17
    %v1996 = vpop.permute.xlu0 %1995
    %1997 = vrot.lane.b32.xlu0 %v1975, 17
    %v1998 = vpop.permute.xlu0 %1997
    %1999 = vrot.lane.b32.xlu0 %v1902, 17
    %v2000 = vpop.permute.xlu0 %1999
    %2001 = vrot.lane.b32.xlu0 %v1904, 17
    %v2002 = vpop.permute.xlu0 %2001
    %2003 = vrot.lane.b32.xlu0 %v1979, 17
    %v2004 = vpop.permute.xlu0 %2003
    %2005 = vrot.lane.b32.xlu0 %v1981, 17
    %v2006 = vpop.permute.xlu0 %2005
    %vm2007 = vcmask 138240
    %v2008 = vsel %vm2007, %v1992, %v1994
    %v2009 = vsel %vm2007, %v1994, %v1996
    %v2010 = vsel %vm2007, %v1996, %v1998
    %v2011 = vsel %vm2007, %v2000, %v2002
    %v2012 = vsel %vm2007, %v2002, %v2004
    %v2013 = vsel %vm2007, %v2004, %v2006
    %v2024 = vsel %vm2007, 0.0, %v1992
    %v2025 = vsel %vm2007, 0.0, %v2000
    %v2026 = vsel %vm2007, %v1998, 0.0
    %v2027 = vsel %vm2007, %v2006, 0.0
    %v2028 = vld [vmem:[#allocation4 + $0x300] sm:$0xff]
    %v2029 = vld [vmem:[#allocation4 + $0x308] sm:$0xff]
    %v2030 = vld [vmem:[#allocation4 + $0x310] sm:$0xff]
    %v2031 = vld [vmem:[#allocation4 + $0x318] sm:$0xff]
    %v2032 = vld [vmem:[#allocation4 + $0x320] sm:$0x1]
    %v2033 = vld [vmem:[#allocation4 + $0x328] sm:$0x1]
    %v2034 = vld [vmem:[#allocation4 + $0x330] sm:$0x1]
    %v2035 = vld [vmem:[#allocation4 + $0x338] sm:$0x1]
    %v2036 = vlaneseq
    %v2037 = vshrl.u32 %v2036, 7
    %v2038 = vsub.s32 0, %v2037
    %v2039 = vrot.slane %v2028, %v2038
    %v2040 = vlaneseq
    %v2041 = vshrl.u32 %v2040, 7
    %v2042 = vsub.s32 0, %v2041
    %v2043 = vrot.slane %v2029, %v2042
    %v2044 = vlaneseq
    %v2045 = vshrl.u32 %v2044, 7
    %v2046 = vsub.s32 0, %v2045
    %v2047 = vrot.slane %v2030, %v2046
    %v2048 = vlaneseq
    %v2049 = vshrl.u32 %v2048, 7
    %v2050 = vsub.s32 0, %v2049
    %v2051 = vrot.slane %v2031, %v2050
    %v2052 = vmul.f32 %v2024, %v2039
    %v2053 = vmul.f32 %v2008, %v2043
    %v2054 = vmul.f32 %v2009, %v2047
    %v2055 = vmul.f32 %v2010, %v2051
    %v2056 = vmul.f32 %v2025, %v2039
    %v2057 = vmul.f32 %v2011, %v2043
    %v2058 = vmul.f32 %v2012, %v2047
    %v2059 = vmul.f32 %v2013, %v2051
    %v2060 = vlaneseq
    %v2061 = vshrl.u32 %v2060, 7
    %v2062 = vsub.s32 1, %v2061
    %v2063 = vrot.slane %v2028, %v2062
    %v2064 = vlaneseq
    %v2065 = vshrl.u32 %v2064, 7
    %v2066 = vsub.s32 1, %v2065
    %v2067 = vrot.slane %v2029, %v2066
    %v2068 = vlaneseq
    %v2069 = vshrl.u32 %v2068, 7
    %v2070 = vsub.s32 1, %v2069
    %v2071 = vrot.slane %v2030, %v2070
    %v2072 = vlaneseq
    %v2073 = vshrl.u32 %v2072, 7
    %v2074 = vsub.s32 1, %v2073
    %v2075 = vrot.slane %v2031, %v2074
    %2080 = vrot.lane.b32.xlu0 %v2063, 1
    %v2081 = vpop.permute.xlu0 %2080
    %2082 = vrot.lane.b32.xlu0 %v2067, 1
    %v2083 = vpop.permute.xlu0 %2082
    %2084 = vrot.lane.b32.xlu0 %v2071, 1
    %v2085 = vpop.permute.xlu0 %2084
    %2086 = vrot.lane.b32.xlu0 %v2075, 1
    %v2087 = vpop.permute.xlu0 %2086
    %vm2088 = vcmask 7168
    %v2089 = vsel %vm2088, %v2081, %v2083
    %v2090 = vsel %vm2088, %v2083, %v2085
    %v2091 = vsel %vm2088, %v2085, %v2087
    %v2097 = vmul.f32 %v2024, %v2081
    %v2098 = vmul.f32 %v2008, %v2089
    %v2099 = vmul.f32 %v2009, %v2090
    %v2100 = vmul.f32 %v2010, %v2091
    %v2101 = vmul.f32 %v2026, %v2087
    %v2102 = vmul.f32 %v2025, %v2081
    %v2103 = vmul.f32 %v2011, %v2089
    %v2104 = vmul.f32 %v2012, %v2090
    %v2105 = vmul.f32 %v2013, %v2091
    %v2106 = vmul.f32 %v2027, %v2087
    %v2107 = vlaneseq
    %v2108 = vshrl.u32 %v2107, 7
    %v2109 = vsub.s32 2, %v2108
    %v2110 = vrot.slane %v2028, %v2109
    %v2111 = vlaneseq
    %v2112 = vshrl.u32 %v2111, 7
    %v2113 = vsub.s32 2, %v2112
    %v2114 = vrot.slane %v2029, %v2113
    %v2115 = vlaneseq
    %v2116 = vshrl.u32 %v2115, 7
    %v2117 = vsub.s32 2, %v2116
    %v2118 = vrot.slane %v2030, %v2117
    %v2119 = vlaneseq
    %v2120 = vshrl.u32 %v2119, 7
    %v2121 = vsub.s32 2, %v2120
    %v2122 = vrot.slane %v2031, %v2121
    %2127 = vrot.lane.b32.xlu0 %v2110, 2
    %v2128 = vpop.permute.xlu0 %2127
    %2129 = vrot.lane.b32.xlu0 %v2114, 2
    %v2130 = vpop.permute.xlu0 %2129
    %2131 = vrot.lane.b32.xlu0 %v2118, 2
    %v2132 = vpop.permute.xlu0 %2131
    %2133 = vrot.lane.b32.xlu0 %v2122, 2
    %v2134 = vpop.permute.xlu0 %2133
    %vm2135 = vcmask 15360
    %v2136 = vsel %vm2135, %v2128, %v2130
    %v2137 = vsel %vm2135, %v2130, %v2132
    %v2138 = vsel %vm2135, %v2132, %v2134
    %v2144 = vmul.f32 %v2024, %v2128
    %v2145 = vmul.f32 %v2008, %v2136
    %v2146 = vmul.f32 %v2009, %v2137
    %v2147 = vmul.f32 %v2010, %v2138
    %v2148 = vmul.f32 %v2026, %v2134
    %v2149 = vmul.f32 %v2025, %v2128
    %v2150 = vmul.f32 %v2011, %v2136
    %v2151 = vmul.f32 %v2012, %v2137
    %v2152 = vmul.f32 %v2013, %v2138
    %v2153 = vmul.f32 %v2027, %v2134
    %v2154 = vlaneseq
    %v2155 = vshrl.u32 %v2154, 7
    %v2156 = vsub.s32 3, %v2155
    %v2157 = vrot.slane %v2028, %v2156
    %v2158 = vlaneseq
    %v2159 = vshrl.u32 %v2158, 7
    %v2160 = vsub.s32 3, %v2159
    %v2161 = vrot.slane %v2029, %v2160
    %v2162 = vlaneseq
    %v2163 = vshrl.u32 %v2162, 7
    %v2164 = vsub.s32 3, %v2163
    %v2165 = vrot.slane %v2030, %v2164
    %v2166 = vlaneseq
    %v2167 = vshrl.u32 %v2166, 7
    %v2168 = vsub.s32 3, %v2167
    %v2169 = vrot.slane %v2031, %v2168
    %2174 = vrot.lane.b32.xlu0 %v2157, 16
    %v2175 = vpop.permute.xlu0 %2174
    %2176 = vrot.lane.b32.xlu0 %v2161, 16
    %v2177 = vpop.permute.xlu0 %2176
    %2178 = vrot.lane.b32.xlu0 %v2165, 16
    %v2179 = vpop.permute.xlu0 %2178
    %2180 = vrot.lane.b32.xlu0 %v2169, 16
    %v2181 = vpop.permute.xlu0 %2180
    %v2182 = vsel %vm311, %v2175, %v2177
    %v2183 = vsel %vm311, %v2177, %v2179
    %v2184 = vsel %vm311, %v2179, %v2181
    %v2190 = vmul.f32 %v2024, %v2175
    %v2191 = vmul.f32 %v2008, %v2182
    %v2192 = vmul.f32 %v2009, %v2183
    %v2193 = vmul.f32 %v2010, %v2184
    %v2194 = vmul.f32 %v2026, %v2181
    %v2195 = vmul.f32 %v2025, %v2175
    %v2196 = vmul.f32 %v2011, %v2182
    %v2197 = vmul.f32 %v2012, %v2183
    %v2198 = vmul.f32 %v2013, %v2184
    %v2199 = vmul.f32 %v2027, %v2181
    %v2200 = vlaneseq
    %v2201 = vshrl.u32 %v2200, 7
    %v2202 = vsub.s32 5, %v2201
    %v2203 = vrot.slane %v2028, %v2202
    %v2204 = vlaneseq
    %v2205 = vshrl.u32 %v2204, 7
    %v2206 = vsub.s32 5, %v2205
    %v2207 = vrot.slane %v2029, %v2206
    %v2208 = vlaneseq
    %v2209 = vshrl.u32 %v2208, 7
    %v2210 = vsub.s32 5, %v2209
    %v2211 = vrot.slane %v2030, %v2210
    %v2212 = vlaneseq
    %v2213 = vshrl.u32 %v2212, 7
    %v2214 = vsub.s32 5, %v2213
    %v2215 = vrot.slane %v2031, %v2214
    %2220 = vrot.lane.b32.xlu0 %v2203, 18
    %v2221 = vpop.permute.xlu0 %2220
    %2222 = vrot.lane.b32.xlu0 %v2207, 18
    %v2223 = vpop.permute.xlu0 %2222
    %2224 = vrot.lane.b32.xlu0 %v2211, 18
    %v2225 = vpop.permute.xlu0 %2224
    %2226 = vrot.lane.b32.xlu0 %v2215, 18
    %v2227 = vpop.permute.xlu0 %2226
    %vm2228 = vcmask 146432
    %v2229 = vsel %vm2228, %v2221, %v2223
    %v2230 = vsel %vm2228, %v2223, %v2225
    %v2231 = vsel %vm2228, %v2225, %v2227
    %v2237 = vmul.f32 %v2024, %v2221
    %v2238 = vmul.f32 %v2008, %v2229
    %v2239 = vmul.f32 %v2009, %v2230
    %v2240 = vmul.f32 %v2010, %v2231
    %v2241 = vmul.f32 %v2026, %v2227
    %v2242 = vmul.f32 %v2025, %v2221
    %v2243 = vmul.f32 %v2011, %v2229
    %v2244 = vmul.f32 %v2012, %v2230
    %v2245 = vmul.f32 %v2013, %v2231
    %v2246 = vmul.f32 %v2027, %v2227
    %v2247 = vlaneseq
    %v2248 = vshrl.u32 %v2247, 7
    %v2249 = vsub.s32 6, %v2248
    %v2250 = vrot.slane %v2028, %v2249
    %v2251 = vlaneseq
    %v2252 = vshrl.u32 %v2251, 7
    %v2253 = vsub.s32 6, %v2252
    %v2254 = vrot.slane %v2029, %v2253
    %v2255 = vlaneseq
    %v2256 = vshrl.u32 %v2255, 7
    %v2257 = vsub.s32 6, %v2256
    %v2258 = vrot.slane %v2030, %v2257
    %v2259 = vlaneseq
    %v2260 = vshrl.u32 %v2259, 7
    %v2261 = vsub.s32 6, %v2260
    %v2262 = vrot.slane %v2031, %v2261
    %2267 = vrot.lane.b32.xlu0 %v2250, 32
    %v2268 = vpop.permute.xlu0 %2267
    %2269 = vrot.lane.b32.xlu0 %v2254, 32
    %v2270 = vpop.permute.xlu0 %2269
    %2271 = vrot.lane.b32.xlu0 %v2258, 32
    %v2272 = vpop.permute.xlu0 %2271
    %2273 = vrot.lane.b32.xlu0 %v2262, 32
    %v2274 = vpop.permute.xlu0 %2273
    %v2275 = vsel %vm385, %v2268, %v2270
    %v2276 = vsel %vm385, %v2270, %v2272
    %v2277 = vsel %vm385, %v2272, %v2274
    %v2283 = vmul.f32 %v2024, %v2268
    %v2284 = vmul.f32 %v2008, %v2275
    %v2285 = vmul.f32 %v2009, %v2276
    %v2286 = vmul.f32 %v2010, %v2277
    %v2287 = vmul.f32 %v2026, %v2274
    %v2288 = vmul.f32 %v2025, %v2268
    %v2289 = vmul.f32 %v2011, %v2275
    %v2290 = vmul.f32 %v2012, %v2276
    %v2291 = vmul.f32 %v2013, %v2277
    %v2292 = vmul.f32 %v2027, %v2274
    %v2293 = vlaneseq
    %v2294 = vshrl.u32 %v2293, 7
    %v2295 = vsub.s32 7, %v2294
    %v2296 = vrot.slane %v2028, %v2295
    %v2297 = vlaneseq
    %v2298 = vshrl.u32 %v2297, 7
    %v2299 = vsub.s32 7, %v2298
    %v2300 = vrot.slane %v2029, %v2299
    %v2301 = vlaneseq
    %v2302 = vshrl.u32 %v2301, 7
    %v2303 = vsub.s32 7, %v2302
    %v2304 = vrot.slane %v2030, %v2303
    %v2305 = vlaneseq
    %v2306 = vshrl.u32 %v2305, 7
    %v2307 = vsub.s32 7, %v2306
    %v2308 = vrot.slane %v2031, %v2307
    %2313 = vrot.lane.b32.xlu0 %v2296, 33
    %v2314 = vpop.permute.xlu0 %2313
    %2315 = vrot.lane.b32.xlu0 %v2300, 33
    %v2316 = vpop.permute.xlu0 %2315
    %2317 = vrot.lane.b32.xlu0 %v2304, 33
    %v2318 = vpop.permute.xlu0 %2317
    %2319 = vrot.lane.b32.xlu0 %v2308, 33
    %v2320 = vpop.permute.xlu0 %2319
    %vm2321 = vcmask 269312
    %v2322 = vsel %vm2321, %v2314, %v2316
    %v2323 = vsel %vm2321, %v2316, %v2318
    %v2324 = vsel %vm2321, %v2318, %v2320
    %v2330 = vmul.f32 %v2024, %v2314
    %v2331 = vmul.f32 %v2008, %v2322
    %v2332 = vmul.f32 %v2009, %v2323
    %v2333 = vmul.f32 %v2010, %v2324
    %v2334 = vmul.f32 %v2026, %v2320
    %v2335 = vmul.f32 %v2025, %v2314
    %v2336 = vmul.f32 %v2011, %v2322
    %v2337 = vmul.f32 %v2012, %v2323
    %v2338 = vmul.f32 %v2013, %v2324
    %v2339 = vmul.f32 %v2027, %v2320
    %v2340 = vlaneseq
    %v2341 = vshrl.u32 %v2340, 7
    %v2342 = vsub.s32 0, %v2341
    %v2343 = vrot.slane %v2032, %v2342
    %v2344 = vlaneseq
    %v2345 = vshrl.u32 %v2344, 7
    %v2346 = vsub.s32 0, %v2345
    %v2347 = vrot.slane %v2033, %v2346
    %v2348 = vlaneseq
    %v2349 = vshrl.u32 %v2348, 7
    %v2350 = vsub.s32 0, %v2349
    %v2351 = vrot.slane %v2034, %v2350
    %v2352 = vlaneseq
    %v2353 = vshrl.u32 %v2352, 7
    %v2354 = vsub.s32 0, %v2353
    %v2355 = vrot.slane %v2035, %v2354
    %2360 = vrot.lane.b32.xlu0 %v2343, 34
    %v2361 = vpop.permute.xlu0 %2360
    %2362 = vrot.lane.b32.xlu0 %v2347, 34
    %v2363 = vpop.permute.xlu0 %2362
    %2364 = vrot.lane.b32.xlu0 %v2351, 34
    %v2365 = vpop.permute.xlu0 %2364
    %2366 = vrot.lane.b32.xlu0 %v2355, 34
    %v2367 = vpop.permute.xlu0 %2366
    %vm2368 = vcmask 277504
    %v2369 = vsel %vm2368, %v2361, %v2363
    %v2370 = vsel %vm2368, %v2363, %v2365
    %v2371 = vsel %vm2368, %v2365, %v2367
    %v2377 = vmul.f32 %v2024, %v2361
    %v2378 = vmul.f32 %v2008, %v2369
    %v2379 = vmul.f32 %v2009, %v2370
    %v2380 = vmul.f32 %v2010, %v2371
    %v2381 = vmul.f32 %v2026, %v2367
    %v2382 = vmul.f32 %v2025, %v2361
    %v2383 = vmul.f32 %v2011, %v2369
    %v2384 = vmul.f32 %v2012, %v2370
    %v2385 = vmul.f32 %v2013, %v2371
    %v2386 = vmul.f32 %v2027, %v2367
    %2397 = vrot.lane.b32.xlu0 %v2097, 127
    %v2398 = vpop.permute.xlu0 %2397
    %2399 = vrot.lane.b32.xlu0 %v2098, 127
    %v2400 = vpop.permute.xlu0 %2399
    %2401 = vrot.lane.b32.xlu0 %v2099, 127
    %v2402 = vpop.permute.xlu0 %2401
    %2403 = vrot.lane.b32.xlu0 %v2100, 127
    %v2404 = vpop.permute.xlu0 %2403
    %2405 = vrot.lane.b32.xlu0 %v2101, 127
    %v2406 = vpop.permute.xlu0 %2405
    %2407 = vrot.lane.b32.xlu0 %v2102, 127
    %v2408 = vpop.permute.xlu0 %2407
    %2409 = vrot.lane.b32.xlu0 %v2103, 127
    %v2410 = vpop.permute.xlu0 %2409
    %2411 = vrot.lane.b32.xlu0 %v2104, 127
    %v2412 = vpop.permute.xlu0 %2411
    %2413 = vrot.lane.b32.xlu0 %v2105, 127
    %v2414 = vpop.permute.xlu0 %2413
    %2415 = vrot.lane.b32.xlu0 %v2106, 127
    %v2416 = vpop.permute.xlu0 %2415
    %v2417 = vsel %vm1212, %v2398, %v2400
    %v2418 = vsel %vm1212, %v2400, %v2402
    %v2419 = vsel %vm1212, %v2402, %v2404
    %v2420 = vsel %vm1212, %v2404, %v2406
    %v2421 = vsel %vm1212, %v2408, %v2410
    %v2422 = vsel %vm1212, %v2410, %v2412
    %v2423 = vsel %vm1212, %v2412, %v2414
    %v2424 = vsel %vm1212, %v2414, %v2416
    %2443 = vrot.lane.b32.xlu0 %v2144, 126
    %v2444 = vpop.permute.xlu0 %2443
    %2445 = vrot.lane.b32.xlu0 %v2145, 126
    %v2446 = vpop.permute.xlu0 %2445
    %2447 = vrot.lane.b32.xlu0 %v2146, 126
    %v2448 = vpop.permute.xlu0 %2447
    %2449 = vrot.lane.b32.xlu0 %v2147, 126
    %v2450 = vpop.permute.xlu0 %2449
    %2451 = vrot.lane.b32.xlu0 %v2148, 126
    %v2452 = vpop.permute.xlu0 %2451
    %2453 = vrot.lane.b32.xlu0 %v2149, 126
    %v2454 = vpop.permute.xlu0 %2453
    %2455 = vrot.lane.b32.xlu0 %v2150, 126
    %v2456 = vpop.permute.xlu0 %2455
    %2457 = vrot.lane.b32.xlu0 %v2151, 126
    %v2458 = vpop.permute.xlu0 %2457
    %2459 = vrot.lane.b32.xlu0 %v2152, 126
    %v2460 = vpop.permute.xlu0 %2459
    %2461 = vrot.lane.b32.xlu0 %v2153, 126
    %v2462 = vpop.permute.xlu0 %2461
    %v2463 = vsel %vm1229, %v2444, %v2446
    %v2464 = vsel %vm1229, %v2446, %v2448
    %v2465 = vsel %vm1229, %v2448, %v2450
    %v2466 = vsel %vm1229, %v2450, %v2452
    %v2467 = vsel %vm1229, %v2454, %v2456
    %v2468 = vsel %vm1229, %v2456, %v2458
    %v2469 = vsel %vm1229, %v2458, %v2460
    %v2470 = vsel %vm1229, %v2460, %v2462
    %2489 = vrot.lane.b32.xlu0 %v2190, 112
    %v2490 = vpop.permute.xlu0 %2489
    %2491 = vrot.lane.b32.xlu0 %v2191, 112
    %v2492 = vpop.permute.xlu0 %2491
    %2493 = vrot.lane.b32.xlu0 %v2192, 112
    %v2494 = vpop.permute.xlu0 %2493
    %2495 = vrot.lane.b32.xlu0 %v2193, 112
    %v2496 = vpop.permute.xlu0 %2495
    %2497 = vrot.lane.b32.xlu0 %v2194, 112
    %v2498 = vpop.permute.xlu0 %2497
    %2499 = vrot.lane.b32.xlu0 %v2195, 112
    %v2500 = vpop.permute.xlu0 %2499
    %2501 = vrot.lane.b32.xlu0 %v2196, 112
    %v2502 = vpop.permute.xlu0 %2501
    %2503 = vrot.lane.b32.xlu0 %v2197, 112
    %v2504 = vpop.permute.xlu0 %2503
    %2505 = vrot.lane.b32.xlu0 %v2198, 112
    %v2506 = vpop.permute.xlu0 %2505
    %2507 = vrot.lane.b32.xlu0 %v2199, 112
    %v2508 = vpop.permute.xlu0 %2507
    %v2509 = vsel %vm1297, %v2490, %v2492
    %v2510 = vsel %vm1297, %v2492, %v2494
    %v2511 = vsel %vm1297, %v2494, %v2496
    %v2512 = vsel %vm1297, %v2496, %v2498
    %v2513 = vsel %vm1297, %v2500, %v2502
    %v2514 = vsel %vm1297, %v2502, %v2504
    %v2515 = vsel %vm1297, %v2504, %v2506
    %v2516 = vsel %vm1297, %v2506, %v2508
    %2529 = vrot.lane.b32.xlu0 %v2024, 111
    %v2530 = vpop.permute.xlu0 %2529
    %2531 = vrot.lane.b32.xlu0 %v2008, 111
    %v2532 = vpop.permute.xlu0 %2531
    %2533 = vrot.lane.b32.xlu0 %v2009, 111
    %v2534 = vpop.permute.xlu0 %2533
    %2535 = vrot.lane.b32.xlu0 %v2010, 111
    %v2536 = vpop.permute.xlu0 %2535
    %2537 = vrot.lane.b32.xlu0 %v2026, 111
    %v2538 = vpop.permute.xlu0 %2537
    %2539 = vrot.lane.b32.xlu0 %v2025, 111
    %v2540 = vpop.permute.xlu0 %2539
    %2541 = vrot.lane.b32.xlu0 %v2011, 111
    %v2542 = vpop.permute.xlu0 %2541
    %2543 = vrot.lane.b32.xlu0 %v2012, 111
    %v2544 = vpop.permute.xlu0 %2543
    %2545 = vrot.lane.b32.xlu0 %v2013, 111
    %v2546 = vpop.permute.xlu0 %2545
    %2547 = vrot.lane.b32.xlu0 %v2027, 111
    %v2548 = vpop.permute.xlu0 %2547
    %v2549 = vsel %vm1314, %v2530, %v2532
    %v2550 = vsel %vm1314, %v2532, %v2534
    %v2551 = vsel %vm1314, %v2534, %v2536
    %v2552 = vsel %vm1314, %v2536, %v2538
    %v2553 = vsel %vm1314, %v2540, %v2542
    %v2554 = vsel %vm1314, %v2542, %v2544
    %v2555 = vsel %vm1314, %v2544, %v2546
    %v2556 = vsel %vm1314, %v2546, %v2548
    %2575 = vrot.lane.b32.xlu0 %v2237, 110
    %v2576 = vpop.permute.xlu0 %2575
    %2577 = vrot.lane.b32.xlu0 %v2238, 110
    %v2578 = vpop.permute.xlu0 %2577
    %2579 = vrot.lane.b32.xlu0 %v2239, 110
    %v2580 = vpop.permute.xlu0 %2579
    %2581 = vrot.lane.b32.xlu0 %v2240, 110
    %v2582 = vpop.permute.xlu0 %2581
    %2583 = vrot.lane.b32.xlu0 %v2241, 110
    %v2584 = vpop.permute.xlu0 %2583
    %2585 = vrot.lane.b32.xlu0 %v2242, 110
    %v2586 = vpop.permute.xlu0 %2585
    %2587 = vrot.lane.b32.xlu0 %v2243, 110
    %v2588 = vpop.permute.xlu0 %2587
    %2589 = vrot.lane.b32.xlu0 %v2244, 110
    %v2590 = vpop.permute.xlu0 %2589
    %2591 = vrot.lane.b32.xlu0 %v2245, 110
    %v2592 = vpop.permute.xlu0 %2591
    %2593 = vrot.lane.b32.xlu0 %v2246, 110
    %v2594 = vpop.permute.xlu0 %2593
    %v2595 = vsel %vm1331, %v2576, %v2578
    %v2596 = vsel %vm1331, %v2578, %v2580
    %v2597 = vsel %vm1331, %v2580, %v2582
    %v2598 = vsel %vm1331, %v2582, %v2584
    %v2599 = vsel %vm1331, %v2586, %v2588
    %v2600 = vsel %vm1331, %v2588, %v2590
    %v2601 = vsel %vm1331, %v2590, %v2592
    %v2602 = vsel %vm1331, %v2592, %v2594
    %2621 = vrot.lane.b32.xlu0 %v2283, 96
    %v2622 = vpop.permute.xlu0 %2621
    %2623 = vrot.lane.b32.xlu0 %v2284, 96
    %v2624 = vpop.permute.xlu0 %2623
    %2625 = vrot.lane.b32.xlu0 %v2285, 96
    %v2626 = vpop.permute.xlu0 %2625
    %2627 = vrot.lane.b32.xlu0 %v2286, 96
    %v2628 = vpop.permute.xlu0 %2627
    %2629 = vrot.lane.b32.xlu0 %v2287, 96
    %v2630 = vpop.permute.xlu0 %2629
    %2631 = vrot.lane.b32.xlu0 %v2288, 96
    %v2632 = vpop.permute.xlu0 %2631
    %2633 = vrot.lane.b32.xlu0 %v2289, 96
    %v2634 = vpop.permute.xlu0 %2633
    %2635 = vrot.lane.b32.xlu0 %v2290, 96
    %v2636 = vpop.permute.xlu0 %2635
    %2637 = vrot.lane.b32.xlu0 %v2291, 96
    %v2638 = vpop.permute.xlu0 %2637
    %2639 = vrot.lane.b32.xlu0 %v2292, 96
    %v2640 = vpop.permute.xlu0 %2639
    %vm2641 = vcmask 785408
    %v2642 = vsel %vm2641, %v2622, %v2624
    %v2643 = vsel %vm2641, %v2624, %v2626
    %v2644 = vsel %vm2641, %v2626, %v2628
    %v2645 = vsel %vm2641, %v2628, %v2630
    %v2646 = vsel %vm2641, %v2632, %v2634
    %v2647 = vsel %vm2641, %v2634, %v2636
    %v2648 = vsel %vm2641, %v2636, %v2638
    %v2649 = vsel %vm2641, %v2638, %v2640
    %2668 = vrot.lane.b32.xlu0 %v2330, 95
    %v2669 = vpop.permute.xlu0 %2668
    %2670 = vrot.lane.b32.xlu0 %v2331, 95
    %v2671 = vpop.permute.xlu0 %2670
    %2672 = vrot.lane.b32.xlu0 %v2332, 95
    %v2673 = vpop.permute.xlu0 %2672
    %2674 = vrot.lane.b32.xlu0 %v2333, 95
    %v2675 = vpop.permute.xlu0 %2674
    %2676 = vrot.lane.b32.xlu0 %v2334, 95
    %v2677 = vpop.permute.xlu0 %2676
    %2678 = vrot.lane.b32.xlu0 %v2335, 95
    %v2679 = vpop.permute.xlu0 %2678
    %2680 = vrot.lane.b32.xlu0 %v2336, 95
    %v2681 = vpop.permute.xlu0 %2680
    %2682 = vrot.lane.b32.xlu0 %v2337, 95
    %v2683 = vpop.permute.xlu0 %2682
    %2684 = vrot.lane.b32.xlu0 %v2338, 95
    %v2685 = vpop.permute.xlu0 %2684
    %2686 = vrot.lane.b32.xlu0 %v2339, 95
    %v2687 = vpop.permute.xlu0 %2686
    %vm2688 = vcmask 777216
    %v2689 = vsel %vm2688, %v2669, %v2671
    %v2690 = vsel %vm2688, %v2671, %v2673
    %v2691 = vsel %vm2688, %v2673, %v2675
    %v2692 = vsel %vm2688, %v2675, %v2677
    %v2693 = vsel %vm2688, %v2679, %v2681
    %v2694 = vsel %vm2688, %v2681, %v2683
    %v2695 = vsel %vm2688, %v2683, %v2685
    %v2696 = vsel %vm2688, %v2685, %v2687
    %2715 = vrot.lane.b32.xlu0 %v2377, 94
    %v2716 = vpop.permute.xlu0 %2715
    %2717 = vrot.lane.b32.xlu0 %v2378, 94
    %v2718 = vpop.permute.xlu0 %2717
    %2719 = vrot.lane.b32.xlu0 %v2379, 94
    %v2720 = vpop.permute.xlu0 %2719
    %2721 = vrot.lane.b32.xlu0 %v2380, 94
    %v2722 = vpop.permute.xlu0 %2721
    %2723 = vrot.lane.b32.xlu0 %v2381, 94
    %v2724 = vpop.permute.xlu0 %2723
    %2725 = vrot.lane.b32.xlu0 %v2382, 94
    %v2726 = vpop.permute.xlu0 %2725
    %2727 = vrot.lane.b32.xlu0 %v2383, 94
    %v2728 = vpop.permute.xlu0 %2727
    %2729 = vrot.lane.b32.xlu0 %v2384, 94
    %v2730 = vpop.permute.xlu0 %2729
    %2731 = vrot.lane.b32.xlu0 %v2385, 94
    %v2732 = vpop.permute.xlu0 %2731
    %2733 = vrot.lane.b32.xlu0 %v2386, 94
    %v2734 = vpop.permute.xlu0 %2733
    %vm2735 = vcmask 769024
    %v2736 = vsel %vm2735, %v2716, %v2718
    %v2737 = vsel %vm2735, %v2718, %v2720
    %v2738 = vsel %vm2735, %v2720, %v2722
    %v2739 = vsel %vm2735, %v2722, %v2724
    %v2740 = vsel %vm2735, %v2726, %v2728
    %v2741 = vsel %vm2735, %v2728, %v2730
    %v2742 = vsel %vm2735, %v2730, %v2732
    %v2743 = vsel %vm2735, %v2732, %v2734
    %v2752 = vld [vmem:[#allocation2 + $0xd0] sm:$0xff]
    %v2753 = vld [vmem:[#allocation2 + $0xd8] sm:$0xff]
    %2755 = vset.pattern.permute.xlu0 16
    %2756 = vperm.xlu0 %2755, %v2753
    %v2757 = vpop.permute.xlu0 %2756
    %v2759 = vsel %vm311, %v2753, 0
    %2761 = vmatprep.subr.mxu0 %v2694
    %2762 = vmatpush1.msra.mxu0 %v2693
    %2763 = vmatprep.subr.mxu0 %v2690
    %2764 = vmatpush1.msra.mxu0 %v2689
    %2765 = vmatprep.subr.mxu0 %v2647
    %2766 = vmatpush1.msra.mxu0 %v2646
    %2767 = vmatprep.subr.mxu0 %v2643
    %2768 = vmatpush1.msra.mxu0 %v2642
    %2769 = vmatprep.subr.mxu0 %v2600
    %2770 = vmatpush1.msra.mxu0 %v2599
    %2771 = vmatprep.subr.mxu0 %v2596
    %2772 = vmatpush1.msra.mxu0 %v2595
    %2773 = vmatprep.subr.mxu0 %v2554
    %2774 = vmatpush1.msra.mxu0 %v2553
    %2775 = vmatprep.subr.mxu0 %v2550
    %2776 = vmatpush1.msra.mxu0 %v2549
    %2777 = vmatprep.subr.mxu0 %v2514
    %2778 = vmatpush1.msra.mxu0 %v2513
    %2779 = vmatprep.subr.mxu0 %v2510
    %2780 = vmatpush1.msra.mxu0 %v2509
    %2781 = vmatprep.subr.mxu0 %v2468
    %2782 = vmatpush1.msra.mxu0 %v2467
    %2783 = vmatprep.subr.mxu0 %v2464
    %2784 = vmatpush1.msra.mxu0 %v2463
    %2785 = vmatprep.subr.mxu0 %v2422
    %2786 = vmatpush1.msra.mxu0 %v2421
    %2787 = vmatprep.subr.mxu0 %v2418
    %2788 = vmatpush1.msra.mxu0 %v2417
    %2789 = vmatprep.subr.mxu0 %v2057
    %2790 = vmatpush1.msra.mxu0 %v2056
    %2791 = vmatprep.subr.mxu0 %v2053
    %2792 = vmatpush1.msra.mxu0 %v2052
    %2793 = vmatprep.subr.mxu0 0.0
    %2794 = vmatpush2.msra.mxu0 0.0
    %2795 = vmatprep.subr.mxu0 0.0
    %2796 = vmatpush2.msra.mxu0 0.0
    %2797 = vmatprep.subr.mxu0 0.0
    %2798 = vmatpush2.msra.mxu0 0.0
    %2799 = vmatprep.subr.mxu0 0.0
    %2800 = vmatpush2.msra.mxu0 0.0
    %2801 = vmatprep.subr.mxu0 0.0
    %2802 = vmatpush2.msra.mxu0 0.0
    %2803 = vmatprep.subr.mxu0 0.0
    %2804 = vmatpush2.msra.mxu0 0.0
    %2805 = vmatprep.subr.mxu0 0.0
    %2806 = vmatpush2.msra.mxu0 0.0
    %2807 = vmatprep.subr.mxu0 0.0
    %2808 = vmatpush2.msra.mxu0 0.0
    %2809 = vmatprep.subr.mxu0 0.0
    %2810 = vmatpush2.msra.mxu0 0.0
    %2811 = vmatprep.subr.mxu0 0.0
    %2812 = vmatpush2.msra.mxu0 0.0
    %2813 = vmatprep.subr.mxu0 0.0
    %2814 = vmatpush2.msra.mxu0 0.0
    %2815 = vmatprep.subr.mxu0 0.0
    %2816 = vmatpush2.msra.mxu0 0.0
    %2817 = vmatprep.subr.mxu0 0.0
    %2818 = vmatpush2.msra.mxu0 0.0
    %2819 = vmatprep.subr.mxu0 0.0
    %2820 = vmatpush2.msra.mxu0 0.0
    %2821 = vmatprep.subr.mxu0 %v2741
    %2822 = vmatpush2.msra.mxu0 %v2740
    %2823 = vmatprep.subr.mxu0 %v2737
    %2824 = vmatpush2.msra.mxu0 %v2736
    %2825 = vmatprep.mubr.f32.mxu0 %v2759
    %2826 = vmatmul.mubr.f32.gmra.mxu0 %v2752
    %v2827 = vpop.f32.mrf.mxu0
    %v2828 = vadd.f32 %v2757, %v2827
    %v2829 = vpop.f32.mrf.mxu0
    %v2830 = vadd.f32 %v2757, %v2829
    %2831 = vdwg.mxu0
    %2832 = vmatprep.subr.mxu0 %v2696
    %2833 = vmatpush1.msra.mxu0 %v2695
    %2834 = vmatprep.subr.mxu0 %v2692
    %2835 = vmatpush1.msra.mxu0 %v2691
    %2836 = vmatprep.subr.mxu0 %v2649
    %2837 = vmatpush1.msra.mxu0 %v2648
    %2838 = vmatprep.subr.mxu0 %v2645
    %2839 = vmatpush1.msra.mxu0 %v2644
    %2840 = vmatprep.subr.mxu0 %v2602
    %2841 = vmatpush1.msra.mxu0 %v2601
    %2842 = vmatprep.subr.mxu0 %v2598
    %2843 = vmatpush1.msra.mxu0 %v2597
    %2844 = vmatprep.subr.mxu0 %v2556
    %2845 = vmatpush1.msra.mxu0 %v2555
    %2846 = vmatprep.subr.mxu0 %v2552
    %2847 = vmatpush1.msra.mxu0 %v2551
    %2848 = vmatprep.subr.mxu0 %v2516
    %2849 = vmatpush1.msra.mxu0 %v2515
    %2850 = vmatprep.subr.mxu0 %v2512
    %2851 = vmatpush1.msra.mxu0 %v2511
    %2852 = vmatprep.subr.mxu0 %v2470
    %2853 = vmatpush1.msra.mxu0 %v2469
    %2854 = vmatprep.subr.mxu0 %v2466
    %2855 = vmatpush1.msra.mxu0 %v2465
    %2856 = vmatprep.subr.mxu0 %v2424
    %2857 = vmatpush1.msra.mxu0 %v2423
    %2858 = vmatprep.subr.mxu0 %v2420
    %2859 = vmatpush1.msra.mxu0 %v2419
    %2860 = vmatprep.subr.mxu0 %v2059
    %2861 = vmatpush1.msra.mxu0 %v2058
    %2862 = vmatprep.subr.mxu0 %v2055
    %2863 = vmatpush1.msra.mxu0 %v2054
    %2864 = vmatprep.subr.mxu0 0.0
    %2865 = vmatpush2.msra.mxu0 0.0
    %2866 = vmatprep.subr.mxu0 0.0
    %2867 = vmatpush2.msra.mxu0 0.0
    %2868 = vmatprep.subr.mxu0 0.0
    %2869 = vmatpush2.msra.mxu0 0.0
    %2870 = vmatprep.subr.mxu0 0.0
    %2871 = vmatpush2.msra.mxu0 0.0
    %2872 = vmatprep.subr.mxu0 0.0
    %2873 = vmatpush2.msra.mxu0 0.0
    %2874 = vmatprep.subr.mxu0 0.0
    %2875 = vmatpush2.msra.mxu0 0.0
    %2876 = vmatprep.subr.mxu0 0.0
    %2877 = vmatpush2.msra.mxu0 0.0
    %2878 = vmatprep.subr.mxu0 0.0
    %2879 = vmatpush2.msra.mxu0 0.0
    %2880 = vmatprep.subr.mxu0 0.0
    %2881 = vmatpush2.msra.mxu0 0.0
    %2882 = vmatprep.subr.mxu0 0.0
    %2883 = vmatpush2.msra.mxu0 0.0
    %2884 = vmatprep.subr.mxu0 0.0
    %2885 = vmatpush2.msra.mxu0 0.0
    %2886 = vmatprep.subr.mxu0 0.0
    %2887 = vmatpush2.msra.mxu0 0.0
    %2888 = vmatprep.subr.mxu0 0.0
    %2889 = vmatpush2.msra.mxu0 0.0
    %2890 = vmatprep.subr.mxu0 0.0
    %2891 = vmatpush2.msra.mxu0 0.0
    %2892 = vmatprep.subr.mxu0 %v2743
    %2893 = vmatpush2.msra.mxu0 %v2742
    %2894 = vmatprep.subr.mxu0 %v2739
    %2895 = vmatpush2.msra.mxu0 %v2738
    %2896 = vmatprep.mubr.f32.mxu0 %v2759
    %2897 = vmatmul.mubr.f32.gmra.mxu0 %v2752
    %v2898 = vpop.f32.mrf.mxu0
    %v2899 = vadd.f32 %v2757, %v2898
    %v2900 = vpop.f32.mrf.mxu0
    %v2901 = vadd.f32 %v2757, %v2900
    %2902 = vdwg.mxu0
    %v2903 = vld [vmem:[#allocation2 + $0xe0] sm:$0xff]
    %v2904 = vld [vmem:[#allocation2 + $0xe8] sm:$0xff]
    %v2906 = vsel %vm311, %v2904, 0
    %2908 = vmatprep.subr.mxu0 %v2694
    %2909 = vmatpush1.msra.mxu0 %v2693
    %2910 = vmatprep.subr.mxu0 %v2690
    %2911 = vmatpush1.msra.mxu0 %v2689
    %2912 = vmatprep.subr.mxu0 %v2647
    %2913 = vmatpush1.msra.mxu0 %v2646
    %2914 = vmatprep.subr.mxu0 %v2643
    %2915 = vmatpush1.msra.mxu0 %v2642
    %2916 = vmatprep.subr.mxu0 %v2600
    %2917 = vmatpush1.msra.mxu0 %v2599
    %2918 = vmatprep.subr.mxu0 %v2596
    %2919 = vmatpush1.msra.mxu0 %v2595
    %2920 = vmatprep.subr.mxu0 %v2554
    %2921 = vmatpush1.msra.mxu0 %v2553
    %2922 = vmatprep.subr.mxu0 %v2550
    %2923 = vmatpush1.msra.mxu0 %v2549
    %2924 = vmatprep.subr.mxu0 %v2514
    %2925 = vmatpush1.msra.mxu0 %v2513
    %2926 = vmatprep.subr.mxu0 %v2510
    %2927 = vmatpush1.msra.mxu0 %v2509
    %2928 = vmatprep.subr.mxu0 %v2468
    %2929 = vmatpush1.msra.mxu0 %v2467
    %2930 = vmatprep.subr.mxu0 %v2464
    %2931 = vmatpush1.msra.mxu0 %v2463
    %2932 = vmatprep.subr.mxu0 %v2422
    %2933 = vmatpush1.msra.mxu0 %v2421
    %2934 = vmatprep.subr.mxu0 %v2418
    %2935 = vmatpush1.msra.mxu0 %v2417
    %2936 = vmatprep.subr.mxu0 %v2057
    %2937 = vmatpush1.msra.mxu0 %v2056
    %2938 = vmatprep.subr.mxu0 %v2053
    %2939 = vmatpush1.msra.mxu0 %v2052
    %2940 = vmatprep.subr.mxu0 0.0
    %2941 = vmatpush2.msra.mxu0 0.0
    %2942 = vmatprep.subr.mxu0 0.0
    %2943 = vmatpush2.msra.mxu0 0.0
    %2944 = vmatprep.subr.mxu0 0.0
    %2945 = vmatpush2.msra.mxu0 0.0
    %2946 = vmatprep.subr.mxu0 0.0
    %2947 = vmatpush2.msra.mxu0 0.0
    %2948 = vmatprep.subr.mxu0 0.0
    %2949 = vmatpush2.msra.mxu0 0.0
    %2950 = vmatprep.subr.mxu0 0.0
    %2951 = vmatpush2.msra.mxu0 0.0
    %2952 = vmatprep.subr.mxu0 0.0
    %2953 = vmatpush2.msra.mxu0 0.0
    %2954 = vmatprep.subr.mxu0 0.0
    %2955 = vmatpush2.msra.mxu0 0.0
    %2956 = vmatprep.subr.mxu0 0.0
    %2957 = vmatpush2.msra.mxu0 0.0
    %2958 = vmatprep.subr.mxu0 0.0
    %2959 = vmatpush2.msra.mxu0 0.0
    %2960 = vmatprep.subr.mxu0 0.0
    %2961 = vmatpush2.msra.mxu0 0.0
    %2962 = vmatprep.subr.mxu0 0.0
    %2963 = vmatpush2.msra.mxu0 0.0
    %2964 = vmatprep.subr.mxu0 0.0
    %2965 = vmatpush2.msra.mxu0 0.0
    %2966 = vmatprep.subr.mxu0 0.0
    %2967 = vmatpush2.msra.mxu0 0.0
    %2968 = vmatprep.subr.mxu0 %v2741
    %2969 = vmatpush2.msra.mxu0 %v2740
    %2970 = vmatprep.subr.mxu0 %v2737
    %2971 = vmatpush2.msra.mxu0 %v2736
    %2972 = vmatprep.mubr.f32.mxu0 %v2906
    %2973 = vmatmul.mubr.f32.gmra.mxu0 %v2903
    %v2974 = vpop.f32.mrf.mxu0
    %v2975 = vadd.f32 0.0, %v2974
    %v2976 = vpop.f32.mrf.mxu0
    %v2977 = vadd.f32 0.0, %v2976
    %2978 = vdwg.mxu0
    %2979 = vmatprep.subr.mxu0 %v2696
    %2980 = vmatpush1.msra.mxu0 %v2695
    %2981 = vmatprep.subr.mxu0 %v2692
    %2982 = vmatpush1.msra.mxu0 %v2691
    %2983 = vmatprep.subr.mxu0 %v2649
    %2984 = vmatpush1.msra.mxu0 %v2648
    %2985 = vmatprep.subr.mxu0 %v2645
    %2986 = vmatpush1.msra.mxu0 %v2644
    %2987 = vmatprep.subr.mxu0 %v2602
    %2988 = vmatpush1.msra.mxu0 %v2601
    %2989 = vmatprep.subr.mxu0 %v2598
    %2990 = vmatpush1.msra.mxu0 %v2597
    %2991 = vmatprep.subr.mxu0 %v2556
    %2992 = vmatpush1.msra.mxu0 %v2555
    %2993 = vmatprep.subr.mxu0 %v2552
    %2994 = vmatpush1.msra.mxu0 %v2551
    %2995 = vmatprep.subr.mxu0 %v2516
    %2996 = vmatpush1.msra.mxu0 %v2515
    %2997 = vmatprep.subr.mxu0 %v2512
    %2998 = vmatpush1.msra.mxu0 %v2511
    %2999 = vmatprep.subr.mxu0 %v2470
    %3000 = vmatpush1.msra.mxu0 %v2469
    %3001 = vmatprep.subr.mxu0 %v2466
    %3002 = vmatpush1.msra.mxu0 %v2465
    %3003 = vmatprep.subr.mxu0 %v2424
    %3004 = vmatpush1.msra.mxu0 %v2423
    %3005 = vmatprep.subr.mxu0 %v2420
    %3006 = vmatpush1.msra.mxu0 %v2419
    %3007 = vmatprep.subr.mxu0 %v2059
    %3008 = vmatpush1.msra.mxu0 %v2058
    %3009 = vmatprep.subr.mxu0 %v2055
    %3010 = vmatpush1.msra.mxu0 %v2054
    %3011 = vmatprep.subr.mxu0 0.0
    %3012 = vmatpush2.msra.mxu0 0.0
    %3013 = vmatprep.subr.mxu0 0.0
    %3014 = vmatpush2.msra.mxu0 0.0
    %3015 = vmatprep.subr.mxu0 0.0
    %3016 = vmatpush2.msra.mxu0 0.0
    %3017 = vmatprep.subr.mxu0 0.0
    %3018 = vmatpush2.msra.mxu0 0.0
    %3019 = vmatprep.subr.mxu0 0.0
    %3020 = vmatpush2.msra.mxu0 0.0
    %3021 = vmatprep.subr.mxu0 0.0
    %3022 = vmatpush2.msra.mxu0 0.0
    %3023 = vmatprep.subr.mxu0 0.0
    %3024 = vmatpush2.msra.mxu0 0.0
    %3025 = vmatprep.subr.mxu0 0.0
    %3026 = vmatpush2.msra.mxu0 0.0
    %3027 = vmatprep.subr.mxu0 0.0
    %3028 = vmatpush2.msra.mxu0 0.0
    %3029 = vmatprep.subr.mxu0 0.0
    %3030 = vmatpush2.msra.mxu0 0.0
    %3031 = vmatprep.subr.mxu0 0.0
    %3032 = vmatpush2.msra.mxu0 0.0
    %3033 = vmatprep.subr.mxu0 0.0
    %3034 = vmatpush2.msra.mxu0 0.0
    %3035 = vmatprep.subr.mxu0 0.0
    %3036 = vmatpush2.msra.mxu0 0.0
    %3037 = vmatprep.subr.mxu0 0.0
    %3038 = vmatpush2.msra.mxu0 0.0
    %3039 = vmatprep.subr.mxu0 %v2743
    %3040 = vmatpush2.msra.mxu0 %v2742
    %3041 = vmatprep.subr.mxu0 %v2739
    %3042 = vmatpush2.msra.mxu0 %v2738
    %3043 = vmatprep.mubr.f32.mxu0 %v2906
    %3044 = vmatmul.mubr.f32.gmra.mxu0 %v2903
    %v3045 = vpop.f32.mrf.mxu0
    %v3046 = vadd.f32 0.0, %v3045
    %v3047 = vpop.f32.mrf.mxu0
    %v3048 = vadd.f32 0.0, %v3047
    %3049 = vdwg.mxu0
    %v3050 = vadd.f32 %v2975, %v2977
    %v3051 = vadd.f32 %v3050, %v3046
    %v3052 = vadd.f32 %v3051, %v3048
    %3053 = vadd.xlane.f32.xlu0 %v3052
    %v3054 = vpop.xlane.xlu0 %3053
    %v3055 = vmul.f32 %v2975, %v2975
    %v3056 = vmul.f32 %v2977, %v2977
    %v3057 = vmul.f32 %v3046, %v3046
    %v3058 = vmul.f32 %v3048, %v3048
    %v3059 = vadd.f32 %v3055, %v3056
    %v3060 = vadd.f32 %v3059, %v3057
    %v3061 = vadd.f32 %v3060, %v3058
    %3062 = vadd.xlane.f32.xlu0 %v3061
    %v3063 = vpop.xlane.xlu0 %3062
    %v3064 = vmul.f32 %v3054, 0.001953125
    %v3065 = vmul.f32 %v3063, 0.001953125
    %v3066 = vmul.f32 %v3064, %v3064
    %v3067 = vsub.f32 %v3065, %v3066
    %v3068 = vadd.f32 %v3067, 0.0001
    %v3069 = vrsqrt.pop %v3068
    %v3070 = vmul.f32 %v3069, %v2904
    %v3071 = vsub.f32 %v2975, %v3064
    %v3072 = vsub.f32 %v2977, %v3064
    %v3073 = vsub.f32 %v3046, %v3064
    %v3074 = vsub.f32 %v3048, %v3064
    %3076 = vset.pattern.permute.xlu0 16
    %3077 = vperm.xlu0 %3076, %v3070
    %v3078 = vpop.permute.xlu0 %3077
    %v3080 = vmul.f32 %v3071, %v3078
    %v3081 = vmul.f32 %v3072, %v3078
    %v3082 = vmul.f32 %v3073, %v3078
    %v3083 = vmul.f32 %v3074, %v3078
    %3084 = vset.pattern.permute.xlu0 17
    %3085 = vperm.xlu0 %3084, %v2904
    %v3086 = vpop.permute.xlu0 %3085
    %v3088 = vadd.f32 %v3080, %v3086
    %v3089 = vadd.f32 %v3081, %v3086
    %v3090 = vadd.f32 %v3082, %v3086
    %v3091 = vadd.f32 %v3083, %v3086
    %vm3092 = vcmp.gt.f32.partialorder %v3088, 0.0
    %vm3093 = vcmp.gt.f32.partialorder %v3089, 0.0
    %vm3094 = vcmp.gt.f32.partialorder %v3090, 0.0
    %vm3095 = vcmp.gt.f32.partialorder %v3091, 0.0
    %v3096 = vmul.f32 %v3088, 1.442695
    %v3097 = vpow.pop %v3096
    %v3098 = vmul.f32 %v3089, 1.442695
    %v3099 = vpow.pop %v3098
    %v3100 = vmul.f32 %v3090, 1.442695
    %v3101 = vpow.pop %v3100
    %v3102 = vmul.f32 %v3091, 1.442695
    %v3103 = vpow.pop %v3102
    %v3104 = vsub.f32 %v3097, 1.0
    %v3105 = vsub.f32 %v3099, 1.0
    %v3106 = vsub.f32 %v3101, 1.0
    %v3107 = vsub.f32 %v3103, 1.0
    %v3108 = vsel %vm3092, %v3088, %v3104
    %v3109 = vsel %vm3093, %v3089, %v3105
    %v3110 = vsel %vm3094, %v3090, %v3106
    %v3111 = vsel %vm3095, %v3091, %v3107
    %3116 = vrot.lane.b32.xlu0 %v3108, 17
    %v3117 = vpop.permute.xlu0 %3116
    %3118 = vrot.lane.b32.xlu0 %v3109, 17
    %v3119 = vpop.permute.xlu0 %3118
    %3120 = vrot.lane.b32.xlu0 %v3110, 17
    %v3121 = vpop.permute.xlu0 %3120
    %3122 = vrot.lane.b32.xlu0 %v3111, 17
    %v3123 = vpop.permute.xlu0 %3122
    %v3124 = vsel %vm2007, %v3117, %v3119
    %v3125 = vsel %vm2007, %v3119, %v3121
    %v3126 = vsel %vm2007, %v3121, %v3123
    %v3132 = vsel %vm2007, 0.0, %v3117
    %v3133 = vsel %vm2007, %v3123, 0.0
    %v3134 = vmul.f32 %v3132, %v2039
    %v3135 = vmul.f32 %v3124, %v2043
    %v3136 = vmul.f32 %v3125, %v2047
    %v3137 = vmul.f32 %v3126, %v2051
    %v3138 = vmul.f32 %v3132, %v2081
    %v3139 = vmul.f32 %v3124, %v2089
    %v3140 = vmul.f32 %v3125, %v2090
    %v3141 = vmul.f32 %v3126, %v2091
    %v3142 = vmul.f32 %v3133, %v2087
    %v3143 = vmul.f32 %v3132, %v2128
    %v3144 = vmul.f32 %v3124, %v2136
    %v3145 = vmul.f32 %v3125, %v2137
    %v3146 = vmul.f32 %v3126, %v2138
    %v3147 = vmul.f32 %v3133, %v2134
    %v3148 = vmul.f32 %v3132, %v2175
    %v3149 = vmul.f32 %v3124, %v2182
    %v3150 = vmul.f32 %v3125, %v2183
    %v3151 = vmul.f32 %v3126, %v2184
    %v3152 = vmul.f32 %v3133, %v2181
    %v3153 = vmul.f32 %v3132, %v2221
    %v3154 = vmul.f32 %v3124, %v2229
    %v3155 = vmul.f32 %v3125, %v2230
    %v3156 = vmul.f32 %v3126, %v2231
    %v3157 = vmul.f32 %v3133, %v2227
    %v3158 = vmul.f32 %v3132, %v2268
    %v3159 = vmul.f32 %v3124, %v2275
    %v3160 = vmul.f32 %v3125, %v2276
    %v3161 = vmul.f32 %v3126, %v2277
    %v3162 = vmul.f32 %v3133, %v2274
    %v3163 = vmul.f32 %v3132, %v2314
    %v3164 = vmul.f32 %v3124, %v2322
    %v3165 = vmul.f32 %v3125, %v2323
    %v3166 = vmul.f32 %v3126, %v2324
    %v3167 = vmul.f32 %v3133, %v2320
    %v3168 = vmul.f32 %v3132, %v2361
    %v3169 = vmul.f32 %v3124, %v2369
    %v3170 = vmul.f32 %v3125, %v2370
    %v3171 = vmul.f32 %v3126, %v2371
    %v3172 = vmul.f32 %v3133, %v2367
    %3178 = vrot.lane.b32.xlu0 %v3138, 127
    %v3179 = vpop.permute.xlu0 %3178
    %3180 = vrot.lane.b32.xlu0 %v3139, 127
    %v3181 = vpop.permute.xlu0 %3180
    %3182 = vrot.lane.b32.xlu0 %v3140, 127
    %v3183 = vpop.permute.xlu0 %3182
    %3184 = vrot.lane.b32.xlu0 %v3141, 127
    %v3185 = vpop.permute.xlu0 %3184
    %3186 = vrot.lane.b32.xlu0 %v3142, 127
    %v3187 = vpop.permute.xlu0 %3186
    %v3188 = vsel %vm1212, %v3179, %v3181
    %v3189 = vsel %vm1212, %v3181, %v3183
    %v3190 = vsel %vm1212, %v3183, %v3185
    %v3191 = vsel %vm1212, %v3185, %v3187
    %3201 = vrot.lane.b32.xlu0 %v3143, 126
    %v3202 = vpop.permute.xlu0 %3201
    %3203 = vrot.lane.b32.xlu0 %v3144, 126
    %v3204 = vpop.permute.xlu0 %3203
    %3205 = vrot.lane.b32.xlu0 %v3145, 126
    %v3206 = vpop.permute.xlu0 %3205
    %3207 = vrot.lane.b32.xlu0 %v3146, 126
    %v3208 = vpop.permute.xlu0 %3207
    %3209 = vrot.lane.b32.xlu0 %v3147, 126
    %v3210 = vpop.permute.xlu0 %3209
    %v3211 = vsel %vm1229, %v3202, %v3204
    %v3212 = vsel %vm1229, %v3204, %v3206
    %v3213 = vsel %vm1229, %v3206, %v3208
    %v3214 = vsel %vm1229, %v3208, %v3210
    %3224 = vrot.lane.b32.xlu0 %v3148, 112
    %v3225 = vpop.permute.xlu0 %3224
    %3226 = vrot.lane.b32.xlu0 %v3149, 112
    %v3227 = vpop.permute.xlu0 %3226
    %3228 = vrot.lane.b32.xlu0 %v3150, 112
    %v3229 = vpop.permute.xlu0 %3228
    %3230 = vrot.lane.b32.xlu0 %v3151, 112
    %v3231 = vpop.permute.xlu0 %3230
    %3232 = vrot.lane.b32.xlu0 %v3152, 112
    %v3233 = vpop.permute.xlu0 %3232
    %v3234 = vsel %vm1297, %v3225, %v3227
    %v3235 = vsel %vm1297, %v3227, %v3229
    %v3236 = vsel %vm1297, %v3229, %v3231
    %v3237 = vsel %vm1297, %v3231, %v3233
    %3244 = vrot.lane.b32.xlu0 %v3132, 111
    %v3245 = vpop.permute.xlu0 %3244
    %3246 = vrot.lane.b32.xlu0 %v3124, 111
    %v3247 = vpop.permute.xlu0 %3246
    %3248 = vrot.lane.b32.xlu0 %v3125, 111
    %v3249 = vpop.permute.xlu0 %3248
    %3250 = vrot.lane.b32.xlu0 %v3126, 111
    %v3251 = vpop.permute.xlu0 %3250
    %3252 = vrot.lane.b32.xlu0 %v3133, 111
    %v3253 = vpop.permute.xlu0 %3252
    %v3254 = vsel %vm1314, %v3245, %v3247
    %v3255 = vsel %vm1314, %v3247, %v3249
    %v3256 = vsel %vm1314, %v3249, %v3251
    %v3257 = vsel %vm1314, %v3251, %v3253
    %3267 = vrot.lane.b32.xlu0 %v3153, 110
    %v3268 = vpop.permute.xlu0 %3267
    %3269 = vrot.lane.b32.xlu0 %v3154, 110
    %v3270 = vpop.permute.xlu0 %3269
    %3271 = vrot.lane.b32.xlu0 %v3155, 110
    %v3272 = vpop.permute.xlu0 %3271
    %3273 = vrot.lane.b32.xlu0 %v3156, 110
    %v3274 = vpop.permute.xlu0 %3273
    %3275 = vrot.lane.b32.xlu0 %v3157, 110
    %v3276 = vpop.permute.xlu0 %3275
    %v3277 = vsel %vm1331, %v3268, %v3270
    %v3278 = vsel %vm1331, %v3270, %v3272
    %v3279 = vsel %vm1331, %v3272, %v3274
    %v3280 = vsel %vm1331, %v3274, %v3276
    %3290 = vrot.lane.b32.xlu0 %v3158, 96
    %v3291 = vpop.permute.xlu0 %3290
    %3292 = vrot.lane.b32.xlu0 %v3159, 96
    %v3293 = vpop.permute.xlu0 %3292
    %3294 = vrot.lane.b32.xlu0 %v3160, 96
    %v3295 = vpop.permute.xlu0 %3294
    %3296 = vrot.lane.b32.xlu0 %v3161, 96
    %v3297 = vpop.permute.xlu0 %3296
    %3298 = vrot.lane.b32.xlu0 %v3162, 96
    %v3299 = vpop.permute.xlu0 %3298
    %v3300 = vsel %vm2641, %v3291, %v3293
    %v3301 = vsel %vm2641, %v3293, %v3295
    %v3302 = vsel %vm2641, %v3295, %v3297
    %v3303 = vsel %vm2641, %v3297, %v3299
    %3313 = vrot.lane.b32.xlu0 %v3163, 95
    %v3314 = vpop.permute.xlu0 %3313
    %3315 = vrot.lane.b32.xlu0 %v3164, 95
    %v3316 = vpop.permute.xlu0 %3315
    %3317 = vrot.lane.b32.xlu0 %v3165, 95
    %v3318 = vpop.permute.xlu0 %3317
    %3319 = vrot.lane.b32.xlu0 %v3166, 95
    %v3320 = vpop.permute.xlu0 %3319
    %3321 = vrot.lane.b32.xlu0 %v3167, 95
    %v3322 = vpop.permute.xlu0 %3321
    %v3323 = vsel %vm2688, %v3314, %v3316
    %v3324 = vsel %vm2688, %v3316, %v3318
    %v3325 = vsel %vm2688, %v3318, %v3320
    %v3326 = vsel %vm2688, %v3320, %v3322
    %3336 = vrot.lane.b32.xlu0 %v3168, 94
    %v3337 = vpop.permute.xlu0 %3336
    %3338 = vrot.lane.b32.xlu0 %v3169, 94
    %v3339 = vpop.permute.xlu0 %3338
    %3340 = vrot.lane.b32.xlu0 %v3170, 94
    %v3341 = vpop.permute.xlu0 %3340
    %3342 = vrot.lane.b32.xlu0 %v3171, 94
    %v3343 = vpop.permute.xlu0 %3342
    %3344 = vrot.lane.b32.xlu0 %v3172, 94
    %v3345 = vpop.permute.xlu0 %3344
    %v3346 = vsel %vm2735, %v3337, %v3339
    %v3347 = vsel %vm2735, %v3339, %v3341
    %v3348 = vsel %vm2735, %v3341, %v3343
    %v3349 = vsel %vm2735, %v3343, %v3345
    %v3354 = vld [vmem:[#allocation2 + $0xf0] sm:$0xff]
    %v3356 = vsel %vm465, %v3354, 0
    %3358 = vmatprep.subr.mxu0 0.0
    %3359 = vmatpush1.msra.mxu0 0.0
    %3360 = vmatprep.subr.mxu0 0.0
    %3361 = vmatpush1.msra.mxu0 0.0
    %3362 = vmatprep.subr.mxu0 0.0
    %3363 = vmatpush1.msra.mxu0 0.0
    %3364 = vmatprep.subr.mxu0 0.0
    %3365 = vmatpush1.msra.mxu0 0.0
    %3366 = vmatprep.subr.mxu0 0.0
    %3367 = vmatpush1.msra.mxu0 0.0
    %3368 = vmatprep.subr.mxu0 0.0
    %3369 = vmatpush1.msra.mxu0 0.0
    %3370 = vmatprep.subr.mxu0 0.0
    %3371 = vmatpush1.msra.mxu0 0.0
    %3372 = vmatprep.subr.mxu0 %v3347
    %3373 = vmatpush1.msra.mxu0 %v3346
    %3374 = vmatprep.subr.mxu0 %v3324
    %3375 = vmatpush1.msra.mxu0 %v3323
    %3376 = vmatprep.subr.mxu0 %v3301
    %3377 = vmatpush1.msra.mxu0 %v3300
    %3378 = vmatprep.subr.mxu0 %v3278
    %3379 = vmatpush1.msra.mxu0 %v3277
    %3380 = vmatprep.subr.mxu0 %v3255
    %3381 = vmatpush1.msra.mxu0 %v3254
    %3382 = vmatprep.subr.mxu0 %v3235
    %3383 = vmatpush1.msra.mxu0 %v3234
    %3384 = vmatprep.subr.mxu0 %v3212
    %3385 = vmatpush1.msra.mxu0 %v3211
    %3386 = vmatprep.subr.mxu0 %v3189
    %3387 = vmatpush1.msra.mxu0 %v3188
    %3388 = vmatprep.subr.mxu0 %v3135
    %3389 = vmatpush1.msra.mxu0 %v3134
    %3390 = vmatprep.subr.mxu0 0.0
    %3391 = vmatpush2.msra.mxu0 0.0
    %3392 = vmatprep.subr.mxu0 0.0
    %3393 = vmatpush2.msra.mxu0 0.0
    %3394 = vmatprep.subr.mxu0 0.0
    %3395 = vmatpush2.msra.mxu0 0.0
    %3396 = vmatprep.subr.mxu0 0.0
    %3397 = vmatpush2.msra.mxu0 0.0
    %3398 = vmatprep.subr.mxu0 0.0
    %3399 = vmatpush2.msra.mxu0 0.0
    %3400 = vmatprep.subr.mxu0 0.0
    %3401 = vmatpush2.msra.mxu0 0.0
    %3402 = vmatprep.subr.mxu0 0.0
    %3403 = vmatpush2.msra.mxu0 0.0
    %3404 = vmatprep.subr.mxu0 0.0
    %3405 = vmatpush2.msra.mxu0 0.0
    %3406 = vmatprep.subr.mxu0 0.0
    %3407 = vmatpush2.msra.mxu0 0.0
    %3408 = vmatprep.subr.mxu0 0.0
    %3409 = vmatpush2.msra.mxu0 0.0
    %3410 = vmatprep.subr.mxu0 0.0
    %3411 = vmatpush2.msra.mxu0 0.0
    %3412 = vmatprep.subr.mxu0 0.0
    %3413 = vmatpush2.msra.mxu0 0.0
    %3414 = vmatprep.subr.mxu0 0.0
    %3415 = vmatpush2.msra.mxu0 0.0
    %3416 = vmatprep.subr.mxu0 0.0
    %3417 = vmatpush2.msra.mxu0 0.0
    %3418 = vmatprep.subr.mxu0 0.0
    %3419 = vmatpush2.msra.mxu0 0.0
    %3420 = vmatprep.subr.mxu0 0.0
    %3421 = vmatpush2.msra.mxu0 0.0
    %3422 = vmatprep.mubr.f32.mxu0 0.0
    %3423 = vmatmul.mubr.f32.gmra.mxu0 %v3356
    %v3424 = vpop.f32.mrf.mxu0
    %v3425 = vadd.f32 0.0, %v3424
    %v3426 = vpop.f32.mrf.mxu0
    %v3427 = vadd.f32 0.0, %v3426
    %3428 = vdwg.mxu0
    %3429 = vmatprep.subr.mxu0 0.0
    %3430 = vmatpush1.msra.mxu0 0.0
    %3431 = vmatprep.subr.mxu0 0.0
    %3432 = vmatpush1.msra.mxu0 0.0
    %3433 = vmatprep.subr.mxu0 0.0
    %3434 = vmatpush1.msra.mxu0 0.0
    %3435 = vmatprep.subr.mxu0 0.0
    %3436 = vmatpush1.msra.mxu0 0.0
    %3437 = vmatprep.subr.mxu0 0.0
    %3438 = vmatpush1.msra.mxu0 0.0
    %3439 = vmatprep.subr.mxu0 0.0
    %3440 = vmatpush1.msra.mxu0 0.0
    %3441 = vmatprep.subr.mxu0 0.0
    %3442 = vmatpush1.msra.mxu0 0.0
    %3443 = vmatprep.subr.mxu0 %v3349
    %3444 = vmatpush1.msra.mxu0 %v3348
    %3445 = vmatprep.subr.mxu0 %v3326
    %3446 = vmatpush1.msra.mxu0 %v3325
    %3447 = vmatprep.subr.mxu0 %v3303
    %3448 = vmatpush1.msra.mxu0 %v3302
    %3449 = vmatprep.subr.mxu0 %v3280
    %3450 = vmatpush1.msra.mxu0 %v3279
    %3451 = vmatprep.subr.mxu0 %v3257
    %3452 = vmatpush1.msra.mxu0 %v3256
    %3453 = vmatprep.subr.mxu0 %v3237
    %3454 = vmatpush1.msra.mxu0 %v3236
    %3455 = vmatprep.subr.mxu0 %v3214
    %3456 = vmatpush1.msra.mxu0 %v3213
    %3457 = vmatprep.subr.mxu0 %v3191
    %3458 = vmatpush1.msra.mxu0 %v3190
    %3459 = vmatprep.subr.mxu0 %v3137
    %3460 = vmatpush1.msra.mxu0 %v3136
    %3461 = vmatprep.subr.mxu0 0.0
    %3462 = vmatpush2.msra.mxu0 0.0
    %3463 = vmatprep.subr.mxu0 0.0
    %3464 = vmatpush2.msra.mxu0 0.0
    %3465 = vmatprep.subr.mxu0 0.0
    %3466 = vmatpush2.msra.mxu0 0.0
    %3467 = vmatprep.subr.mxu0 0.0
    %3468 = vmatpush2.msra.mxu0 0.0
    %3469 = vmatprep.subr.mxu0 0.0
    %3470 = vmatpush2.msra.mxu0 0.0
    %3471 = vmatprep.subr.mxu0 0.0
    %3472 = vmatpush2.msra.mxu0 0.0
    %3473 = vmatprep.subr.mxu0 0.0
    %3474 = vmatpush2.msra.mxu0 0.0
    %3475 = vmatprep.subr.mxu0 0.0
    %3476 = vmatpush2.msra.mxu0 0.0
    %3477 = vmatprep.subr.mxu0 0.0
    %3478 = vmatpush2.msra.mxu0 0.0
    %3479 = vmatprep.subr.mxu0 0.0
    %3480 = vmatpush2.msra.mxu0 0.0
    %3481 = vmatprep.subr.mxu0 0.0
    %3482 = vmatpush2.msra.mxu0 0.0
    %3483 = vmatprep.subr.mxu0 0.0
    %3484 = vmatpush2.msra.mxu0 0.0
    %3485 = vmatprep.subr.mxu0 0.0
    %3486 = vmatpush2.msra.mxu0 0.0
    %3487 = vmatprep.subr.mxu0 0.0
    %3488 = vmatpush2.msra.mxu0 0.0
    %3489 = vmatprep.subr.mxu0 0.0
    %3490 = vmatpush2.msra.mxu0 0.0
    %3491 = vmatprep.subr.mxu0 0.0
    %3492 = vmatpush2.msra.mxu0 0.0
    %3493 = vmatprep.mubr.f32.mxu0 0.0
    %3494 = vmatmul.mubr.f32.gmra.mxu0 %v3356
    %v3495 = vpop.f32.mrf.mxu0
    %v3496 = vadd.f32 0.0, %v3495
    %v3497 = vpop.f32.mrf.mxu0
    %v3498 = vadd.f32 0.0, %v3497
    %3499 = vdwg.mxu0
    %v3500 = vadd.f32 %v3425, %v3427
    %v3501 = vadd.f32 %v3500, %v3496
    %v3502 = vadd.f32 %v3501, %v3498
    %3503 = vadd.xlane.f32.xlu0 %v3502
    %v3504 = vpop.xlane.xlu0 %3503
    %v3505 = vmul.f32 %v3425, %v3425
    %v3506 = vmul.f32 %v3427, %v3427
    %v3507 = vmul.f32 %v3496, %v3496
    %v3508 = vmul.f32 %v3498, %v3498
    %v3509 = vadd.f32 %v3505, %v3506
    %v3510 = vadd.f32 %v3509, %v3507
    %v3511 = vadd.f32 %v3510, %v3508
    %3512 = vadd.xlane.f32.xlu0 %v3511
    %v3513 = vpop.xlane.xlu0 %3512
    %v3514 = vmul.f32 %v3504, 0.001953125
    %v3515 = vmul.f32 %v3513, 0.001953125
    %v3516 = vmul.f32 %v3514, %v3514
    %v3517 = vsub.f32 %v3515, %v3516
    %v3518 = vadd.f32 %v3517, 0.0001
    %v3519 = vrsqrt.pop %v3518
    %v3520 = vld [vmem:[#allocation2 + $0xf8] sm:$0xff]
    %v3521 = vmul.f32 %v3519, %v3520
    %v3522 = vsub.f32 %v3425, %v3514
    %v3523 = vsub.f32 %v3427, %v3514
    %v3524 = vsub.f32 %v3496, %v3514
    %v3525 = vsub.f32 %v3498, %v3514
    %3527 = vset.pattern.permute.xlu0 16
    %3528 = vperm.xlu0 %3527, %v3521
    %v3529 = vpop.permute.xlu0 %3528
    %v3531 = vmul.f32 %v3522, %v3529
    %v3532 = vmul.f32 %v3523, %v3529
    %v3533 = vmul.f32 %v3524, %v3529
    %v3534 = vmul.f32 %v3525, %v3529
    %3536 = vset.pattern.permute.xlu0 17
    %3537 = vperm.xlu0 %3536, %v3520
    %v3538 = vpop.permute.xlu0 %3537
    %v3540 = vadd.f32 %v3531, %v3538
    %v3541 = vadd.f32 %v3532, %v3538
    %v3542 = vadd.f32 %v3533, %v3538
    %v3543 = vadd.f32 %v3534, %v3538
    %v3544 = vadd.f32 %v3540, %v2828
    %v3545 = vadd.f32 %v3541, %v2830
    %v3546 = vadd.f32 %v3542, %v2899
    %v3547 = vadd.f32 %v3543, %v2901
    %vm3548 = vcmp.gt.f32.partialorder %v3544, 0.0
    %vm3549 = vcmp.gt.f32.partialorder %v3545, 0.0
    %vm3550 = vcmp.gt.f32.partialorder %v3546, 0.0
    %vm3551 = vcmp.gt.f32.partialorder %v3547, 0.0
    %v3552 = vmul.f32 %v3544, 1.442695
    %v3553 = vpow.pop %v3552
    %v3554 = vmul.f32 %v3545, 1.442695
    %v3555 = vpow.pop %v3554
    %v3556 = vmul.f32 %v3546, 1.442695
    %v3557 = vpow.pop %v3556
    %v3558 = vmul.f32 %v3547, 1.442695
    %v3559 = vpow.pop %v3558
    %v3560 = vsub.f32 %v3553, 1.0
    %v3561 = vsub.f32 %v3555, 1.0
    %v3562 = vsub.f32 %v3557, 1.0
    %v3563 = vsub.f32 %v3559, 1.0
    %v3564 = vsel %vm3548, %v3544, %v3560
    %v3565 = vsel %vm3549, %v3545, %v3561
    %v3566 = vsel %vm3550, %v3546, %v3562
    %v3567 = vsel %vm3551, %v3547, %v3563
    %3572 = vrot.lane.b32.xlu0 %v3564, 17
    %v3573 = vpop.permute.xlu0 %3572
    %3574 = vrot.lane.b32.xlu0 %v3565, 17
    %v3575 = vpop.permute.xlu0 %3574
    %3576 = vrot.lane.b32.xlu0 %v3566, 17
    %v3577 = vpop.permute.xlu0 %3576
    %3578 = vrot.lane.b32.xlu0 %v3567, 17
    %v3579 = vpop.permute.xlu0 %3578
    %v3580 = vsel %vm2007, %v3573, %v3575
    %v3581 = vsel %vm2007, %v3575, %v3577
    %v3582 = vsel %vm2007, %v3577, %v3579
    %v3588 = vsel %vm2007, 0.0, %v3573
    %v3589 = vsel %vm2007, %v3579, 0.0
    %v3590 = vmul.f32 %v3588, %v2039
    %v3591 = vmul.f32 %v3580, %v2043
    %v3592 = vmul.f32 %v3581, %v2047
    %v3593 = vmul.f32 %v3582, %v2051
    %v3594 = vmul.f32 %v3588, %v2081
    %v3595 = vmul.f32 %v3580, %v2089
    %v3596 = vmul.f32 %v3581, %v2090
    %v3597 = vmul.f32 %v3582, %v2091
    %v3598 = vmul.f32 %v3589, %v2087
    %v3599 = vmul.f32 %v3588, %v2128
    %v3600 = vmul.f32 %v3580, %v2136
    %v3601 = vmul.f32 %v3581, %v2137
    %v3602 = vmul.f32 %v3582, %v2138
    %v3603 = vmul.f32 %v3589, %v2134
    %v3604 = vmul.f32 %v3588, %v2175
    %v3605 = vmul.f32 %v3580, %v2182
    %v3606 = vmul.f32 %v3581, %v2183
    %v3607 = vmul.f32 %v3582, %v2184
    %v3608 = vmul.f32 %v3589, %v2181
    %v3609 = vmul.f32 %v3588, %v2221
    %v3610 = vmul.f32 %v3580, %v2229
    %v3611 = vmul.f32 %v3581, %v2230
    %v3612 = vmul.f32 %v3582, %v2231
    %v3613 = vmul.f32 %v3589, %v2227
    %v3614 = vmul.f32 %v3588, %v2268
    %v3615 = vmul.f32 %v3580, %v2275
    %v3616 = vmul.f32 %v3581, %v2276
    %v3617 = vmul.f32 %v3582, %v2277
    %v3618 = vmul.f32 %v3589, %v2274
    %v3619 = vmul.f32 %v3588, %v2314
    %v3620 = vmul.f32 %v3580, %v2322
    %v3621 = vmul.f32 %v3581, %v2323
    %v3622 = vmul.f32 %v3582, %v2324
    %v3623 = vmul.f32 %v3589, %v2320
    %v3624 = vmul.f32 %v3588, %v2361
    %v3625 = vmul.f32 %v3580, %v2369
    %v3626 = vmul.f32 %v3581, %v2370
    %v3627 = vmul.f32 %v3582, %v2371
    %v3628 = vmul.f32 %v3589, %v2367
    %3634 = vrot.lane.b32.xlu0 %v3594, 127
    %v3635 = vpop.permute.xlu0 %3634
    %3636 = vrot.lane.b32.xlu0 %v3595, 127
    %v3637 = vpop.permute.xlu0 %3636
    %3638 = vrot.lane.b32.xlu0 %v3596, 127
    %v3639 = vpop.permute.xlu0 %3638
    %3640 = vrot.lane.b32.xlu0 %v3597, 127
    %v3641 = vpop.permute.xlu0 %3640
    %3642 = vrot.lane.b32.xlu0 %v3598, 127
    %v3643 = vpop.permute.xlu0 %3642
    %v3644 = vsel %vm1212, %v3635, %v3637
    %v3645 = vsel %vm1212, %v3637, %v3639
    %v3646 = vsel %vm1212, %v3639, %v3641
    %v3647 = vsel %vm1212, %v3641, %v3643
    %3657 = vrot.lane.b32.xlu0 %v3599, 126
    %v3658 = vpop.permute.xlu0 %3657
    %3659 = vrot.lane.b32.xlu0 %v3600, 126
    %v3660 = vpop.permute.xlu0 %3659
    %3661 = vrot.lane.b32.xlu0 %v3601, 126
    %v3662 = vpop.permute.xlu0 %3661
    %3663 = vrot.lane.b32.xlu0 %v3602, 126
    %v3664 = vpop.permute.xlu0 %3663
    %3665 = vrot.lane.b32.xlu0 %v3603, 126
    %v3666 = vpop.permute.xlu0 %3665
    %v3667 = vsel %vm1229, %v3658, %v3660
    %v3668 = vsel %vm1229, %v3660, %v3662
    %v3669 = vsel %vm1229, %v3662, %v3664
    %v3670 = vsel %vm1229, %v3664, %v3666
    %3680 = vrot.lane.b32.xlu0 %v3604, 112
    %v3681 = vpop.permute.xlu0 %3680
    %3682 = vrot.lane.b32.xlu0 %v3605, 112
    %v3683 = vpop.permute.xlu0 %3682
    %3684 = vrot.lane.b32.xlu0 %v3606, 112
    %v3685 = vpop.permute.xlu0 %3684
    %3686 = vrot.lane.b32.xlu0 %v3607, 112
    %v3687 = vpop.permute.xlu0 %3686
    %3688 = vrot.lane.b32.xlu0 %v3608, 112
    %v3689 = vpop.permute.xlu0 %3688
    %v3690 = vsel %vm1297, %v3681, %v3683
    %v3691 = vsel %vm1297, %v3683, %v3685
    %v3692 = vsel %vm1297, %v3685, %v3687
    %v3693 = vsel %vm1297, %v3687, %v3689
    %3700 = vrot.lane.b32.xlu0 %v3588, 111
    %v3701 = vpop.permute.xlu0 %3700
    %3702 = vrot.lane.b32.xlu0 %v3580, 111
    %v3703 = vpop.permute.xlu0 %3702
    %3704 = vrot.lane.b32.xlu0 %v3581, 111
    %v3705 = vpop.permute.xlu0 %3704
    %3706 = vrot.lane.b32.xlu0 %v3582, 111
    %v3707 = vpop.permute.xlu0 %3706
    %3708 = vrot.lane.b32.xlu0 %v3589, 111
    %v3709 = vpop.permute.xlu0 %3708
    %v3710 = vsel %vm1314, %v3701, %v3703
    %v3711 = vsel %vm1314, %v3703, %v3705
    %v3712 = vsel %vm1314, %v3705, %v3707
    %v3713 = vsel %vm1314, %v3707, %v3709
    %3723 = vrot.lane.b32.xlu0 %v3609, 110
    %v3724 = vpop.permute.xlu0 %3723
    %3725 = vrot.lane.b32.xlu0 %v3610, 110
    %v3726 = vpop.permute.xlu0 %3725
    %3727 = vrot.lane.b32.xlu0 %v3611, 110
    %v3728 = vpop.permute.xlu0 %3727
    %3729 = vrot.lane.b32.xlu0 %v3612, 110
    %v3730 = vpop.permute.xlu0 %3729
    %3731 = vrot.lane.b32.xlu0 %v3613, 110
    %v3732 = vpop.permute.xlu0 %3731
    %v3733 = vsel %vm1331, %v3724, %v3726
    %v3734 = vsel %vm1331, %v3726, %v3728
    %v3735 = vsel %vm1331, %v3728, %v3730
    %v3736 = vsel %vm1331, %v3730, %v3732
    %3746 = vrot.lane.b32.xlu0 %v3614, 96
    %v3747 = vpop.permute.xlu0 %3746
    %3748 = vrot.lane.b32.xlu0 %v3615, 96
    %v3749 = vpop.permute.xlu0 %3748
    %3750 = vrot.lane.b32.xlu0 %v3616, 96
    %v3751 = vpop.permute.xlu0 %3750
    %3752 = vrot.lane.b32.xlu0 %v3617, 96
    %v3753 = vpop.permute.xlu0 %3752
    %3754 = vrot.lane.b32.xlu0 %v3618, 96
    %v3755 = vpop.permute.xlu0 %3754
    %v3756 = vsel %vm2641, %v3747, %v3749
    %v3757 = vsel %vm2641, %v3749, %v3751
    %v3758 = vsel %vm2641, %v3751, %v3753
    %v3759 = vsel %vm2641, %v3753, %v3755
    %3769 = vrot.lane.b32.xlu0 %v3619, 95
    %v3770 = vpop.permute.xlu0 %3769
    %3771 = vrot.lane.b32.xlu0 %v3620, 95
    %v3772 = vpop.permute.xlu0 %3771
    %3773 = vrot.lane.b32.xlu0 %v3621, 95
    %v3774 = vpop.permute.xlu0 %3773
    %3775 = vrot.lane.b32.xlu0 %v3622, 95
    %v3776 = vpop.permute.xlu0 %3775
    %3777 = vrot.lane.b32.xlu0 %v3623, 95
    %v3778 = vpop.permute.xlu0 %3777
    %v3779 = vsel %vm2688, %v3770, %v3772
    %v3780 = vsel %vm2688, %v3772, %v3774
    %v3781 = vsel %vm2688, %v3774, %v3776
    %v3782 = vsel %vm2688, %v3776, %v3778
    %3792 = vrot.lane.b32.xlu0 %v3624, 94
    %v3793 = vpop.permute.xlu0 %3792
    %3794 = vrot.lane.b32.xlu0 %v3625, 94
    %v3795 = vpop.permute.xlu0 %3794
    %3796 = vrot.lane.b32.xlu0 %v3626, 94
    %v3797 = vpop.permute.xlu0 %3796
    %3798 = vrot.lane.b32.xlu0 %v3627, 94
    %v3799 = vpop.permute.xlu0 %3798
    %3800 = vrot.lane.b32.xlu0 %v3628, 94
    %v3801 = vpop.permute.xlu0 %3800
    %v3802 = vsel %vm2735, %v3793, %v3795
    %v3803 = vsel %vm2735, %v3795, %v3797
    %v3804 = vsel %vm2735, %v3797, %v3799
    %v3805 = vsel %vm2735, %v3799, %v3801
    %v3810 = vld [vmem:[#allocation2 + $0x100] sm:$0x7]
    %v3811 = vld [vmem:[#allocation2 + $0x108] sm:$0x7]
    %3813 = vset.pattern.permute.xlu0 16
    %3814 = vperm.xlu0 %3813, %v3811
    %v3815 = vpop.permute.xlu0 %3814
    %v3818 = vsel %vm465, %v3810, 0
    %3820 = vmatprep.subr.mxu0 0.0
    %3821 = vmatpush1.msra.mxu0 0.0
    %3822 = vmatprep.subr.mxu0 0.0
    %3823 = vmatpush1.msra.mxu0 0.0
    %3824 = vmatprep.subr.mxu0 0.0
    %3825 = vmatpush1.msra.mxu0 0.0
    %3826 = vmatprep.subr.mxu0 0.0
    %3827 = vmatpush1.msra.mxu0 0.0
    %3828 = vmatprep.subr.mxu0 0.0
    %3829 = vmatpush1.msra.mxu0 0.0
    %3830 = vmatprep.subr.mxu0 0.0
    %3831 = vmatpush1.msra.mxu0 0.0
    %3832 = vmatprep.subr.mxu0 0.0
    %3833 = vmatpush1.msra.mxu0 0.0
    %3834 = vmatprep.subr.mxu0 %v3803
    %3835 = vmatpush1.msra.mxu0 %v3802
    %3836 = vmatprep.subr.mxu0 %v3780
    %3837 = vmatpush1.msra.mxu0 %v3779
    %3838 = vmatprep.subr.mxu0 %v3757
    %3839 = vmatpush1.msra.mxu0 %v3756
    %3840 = vmatprep.subr.mxu0 %v3734
    %3841 = vmatpush1.msra.mxu0 %v3733
    %3842 = vmatprep.subr.mxu0 %v3711
    %3843 = vmatpush1.msra.mxu0 %v3710
    %3844 = vmatprep.subr.mxu0 %v3691
    %3845 = vmatpush1.msra.mxu0 %v3690
    %3846 = vmatprep.subr.mxu0 %v3668
    %3847 = vmatpush1.msra.mxu0 %v3667
    %3848 = vmatprep.subr.mxu0 %v3645
    %3849 = vmatpush1.msra.mxu0 %v3644
    %3850 = vmatprep.subr.mxu0 %v3591
    %3851 = vmatpush1.msra.mxu0 %v3590
    %3852 = vmatprep.subr.mxu0 0.0
    %3853 = vmatpush2.msra.mxu0 0.0
    %3854 = vmatprep.subr.mxu0 0.0
    %3855 = vmatpush2.msra.mxu0 0.0
    %3856 = vmatprep.subr.mxu0 0.0
    %3857 = vmatpush2.msra.mxu0 0.0
    %3858 = vmatprep.subr.mxu0 0.0
    %3859 = vmatpush2.msra.mxu0 0.0
    %3860 = vmatprep.subr.mxu0 0.0
    %3861 = vmatpush2.msra.mxu0 0.0
    %3862 = vmatprep.subr.mxu0 0.0
    %3863 = vmatpush2.msra.mxu0 0.0
    %3864 = vmatprep.subr.mxu0 0.0
    %3865 = vmatpush2.msra.mxu0 0.0
    %3866 = vmatprep.subr.mxu0 0.0
    %3867 = vmatpush2.msra.mxu0 0.0
    %3868 = vmatprep.subr.mxu0 0.0
    %3869 = vmatpush2.msra.mxu0 0.0
    %3870 = vmatprep.subr.mxu0 0.0
    %3871 = vmatpush2.msra.mxu0 0.0
    %3872 = vmatprep.subr.mxu0 0.0
    %3873 = vmatpush2.msra.mxu0 0.0
    %3874 = vmatprep.subr.mxu0 0.0
    %3875 = vmatpush2.msra.mxu0 0.0
    %3876 = vmatprep.subr.mxu0 0.0
    %3877 = vmatpush2.msra.mxu0 0.0
    %3878 = vmatprep.subr.mxu0 0.0
    %3879 = vmatpush2.msra.mxu0 0.0
    %3880 = vmatprep.subr.mxu0 0.0
    %3881 = vmatpush2.msra.mxu0 0.0
    %3882 = vmatprep.subr.mxu0 0.0
    %3883 = vmatpush2.msra.mxu0 0.0
    %3884 = vmatprep.mubr.f32.mxu0 0.0
    %3885 = vmatmul.mubr.f32.gmra.mxu0 %v3818
    %v3886 = vpop.f32.mrf.mxu0
    %v3887 = vadd.f32 %v3815, %v3886
    %v3888 = vpop.f32.mrf.mxu0
    %v3889 = vadd.f32 %v3815, %v3888
    %3890 = vdwg.mxu0
    %3891 = vmatprep.subr.mxu0 0.0
    %3892 = vmatpush1.msra.mxu0 0.0
    %3893 = vmatprep.subr.mxu0 0.0
    %3894 = vmatpush1.msra.mxu0 0.0
    %3895 = vmatprep.subr.mxu0 0.0
    %3896 = vmatpush1.msra.mxu0 0.0
    %3897 = vmatprep.subr.mxu0 0.0
    %3898 = vmatpush1.msra.mxu0 0.0
    %3899 = vmatprep.subr.mxu0 0.0
    %3900 = vmatpush1.msra.mxu0 0.0
    %3901 = vmatprep.subr.mxu0 0.0
    %3902 = vmatpush1.msra.mxu0 0.0
    %3903 = vmatprep.subr.mxu0 0.0
    %3904 = vmatpush1.msra.mxu0 0.0
    %3905 = vmatprep.subr.mxu0 %v3805
    %3906 = vmatpush1.msra.mxu0 %v3804
    %3907 = vmatprep.subr.mxu0 %v3782
    %3908 = vmatpush1.msra.mxu0 %v3781
    %3909 = vmatprep.subr.mxu0 %v3759
    %3910 = vmatpush1.msra.mxu0 %v3758
    %3911 = vmatprep.subr.mxu0 %v3736
    %3912 = vmatpush1.msra.mxu0 %v3735
    %3913 = vmatprep.subr.mxu0 %v3713
    %3914 = vmatpush1.msra.mxu0 %v3712
    %3915 = vmatprep.subr.mxu0 %v3693
    %3916 = vmatpush1.msra.mxu0 %v3692
    %3917 = vmatprep.subr.mxu0 %v3670
    %3918 = vmatpush1.msra.mxu0 %v3669
    %3919 = vmatprep.subr.mxu0 %v3647
    %3920 = vmatpush1.msra.mxu0 %v3646
    %3921 = vmatprep.subr.mxu0 %v3593
    %3922 = vmatpush1.msra.mxu0 %v3592
    %3923 = vmatprep.subr.mxu0 0.0
    %3924 = vmatpush2.msra.mxu0 0.0
    %3925 = vmatprep.subr.mxu0 0.0
    %3926 = vmatpush2.msra.mxu0 0.0
    %3927 = vmatprep.subr.mxu0 0.0
    %3928 = vmatpush2.msra.mxu0 0.0
    %3929 = vmatprep.subr.mxu0 0.0
    %3930 = vmatpush2.msra.mxu0 0.0
    %3931 = vmatprep.subr.mxu0 0.0
    %3932 = vmatpush2.msra.mxu0 0.0
    %3933 = vmatprep.subr.mxu0 0.0
    %3934 = vmatpush2.msra.mxu0 0.0
    %3935 = vmatprep.subr.mxu0 0.0
    %3936 = vmatpush2.msra.mxu0 0.0
    %3937 = vmatprep.subr.mxu0 0.0
    %3938 = vmatpush2.msra.mxu0 0.0
    %3939 = vmatprep.subr.mxu0 0.0
    %3940 = vmatpush2.msra.mxu0 0.0
    %3941 = vmatprep.subr.mxu0 0.0
    %3942 = vmatpush2.msra.mxu0 0.0
    %3943 = vmatprep.subr.mxu0 0.0
    %3944 = vmatpush2.msra.mxu0 0.0
    %3945 = vmatprep.subr.mxu0 0.0
    %3946 = vmatpush2.msra.mxu0 0.0
    %3947 = vmatprep.subr.mxu0 0.0
    %3948 = vmatpush2.msra.mxu0 0.0
    %3949 = vmatprep.subr.mxu0 0.0
    %3950 = vmatpush2.msra.mxu0 0.0
    %3951 = vmatprep.subr.mxu0 0.0
    %3952 = vmatpush2.msra.mxu0 0.0
    %3953 = vmatprep.subr.mxu0 0.0
    %3954 = vmatpush2.msra.mxu0 0.0
    %3955 = vmatprep.mubr.f32.mxu0 0.0
    %3956 = vmatmul.mubr.f32.gmra.mxu0 %v3818
    %v3957 = vpop.f32.mrf.mxu0
    %v3958 = vadd.f32 %v3815, %v3957
    %v3959 = vpop.f32.mrf.mxu0
    %v3960 = vadd.f32 %v3815, %v3959
    %3961 = vdwg.mxu0
    %v3962 = vtanh.pop %v3887
    %v3963 = vtanh.pop %v3889
    %v3964 = vtanh.pop %v3958
    %v3965 = vtanh.pop %v3960
    %v3970 = vcombine.low %v3962, %v3963
    %v3971 = vcombine.low %v3964, %v3965
    %3974 = vst [vmem:[%s3] sm:$0x77] %v3970
    %3975 = vst [vmem:[%s3 + $0x8] sm:$0x77] %v3971
    // Predicated region
    $region22: #{fwd.1} parent=1 // pred_check
      _
    $region23: #{fwd.1} parent=1 // pred_check_branch
      %3977 = sbr.rel (0) target = $region25
    $region24: #{fwd.1} parent=1 // pred_region
      _
    $region25: #{fwd.1} parent=1 // pred_fallthru
      _
    // Predicated region
    $region26: #{fwd.1} parent=1 // pred_check
      _
    $region27: #{fwd.1} parent=1 // pred_check_branch
      %3979 = sbr.rel (0) target = $region29
    $region28: #{fwd.1} parent=1 // pred_region
      _
    $region29: #{fwd.1} parent=1 // pred_fallthru
      _
    %3980 = vsyncpa [#allocation3], 1
    %3981 = vsyncpa [#allocation5], 1

</llo_original>
